<compile_context>
chip_gen: v7x
topology: tpu7x:2x2x1
jax: 0.10.0
libtpu: 0.0.40
codegen_flags: <defaults>
</compile_context>

<pallas_src>
import functools

import jax
import jax.numpy as jnp
from jax.experimental import pallas as pl
from jax.experimental.pallas import tpu as pltpu


# -------------------- in-kernel im2col tile gather --------------------

def _im2col_tile(x_ref, *, KH, KW, OW, toh, stride, dilation, oh_tile):
    """Build the (toh*OW, KH*KW*Cin) im2col LHS for one oh-tile from the padded NHWC image
    resident in VMEM.  Column order is (kh, kw, cin)-major, matching the weight reshape."""
    rows = toh * OW
    h_base = pl.multiple_of(oh_tile * (toh * stride), toh * stride)
    cols = []
    for kh in range(KH):                      # static unroll over filter taps
        hstart = h_base + kh * dilation
        for kw in range(KW):
            wstart = kw * dilation
            if stride == 1:
                patch = x_ref[pl.ds(hstart, toh), pl.ds(wstart, OW), :]
            else:
                patch = x_ref[pl.ds(hstart, toh, stride), pl.ds(wstart, OW, stride), :]
            cols.append(patch.reshape(rows, patch.shape[-1]))
    return jnp.concatenate(cols, axis=-1)     # (rows, KH*KW*Cin)


# -------------------- pass 1: conv (single K-fused matmul) + per-image BN stats --------------------

def _conv_stats_kernel(x_ref, w_ref, sum_ref, sq_ref, *,
                       KH, KW, OW, toh, stride, dilation):
    """x_ref: (Hp, Wp, Cin) padded image (resident across the oh-tile axis)
    w_ref: (KH*KW*Cin, Cpad) weights
    sum_ref / sq_ref: (1, Cpad) per-image partial sums, accumulated in the revisited output block
    (output index depends only on n -> no cross-core race under a parallel N axis)."""
    j = pl.program_id(1)

    @pl.when(j == 0)
    def _init():
        sum_ref[...] = jnp.zeros_like(sum_ref)
        sq_ref[...] = jnp.zeros_like(sq_ref)

    lhs = _im2col_tile(x_ref, KH=KH, KW=KW, OW=OW, toh=toh,
                       stride=stride, dilation=dilation, oh_tile=j)
    y = jnp.dot(lhs, w_ref[...], preferred_element_type=jnp.float32)   # one MXU matmul, K fused
    sum_ref[...] += jnp.sum(y, axis=0, keepdims=True)
    sq_ref[...] += jnp.sum(y * y, axis=0, keepdims=True)


# -------------------- pass 2: recompute conv + apply scale/shift into final output --------------------

def _conv_apply_kernel(x_ref, w_ref, scale_ref, shift_ref, o_ref, *,
                       KH, KW, OW, toh, stride, dilation):
    j = pl.program_id(1)
    lhs = _im2col_tile(x_ref, KH=KH, KW=KW, OW=OW, toh=toh,
                       stride=stride, dilation=dilation, oh_tile=j)
    y = jnp.dot(lhs, w_ref[...], preferred_element_type=jnp.float32)
    y = y * scale_ref[...] + shift_ref[...]
    o_ref[...] = y.reshape(toh, OW, y.shape[-1]).astype(o_ref.dtype)   # lane-dense (Cpad) store


# -------------------- wrapper --------------------

def conv2d_batchnorm(x_nchw, weight, bias, gamma, beta, *,
                     stride=1, padding=1, dilation=1, eps=1e-5,
                     compute_dtype=jnp.bfloat16):
    # `bias` is accepted for API parity with nn.Conv2d(bias=True) but is unused: training-mode
    # BatchNorm subtracts the per-channel batch mean, which cancels a per-channel conv bias
    # exactly.  (Eval-mode running stats would NOT allow this.)
    del bias

    N, Cin, H, W = x_nchw.shape
    Cout, _, KH, KW = weight.shape

    # ---- plain-JAX glue: layout + zero padding ----
    x = jnp.transpose(x_nchw, (0, 2, 3, 1)).astype(compute_dtype)            # NHWC
    xp = jnp.pad(x, ((0, 0), (padding, padding), (padding, padding), (0, 0)))
    Hp, Wp = H + 2 * padding, W + 2 * padding
    OH = (Hp - dilation * (KH - 1) - 1) // stride + 1
    OW = (Wp - dilation * (KW - 1) - 1) // stride + 1

    # Lane-dense channel axis: pad Cout to a multiple of 128 (zero weight columns -> padded
    # channels are exactly zero and produce scale = shift = 0, no NaNs).
    Cpad = ((Cout + 127) // 128) * 128
    Kfull = KH * KW * Cin
    Wmat = jnp.transpose(weight, (2, 3, 1, 0)).reshape(Kfull, Cout)          # (kh,kw,cin)-major
    Wmat = jnp.pad(Wmat, ((0, 0), (0, Cpad - Cout))).astype(compute_dtype)
    g = jnp.pad(gamma.reshape(1, Cout).astype(jnp.float32), ((0, 0), (0, Cpad - Cout)))
    b = jnp.pad(beta.reshape(1, Cout).astype(jnp.float32), ((0, 0), (0, Cpad - Cout)))

    # Conv tile = (toh output rows) x (full OW).  4-D output layout (N, OH, OW, Cpad) means the
    # second-to-last block dim is always the full OW -> legal for any OH/OW (no %8 hazard).
    row_budget = 2048
    toh = 1
    upper = max(1, min(OH, row_budget // max(OW, 1)))
    for cand in range(upper, 0, -1):
        if OH % cand == 0:
            toh = cand
            break
    n_oh = OH // toh
    M = N * OH * OW
    inv_m = 1.0 / float(M)

    common = dict(KH=KH, KW=KW, OW=OW, toh=toh, stride=stride, dilation=dilation)
    vmem_limit = 48 * 1024 * 1024        # explicit; fits v7x's 64 MiB physical VMEM
    x_spec = pl.BlockSpec((None, Hp, Wp, Cin), lambda n, j: (n, 0, 0, 0))
    w_spec = pl.BlockSpec((Kfull, Cpad), lambda n, j: (0, 0))

    # ---- pass 1: conv + per-image BN partial sums (no big intermediate written) ----
    sums, sqs = pl.pallas_call(
        functools.partial(_conv_stats_kernel, **common),
        out_shape=(
            jax.ShapeDtypeStruct((N, 1, Cpad), jnp.float32),
            jax.ShapeDtypeStruct((N, 1, Cpad), jnp.float32),
        ),
        grid_spec=pltpu.PrefetchScalarGridSpec(
            num_scalar_prefetch=0,
            grid=(N, n_oh),
            in_specs=[x_spec, w_spec],
            out_specs=(
                pl.BlockSpec((None, 1, Cpad), lambda n, j: (n, 0, 0)),
                pl.BlockSpec((None, 1, Cpad), lambda n, j: (n, 0, 0)),
            ),
        ),
        compiler_params=pltpu.CompilerParams(
            dimension_semantics=("parallel", "arbitrary"),
            vmem_limit_bytes=vmem_limit),
    )(xp, Wmat)

    # ---- tiny plain-JAX finalize: (N, Cpad) -> per-channel scale / shift ----
    mean = jnp.sum(sums, axis=0) * inv_m                               # (1, Cpad)
    var = jnp.maximum(jnp.sum(sqs, axis=0) * inv_m - mean * mean, 0.0)  # clamp cancellation
    scale = g * jax.lax.rsqrt(var + eps)
    shift = b - mean * scale

    # ---- pass 2: recompute conv, apply y*scale + shift directly into the final output ----
    out4 = pl.pallas_call(
        functools.partial(_conv_apply_kernel, **common),
        out_shape=jax.ShapeDtypeStruct((N, OH, OW, Cpad), jnp.float32),
        grid_spec=pltpu.PrefetchScalarGridSpec(
            num_scalar_prefetch=0,
            grid=(N, n_oh),
            in_specs=[x_spec, w_spec,
                      pl.BlockSpec((1, Cpad), lambda n, j: (0, 0)),
                      pl.BlockSpec((1, Cpad), lambda n, j: (0, 0))],
            out_specs=pl.BlockSpec((None, toh, OW, Cpad), lambda n, j: (n, j, 0, 0)),
        ),
        compiler_params=pltpu.CompilerParams(
            dimension_semantics=("parallel", "parallel"),
            vmem_limit_bytes=vmem_limit),
    )(xp, Wmat, scale, shift)

    out = out4[..., :Cout]
    return jnp.transpose(out, (0, 3, 1, 2))                            # back to NCHW


# -------------------- pure-JAX reference (for sanity) --------------------

def _reference(x, weight, bias, gamma, beta, *, stride, padding, dilation, eps=1e-5):
    y = jax.lax.conv_general_dilated(
        x.astype(jnp.float32), weight.astype(jnp.float32),
        window_strides=(stride, stride),
        padding=[(padding, padding), (padding, padding)],
        rhs_dilation=(dilation, dilation),
        dimension_numbers=("NCHW", "OIHW", "NCHW"),
    ) + bias.reshape(1, -1, 1, 1)
    mean = jnp.mean(y, axis=(0, 2, 3), keepdims=True)
    var = jnp.mean(y * y, axis=(0, 2, 3), keepdims=True) - mean * mean
    return gamma.reshape(1, -1, 1, 1) * (y - mean) * jax.lax.rsqrt(var + eps) \
        + beta.reshape(1, -1, 1, 1)


# -------------------- main --------------------

if __name__ == "__main__":
    key = jax.random.PRNGKey(0)
    k_x, k_w, k_b, k_g, k_be = jax.random.split(key, 5)

    N, Cin, H, W = 2, 4, 16, 16
    Cout, KH, KW = 8, 3, 3
    stride, padding, dilation = 1, 1, 1

    x = jax.random.normal(k_x, (N, Cin, H, W), jnp.float32)

    # Deterministic parameter init (PyTorch-like uniform bounds for conv)
    fan_in = Cin * KH * KW
    bound = 1.0 / (fan_in ** 0.5)
    weight = jax.random.uniform(k_w, (Cout, Cin, KH, KW), jnp.float32, -bound, bound)
    bias = jax.random.uniform(k_b, (Cout,), jnp.float32, -bound, bound)
    gamma = 1.0 + 0.1 * jax.random.normal(k_g, (Cout,), jnp.float32)
    beta = 0.1 * jax.random.normal(k_be, (Cout,), jnp.float32)

    ref = _reference(x, weight, bias, gamma, beta,
                     stride=stride, padding=padding, dilation=dilation)

    # f32 MXU feed: matches the f32 reference tightly.
    fwd_f32 = jax.jit(functools.partial(conv2d_batchnorm, stride=stride, padding=padding,
                                        dilation=dilation, compute_dtype=jnp.float32))
    out_f32 = jax.block_until_ready(fwd_f32(x, weight, bias, gamma, beta))
    assert out_f32.shape == ref.shape == (N, Cout, H, W)
    assert jnp.allclose(out_f32, ref, rtol=1e-4, atol=1e-4), "f32 mismatch vs reference"

    # bf16 MXU feed (default / what v5e-v7x want): bf16 input rounding bounds accuracy ~1e-2.
    fwd_bf16 = jax.jit(functools.partial(conv2d_batchnorm, stride=stride, padding=padding,
                                         dilation=dilation, compute_dtype=jnp.bfloat16))
    out_bf16 = jax.block_until_ready(fwd_bf16(x, weight, bias, gamma, beta))
    assert out_bf16.shape == ref.shape
    assert jnp.allclose(out_bf16, ref, rtol=3e-2, atol=3e-2), "bf16 mismatch vs reference"

    print("KERNEL_OK")
</pallas_src>

<mosaic_0001>
module attributes {stable_mosaic.version = 11 : i64} {
  func.func @_conv_stats_kernel(%arg0: i32, %arg1: i32, %arg2: memref<1x18x18x4xf32, #tpu.memory_space<vmem>>, %arg3: memref<36x128xf32, #tpu.memory_space<vmem>>, %arg4: memref<1x1x128xf32, #tpu.memory_space<vmem>>, %arg5: memref<1x1x128xf32, #tpu.memory_space<vmem>>) attributes {dimension_semantics = [#tpu.dimension_semantics<parallel>, #tpu.dimension_semantics<arbitrary>], iteration_bounds = array<i64: 2, 1>, scalar_prefetch = 0 : i64, scratch_operands = 0 : i64, tpu.core_type = #tpu.core_type<tc>, window_params = [{transform_indices = @transform_0, window_bounds = array<i64: 1, 18, 18, 4>}, {pipeline_mode = #tpu.pipeline_mode<synchronous>, transform_indices = @transform_1, window_bounds = array<i64: 36, 128>}, {transform_indices = @transform_2, window_bounds = array<i64: 1, 1, 128>}, {transform_indices = @transform_3, window_bounds = array<i64: 1, 1, 128>}]} {
    %c0_i32 = arith.constant 0 : i32
    %0 = arith.cmpi eq, %arg1, %c0_i32 : i32
    %1 = arith.extui %0 : i1 to i32
    %c0_i32_0 = arith.constant 0 : i32
    %2 = arith.cmpi ne, %1, %c0_i32_0 : i32
    scf.if %2 {
      %cst_42 = arith.constant 0.000000e+00 : f32
      %64 = vector.broadcast %cst_42 : f32 to vector<1x128xf32>
      %c0_43 = arith.constant 0 : index
      %c0_44 = arith.constant 0 : index
      %c0_45 = arith.constant 0 : index
      %65 = vector.load %arg4[%c0_43, %c0_44, %c0_45] : memref<1x1x128xf32, #tpu.memory_space<vmem>>, vector<1x1x128xf32>
      %66 = vector.shape_cast %65 : vector<1x1x128xf32> to vector<1x128xf32>
      %67 = vector.shape_cast %64 : vector<1x128xf32> to vector<1x1x128xf32>
      tpu.vector_store %arg4[%c0_43, %c0_44, %c0_45], %67 {strides = array<i32>} : memref<1x1x128xf32, #tpu.memory_space<vmem>>, vector<1x1x128xf32>,
      %cst_46 = arith.constant 0.000000e+00 : f32
      %68 = vector.broadcast %cst_46 : f32 to vector<1x128xf32>
      %c0_47 = arith.constant 0 : index
      %c0_48 = arith.constant 0 : index
      %c0_49 = arith.constant 0 : index
      %69 = vector.load %arg5[%c0_47, %c0_48, %c0_49] : memref<1x1x128xf32, #tpu.memory_space<vmem>>, vector<1x1x128xf32>
      %70 = vector.shape_cast %69 : vector<1x1x128xf32> to vector<1x128xf32>
      %71 = vector.shape_cast %68 : vector<1x128xf32> to vector<1x1x128xf32>
      tpu.vector_store %arg5[%c0_47, %c0_48, %c0_49], %71 {strides = array<i32>} : memref<1x1x128xf32, #tpu.memory_space<vmem>>, vector<1x1x128xf32>,
    } else {
    }
    %c16_i32 = arith.constant 16 : i32
    %3 = arith.muli %arg1, %c16_i32 : i32
    %4 = tpu.assume_multiple %3, 16 : i32
    %c0_i32_1 = arith.constant 0 : i32
    %5 = arith.addi %4, %c0_i32_1 : i32
    %c0 = arith.constant 0 : index
    %6 = arith.index_cast %5 : i32 to index
    %c0_2 = arith.constant 0 : index
    %c0_3 = arith.constant 0 : index
    %7 = vector.load %arg2[%c0, %6, %c0_2, %c0_3] : memref<1x18x18x4xf32, #tpu.memory_space<vmem>>, vector<1x16x16x4xf32>
    %8 = vector.shape_cast %7 : vector<1x16x16x4xf32> to vector<16x16x4xf32>
    %9 = vector.shape_cast %8 : vector<16x16x4xf32> to vector<256x4xf32>
    %c0_4 = arith.constant 0 : index
    %10 = arith.index_cast %5 : i32 to index
    %c1 = arith.constant 1 : index
    %c0_5 = arith.constant 0 : index
    %11 = vector.load %arg2[%c0_4, %10, %c1, %c0_5] : memref<1x18x18x4xf32, #tpu.memory_space<vmem>>, vector<1x16x16x4xf32>
    %12 = vector.shape_cast %11 : vector<1x16x16x4xf32> to vector<16x16x4xf32>
    %13 = vector.shape_cast %12 : vector<16x16x4xf32> to vector<256x4xf32>
    %c0_6 = arith.constant 0 : index
    %14 = arith.index_cast %5 : i32 to index
    %c2 = arith.constant 2 : index
    %c0_7 = arith.constant 0 : index
    %15 = vector.load %arg2[%c0_6, %14, %c2, %c0_7] : memref<1x18x18x4xf32, #tpu.memory_space<vmem>>, vector<1x16x16x4xf32>
    %16 = vector.shape_cast %15 : vector<1x16x16x4xf32> to vector<16x16x4xf32>
    %17 = vector.shape_cast %16 : vector<16x16x4xf32> to vector<256x4xf32>
    %c1_i32 = arith.constant 1 : i32
    %18 = arith.addi %4, %c1_i32 : i32
    %c0_8 = arith.constant 0 : index
    %19 = arith.index_cast %18 : i32 to index
    %c0_9 = arith.constant 0 : index
    %c0_10 = arith.constant 0 : index
    %20 = vector.load %arg2[%c0_8, %19, %c0_9, %c0_10] : memref<1x18x18x4xf32, #tpu.memory_space<vmem>>, vector<1x16x16x4xf32>
    %21 = vector.shape_cast %20 : vector<1x16x16x4xf32> to vector<16x16x4xf32>
    %22 = vector.shape_cast %21 : vector<16x16x4xf32> to vector<256x4xf32>
    %c0_11 = arith.constant 0 : index
    %23 = arith.index_cast %18 : i32 to index
    %c1_12 = arith.constant 1 : index
    %c0_13 = arith.constant 0 : index
    %24 = vector.load %arg2[%c0_11, %23, %c1_12, %c0_13] : memref<1x18x18x4xf32, #tpu.memory_space<vmem>>, vector<1x16x16x4xf32>
    %25 = vector.shape_cast %24 : vector<1x16x16x4xf32> to vector<16x16x4xf32>
    %26 = vector.shape_cast %25 : vector<16x16x4xf32> to vector<256x4xf32>
    %c0_14 = arith.constant 0 : index
    %27 = arith.index_cast %18 : i32 to index
    %c2_15 = arith.constant 2 : index
    %c0_16 = arith.constant 0 : index
    %28 = vector.load %arg2[%c0_14, %27, %c2_15, %c0_16] : memref<1x18x18x4xf32, #tpu.memory_space<vmem>>, vector<1x16x16x4xf32>
    %29 = vector.shape_cast %28 : vector<1x16x16x4xf32> to vector<16x16x4xf32>
    %30 = vector.shape_cast %29 : vector<16x16x4xf32> to vector<256x4xf32>
    %c2_i32 = arith.constant 2 : i32
    %31 = arith.addi %4, %c2_i32 : i32
    %c0_17 = arith.constant 0 : index
    %32 = arith.index_cast %31 : i32 to index
    %c0_18 = arith.constant 0 : index
    %c0_19 = arith.constant 0 : index
    %33 = vector.load %arg2[%c0_17, %32, %c0_18, %c0_19] : memref<1x18x18x4xf32, #tpu.memory_space<vmem>>, vector<1x16x16x4xf32>
    %34 = vector.shape_cast %33 : vector<1x16x16x4xf32> to vector<16x16x4xf32>
    %35 = vector.shape_cast %34 : vector<16x16x4xf32> to vector<256x4xf32>
    %c0_20 = arith.constant 0 : index
    %36 = arith.index_cast %31 : i32 to index
    %c1_21 = arith.constant 1 : index
    %c0_22 = arith.constant 0 : index
    %37 = vector.load %arg2[%c0_20, %36, %c1_21, %c0_22] : memref<1x18x18x4xf32, #tpu.memory_space<vmem>>, vector<1x16x16x4xf32>
    %38 = vector.shape_cast %37 : vector<1x16x16x4xf32> to vector<16x16x4xf32>
    %39 = vector.shape_cast %38 : vector<16x16x4xf32> to vector<256x4xf32>
    %c0_23 = arith.constant 0 : index
    %40 = arith.index_cast %31 : i32 to index
    %c2_24 = arith.constant 2 : index
    %c0_25 = arith.constant 0 : index
    %41 = vector.load %arg2[%c0_23, %40, %c2_24, %c0_25] : memref<1x18x18x4xf32, #tpu.memory_space<vmem>>, vector<1x16x16x4xf32>
    %42 = vector.shape_cast %41 : vector<1x16x16x4xf32> to vector<16x16x4xf32>
    %43 = vector.shape_cast %42 : vector<16x16x4xf32> to vector<256x4xf32>
    %44 = tpu.concatenate %9, %13, %17, %22, %26, %30, %35, %39, %43 in 1 : vector<256x4xf32>, vector<256x4xf32>, vector<256x4xf32>, vector<256x4xf32>, vector<256x4xf32>, vector<256x4xf32>, vector<256x4xf32>, vector<256x4xf32>, vector<256x4xf32> -> vector<256x36xf32>
    %c0_26 = arith.constant 0 : index
    %c0_27 = arith.constant 0 : index
    %45 = vector.load %arg3[%c0_26, %c0_27] : memref<36x128xf32, #tpu.memory_space<vmem>>, vector<36x128xf32>
    %cst = arith.constant dense<0.000000e+00> : vector<256x128xf32>
    %46 = tpu.matmul %44, %45, %cst {dimension_numbers = #tpu.dot_dimension_numbers<[1], [0], [0], [1], [0, 0, 1, 1], [], []>} : vector<256x36xf32>, vector<36x128xf32>, vector<256x128xf32> -> vector<256x128xf32>
    %c0_28 = arith.constant 0 : index
    %c0_29 = arith.constant 0 : index
    %c0_30 = arith.constant 0 : index
    %47 = vector.load %arg4[%c0_28, %c0_29, %c0_30] : memref<1x1x128xf32, #tpu.memory_space<vmem>>, vector<1x1x128xf32>
    %48 = vector.shape_cast %47 : vector<1x1x128xf32> to vector<1x128xf32>
    %cst_31 = arith.constant dense<0.000000e+00> : vector<128xf32>
    %49 = vector.multi_reduction <add>, %46, %cst_31 [0] : vector<256x128xf32> to vector<128xf32>
    %50 = vector.shape_cast %49 : vector<128xf32> to vector<1x128xf32>
    %51 = arith.addf %48, %50 : vector<1x128xf32>
    %c0_32 = arith.constant 0 : index
    %c0_33 = arith.constant 0 : index
    %c0_34 = arith.constant 0 : index
    %52 = vector.load %arg4[%c0_32, %c0_33, %c0_34] : memref<1x1x128xf32, #tpu.memory_space<vmem>>, vector<1x1x128xf32>
    %53 = vector.shape_cast %52 : vector<1x1x128xf32> to vector<1x128xf32>
    %54 = vector.shape_cast %51 : vector<1x128xf32> to vector<1x1x128xf32>
    tpu.vector_store %arg4[%c0_32, %c0_33, %c0_34], %54 {strides = array<i32>} : memref<1x1x128xf32, #tpu.memory_space<vmem>>, vector<1x1x128xf32>,
    %c0_35 = arith.constant 0 : index
    %c0_36 = arith.constant 0 : index
    %c0_37 = arith.constant 0 : index
    %55 = vector.load %arg5[%c0_35, %c0_36, %c0_37] : memref<1x1x128xf32, #tpu.memory_space<vmem>>, vector<1x1x128xf32>
    %56 = vector.shape_cast %55 : vector<1x1x128xf32> to vector<1x128xf32>
    %57 = arith.mulf %46, %46 : vector<256x128xf32>
    %cst_38 = arith.constant dense<0.000000e+00> : vector<128xf32>
    %58 = vector.multi_reduction <add>, %57, %cst_38 [0] : vector<256x128xf32> to vector<128xf32>
    %59 = vector.shape_cast %58 : vector<128xf32> to vector<1x128xf32>
    %60 = arith.addf %56, %59 : vector<1x128xf32>
    %c0_39 = arith.constant 0 : index
    %c0_40 = arith.constant 0 : index
    %c0_41 = arith.constant 0 : index
    %61 = vector.load %arg5[%c0_39, %c0_40, %c0_41] : memref<1x1x128xf32, #tpu.memory_space<vmem>>, vector<1x1x128xf32>
    %62 = vector.shape_cast %61 : vector<1x1x128xf32> to vector<1x128xf32>
    %63 = vector.shape_cast %60 : vector<1x128xf32> to vector<1x1x128xf32>
    tpu.vector_store %arg5[%c0_39, %c0_40, %c0_41], %63 {strides = array<i32>} : memref<1x1x128xf32, #tpu.memory_space<vmem>>, vector<1x1x128xf32>,
    return
  }
  func.func @transform_0(%arg0: i32, %arg1: i32) -> (i32, i32, i32, i32) {
    %c0_i32 = arith.constant 0 : i32
    %c0_i32_0 = arith.constant 0 : i32
    %c0_i32_1 = arith.constant 0 : i32
    %c0_i32_2 = arith.constant 0 : i32
    return %arg0, %c0_i32, %c0_i32_0, %c0_i32_1 : i32, i32, i32, i32
  }
  func.func @transform_1(%arg0: i32, %arg1: i32) -> (i32, i32) {
    %c0_i32 = arith.constant 0 : i32
    %c0_i32_0 = arith.constant 0 : i32
    %c0_i32_1 = arith.constant 0 : i32
    return %c0_i32, %c0_i32_0 : i32, i32
  }
  func.func @transform_2(%arg0: i32, %arg1: i32) -> (i32, i32, i32) {
    %c0_i32 = arith.constant 0 : i32
    %c0_i32_0 = arith.constant 0 : i32
    %c0_i32_1 = arith.constant 0 : i32
    return %arg0, %c0_i32, %c0_i32_0 : i32, i32, i32
  }
  func.func @transform_3(%arg0: i32, %arg1: i32) -> (i32, i32, i32) {
    %c0_i32 = arith.constant 0 : i32
    %c0_i32_0 = arith.constant 0 : i32
    %c0_i32_1 = arith.constant 0 : i32
    return %arg0, %c0_i32, %c0_i32_0 : i32, i32, i32
  }
}

module attributes {stable_mosaic.version = 11 : i64} {
  func.func @_conv_apply_kernel(%arg0: i32, %arg1: i32, %arg2: memref<1x18x18x4xf32, #tpu.memory_space<vmem>>, %arg3: memref<36x128xf32, #tpu.memory_space<vmem>>, %arg4: memref<1x128xf32, #tpu.memory_space<vmem>>, %arg5: memref<1x128xf32, #tpu.memory_space<vmem>>, %arg6: memref<1x16x16x128xf32, #tpu.memory_space<vmem>>) attributes {dimension_semantics = [#tpu.dimension_semantics<parallel>, #tpu.dimension_semantics<parallel>], iteration_bounds = array<i64: 2, 1>, scalar_prefetch = 0 : i64, scratch_operands = 0 : i64, tpu.core_type = #tpu.core_type<tc>, window_params = [{transform_indices = @transform_0, window_bounds = array<i64: 1, 18, 18, 4>}, {pipeline_mode = #tpu.pipeline_mode<synchronous>, transform_indices = @transform_1, window_bounds = array<i64: 36, 128>}, {pipeline_mode = #tpu.pipeline_mode<synchronous>, transform_indices = @transform_2, window_bounds = array<i64: 1, 128>}, {pipeline_mode = #tpu.pipeline_mode<synchronous>, transform_indices = @transform_3, window_bounds = array<i64: 1, 128>}, {transform_indices = @transform_4, window_bounds = array<i64: 1, 16, 16, 128>}]} {
    %c16_i32 = arith.constant 16 : i32
    %0 = arith.muli %arg1, %c16_i32 : i32
    %1 = tpu.assume_multiple %0, 16 : i32
    %c0_i32 = arith.constant 0 : i32
    %2 = arith.addi %1, %c0_i32 : i32
    %c0 = arith.constant 0 : index
    %3 = arith.index_cast %2 : i32 to index
    %c0_0 = arith.constant 0 : index
    %c0_1 = arith.constant 0 : index
    %4 = vector.load %arg2[%c0, %3, %c0_0, %c0_1] : memref<1x18x18x4xf32, #tpu.memory_space<vmem>>, vector<1x16x16x4xf32>
    %5 = vector.shape_cast %4 : vector<1x16x16x4xf32> to vector<16x16x4xf32>
    %6 = vector.shape_cast %5 : vector<16x16x4xf32> to vector<256x4xf32>
    %c0_2 = arith.constant 0 : index
    %7 = arith.index_cast %2 : i32 to index
    %c1 = arith.constant 1 : index
    %c0_3 = arith.constant 0 : index
    %8 = vector.load %arg2[%c0_2, %7, %c1, %c0_3] : memref<1x18x18x4xf32, #tpu.memory_space<vmem>>, vector<1x16x16x4xf32>
    %9 = vector.shape_cast %8 : vector<1x16x16x4xf32> to vector<16x16x4xf32>
    %10 = vector.shape_cast %9 : vector<16x16x4xf32> to vector<256x4xf32>
    %c0_4 = arith.constant 0 : index
    %11 = arith.index_cast %2 : i32 to index
    %c2 = arith.constant 2 : index
    %c0_5 = arith.constant 0 : index
    %12 = vector.load %arg2[%c0_4, %11, %c2, %c0_5] : memref<1x18x18x4xf32, #tpu.memory_space<vmem>>, vector<1x16x16x4xf32>
    %13 = vector.shape_cast %12 : vector<1x16x16x4xf32> to vector<16x16x4xf32>
    %14 = vector.shape_cast %13 : vector<16x16x4xf32> to vector<256x4xf32>
    %c1_i32 = arith.constant 1 : i32
    %15 = arith.addi %1, %c1_i32 : i32
    %c0_6 = arith.constant 0 : index
    %16 = arith.index_cast %15 : i32 to index
    %c0_7 = arith.constant 0 : index
    %c0_8 = arith.constant 0 : index
    %17 = vector.load %arg2[%c0_6, %16, %c0_7, %c0_8] : memref<1x18x18x4xf32, #tpu.memory_space<vmem>>, vector<1x16x16x4xf32>
    %18 = vector.shape_cast %17 : vector<1x16x16x4xf32> to vector<16x16x4xf32>
    %19 = vector.shape_cast %18 : vector<16x16x4xf32> to vector<256x4xf32>
    %c0_9 = arith.constant 0 : index
    %20 = arith.index_cast %15 : i32 to index
    %c1_10 = arith.constant 1 : index
    %c0_11 = arith.constant 0 : index
    %21 = vector.load %arg2[%c0_9, %20, %c1_10, %c0_11] : memref<1x18x18x4xf32, #tpu.memory_space<vmem>>, vector<1x16x16x4xf32>
    %22 = vector.shape_cast %21 : vector<1x16x16x4xf32> to vector<16x16x4xf32>
    %23 = vector.shape_cast %22 : vector<16x16x4xf32> to vector<256x4xf32>
    %c0_12 = arith.constant 0 : index
    %24 = arith.index_cast %15 : i32 to index
    %c2_13 = arith.constant 2 : index
    %c0_14 = arith.constant 0 : index
    %25 = vector.load %arg2[%c0_12, %24, %c2_13, %c0_14] : memref<1x18x18x4xf32, #tpu.memory_space<vmem>>, vector<1x16x16x4xf32>
    %26 = vector.shape_cast %25 : vector<1x16x16x4xf32> to vector<16x16x4xf32>
    %27 = vector.shape_cast %26 : vector<16x16x4xf32> to vector<256x4xf32>
    %c2_i32 = arith.constant 2 : i32
    %28 = arith.addi %1, %c2_i32 : i32
    %c0_15 = arith.constant 0 : index
    %29 = arith.index_cast %28 : i32 to index
    %c0_16 = arith.constant 0 : index
    %c0_17 = arith.constant 0 : index
    %30 = vector.load %arg2[%c0_15, %29, %c0_16, %c0_17] : memref<1x18x18x4xf32, #tpu.memory_space<vmem>>, vector<1x16x16x4xf32>
    %31 = vector.shape_cast %30 : vector<1x16x16x4xf32> to vector<16x16x4xf32>
    %32 = vector.shape_cast %31 : vector<16x16x4xf32> to vector<256x4xf32>
    %c0_18 = arith.constant 0 : index
    %33 = arith.index_cast %28 : i32 to index
    %c1_19 = arith.constant 1 : index
    %c0_20 = arith.constant 0 : index
    %34 = vector.load %arg2[%c0_18, %33, %c1_19, %c0_20] : memref<1x18x18x4xf32, #tpu.memory_space<vmem>>, vector<1x16x16x4xf32>
    %35 = vector.shape_cast %34 : vector<1x16x16x4xf32> to vector<16x16x4xf32>
    %36 = vector.shape_cast %35 : vector<16x16x4xf32> to vector<256x4xf32>
    %c0_21 = arith.constant 0 : index
    %37 = arith.index_cast %28 : i32 to index
    %c2_22 = arith.constant 2 : index
    %c0_23 = arith.constant 0 : index
    %38 = vector.load %arg2[%c0_21, %37, %c2_22, %c0_23] : memref<1x18x18x4xf32, #tpu.memory_space<vmem>>, vector<1x16x16x4xf32>
    %39 = vector.shape_cast %38 : vector<1x16x16x4xf32> to vector<16x16x4xf32>
    %40 = vector.shape_cast %39 : vector<16x16x4xf32> to vector<256x4xf32>
    %41 = tpu.concatenate %6, %10, %14, %19, %23, %27, %32, %36, %40 in 1 : vector<256x4xf32>, vector<256x4xf32>, vector<256x4xf32>, vector<256x4xf32>, vector<256x4xf32>, vector<256x4xf32>, vector<256x4xf32>, vector<256x4xf32>, vector<256x4xf32> -> vector<256x36xf32>
    %c0_24 = arith.constant 0 : index
    %c0_25 = arith.constant 0 : index
    %42 = vector.load %arg3[%c0_24, %c0_25] : memref<36x128xf32, #tpu.memory_space<vmem>>, vector<36x128xf32>
    %cst = arith.constant dense<0.000000e+00> : vector<256x128xf32>
    %43 = tpu.matmul %41, %42, %cst {dimension_numbers = #tpu.dot_dimension_numbers<[1], [0], [0], [1], [0, 0, 1, 1], [], []>} : vector<256x36xf32>, vector<36x128xf32>, vector<256x128xf32> -> vector<256x128xf32>
    %c0_26 = arith.constant 0 : index
    %c0_27 = arith.constant 0 : index
    %44 = vector.load %arg4[%c0_26, %c0_27] : memref<1x128xf32, #tpu.memory_space<vmem>>, vector<1x128xf32>
    %45 = vector.broadcast %44 : vector<1x128xf32> to vector<256x128xf32>
    %46 = arith.mulf %43, %45 : vector<256x128xf32>
    %c0_28 = arith.constant 0 : index
    %c0_29 = arith.constant 0 : index
    %47 = vector.load %arg5[%c0_28, %c0_29] : memref<1x128xf32, #tpu.memory_space<vmem>>, vector<1x128xf32>
    %48 = vector.broadcast %47 : vector<1x128xf32> to vector<256x128xf32>
    %49 = arith.addf %46, %48 : vector<256x128xf32>
    %50 = vector.shape_cast %49 : vector<256x128xf32> to vector<16x16x128xf32>
    %c0_30 = arith.constant 0 : index
    %c0_31 = arith.constant 0 : index
    %c0_32 = arith.constant 0 : index
    %c0_33 = arith.constant 0 : index
    %51 = vector.load %arg6[%c0_30, %c0_31, %c0_32, %c0_33] : memref<1x16x16x128xf32, #tpu.memory_space<vmem>>, vector<1x16x16x128xf32>
    %52 = vector.shape_cast %51 : vector<1x16x16x128xf32> to vector<16x16x128xf32>
    %53 = vector.shape_cast %50 : vector<16x16x128xf32> to vector<1x16x16x128xf32>
    tpu.vector_store %arg6[%c0_30, %c0_31, %c0_32, %c0_33], %53 {strides = array<i32>} : memref<1x16x16x128xf32, #tpu.memory_space<vmem>>, vector<1x16x16x128xf32>,
    return
  }
  func.func @transform_0(%arg0: i32, %arg1: i32) -> (i32, i32, i32, i32) {
    %c0_i32 = arith.constant 0 : i32
    %c0_i32_0 = arith.constant 0 : i32
    %c0_i32_1 = arith.constant 0 : i32
    %c0_i32_2 = arith.constant 0 : i32
    return %arg0, %c0_i32, %c0_i32_0, %c0_i32_1 : i32, i32, i32, i32
  }
  func.func @transform_1(%arg0: i32, %arg1: i32) -> (i32, i32) {
    %c0_i32 = arith.constant 0 : i32
    %c0_i32_0 = arith.constant 0 : i32
    %c0_i32_1 = arith.constant 0 : i32
    return %c0_i32, %c0_i32_0 : i32, i32
  }
  func.func @transform_2(%arg0: i32, %arg1: i32) -> (i32, i32) {
    %c0_i32 = arith.constant 0 : i32
    %c0_i32_0 = arith.constant 0 : i32
    %c0_i32_1 = arith.constant 0 : i32
    return %c0_i32, %c0_i32_0 : i32, i32
  }
  func.func @transform_3(%arg0: i32, %arg1: i32) -> (i32, i32) {
    %c0_i32 = arith.constant 0 : i32
    %c0_i32_0 = arith.constant 0 : i32
    %c0_i32_1 = arith.constant 0 : i32
    return %c0_i32, %c0_i32_0 : i32, i32
  }
  func.func @transform_4(%arg0: i32, %arg1: i32) -> (i32, i32, i32, i32) {
    %c0_i32 = arith.constant 0 : i32
    %c0_i32_0 = arith.constant 0 : i32
    %c0_i32_1 = arith.constant 0 : i32
    return %arg0, %arg1, %c0_i32, %c0_i32_0 : i32, i32, i32, i32
  }
}

</mosaic_0001>

<llo_original>
// kernel: conv2d_batchnorm.2
$region0: #{conv2d_batchnorm.2}
  #allocation0 [shape = 'u32[]', space=smem, size = 0x4, offset = 0x4, fixed_abs, tag = 'smem constant byte address 0x4 - core index']
  #allocation1 [shape = 'u32[144,128]{1,0:T(1,128)}', space=vmem, size = 0x12000, scoped, tag = 'internal scratch']
  %s0 = inlined_call_operand.vmem [shape: f32[2,18,18,4], index: 0, kind: input, shape index: {}]
  %s1 = inlined_call_operand.vmem [shape: f32[36,128], index: 1, kind: input, shape index: {}]
  %s2 = inlined_call_operand.vmem [shape: f32[2,1,128], index: 2, kind: output, shape index: {0}]
  %s3 = inlined_call_operand.vmem [shape: f32[2,1,128], index: 3, kind: output, shape index: {1}]
  %4 = xla_tuple %s2, %s3
  %s5 = sld [smem:[#allocation0]]
  $region53: #{conv2d_batchnorm.2} parent=0
    _
  %s7 = ssub.s32 1, %s5
  %s8 = scalar_select 0, %s7, %s5
  loop: start=0, step=1, limit=4
  $region2: #{conv2d_batchnorm.2} parent=0 // loop_pre_header
    _
  $region3: #{conv2d_batchnorm.2} parent=0 // loop_header
    %s10 = sphi 0, %s14
    %p11 = scmp.ge.s32.totalorder %s10, 4
    %s17 = sphi 0, %s29
    %s18 = sphi 0, %s25
    %s19 = sphi 0, %s17
    %s20 = sphi 0, %s18
    %s21 = sphi 0, %s19
    %s22 = sphi 0, %s20
    %s32 = sphi 0, %s34
    %s35 = sphi 0, %s32
    %s36 = sphi 0, %s35
    %s52 = sphi 0, %s36
    %s56 = sphi 0, %s56
    %s58 = sphi 0, %s56
    %s59 = sphi 0, %s58
    %s73 = sphi 0, %s59
    %s79 = sphi 0, %s81
    %s82 = sphi 0, %s79
    %s83 = sphi 0, %s82
    %s99 = sphi 0, %s83
    %s105 = sphi 0, %s107
    %s108 = sphi 0, %s105
    %s109 = sphi 0, %s108
    %s125 = sphi 0, %s109
  $region4: #{conv2d_batchnorm.2} parent=0 // loop_header_branch
    %13 = sbr.rel (%p11) target = $region8
  $region5: #{conv2d_batchnorm.2} parent=0 // loop_body
    %s15 = ssub.s32 %s10, 1
    %s16 = ssub.s32 %s10, 2
    %s23 = sadd.s32 1, %s18
    %p24 = scmp.ge.s32.totalorder %s23, 1
    %s25 = scalar_select %p24, 0, %s23
    %s26 = sadd.s32 1, %s17
    %s27 = scalar_select %p24, %s26, %s17
    %p28 = scmp.ge.s32.totalorder %s27, 2
    %s29 = scalar_select %p28, 0, %s27
    %s30 = ssub.s32 %s17, %s29
    %p31 = scmp.eq.s32.totalorder %s30, 0
    %s33 = sadd.s32 %s32, 1
    %s34 = scalar_select %p31, %s32, %s33
    %p37 = pneg %p31
    %p38 = scmp.eq.s32.totalorder %s10, 1
    %p39 = por %p37, %p38
    %p40 = scmp.ne.s32.totalorder %s32, %s35
    %p41 = scmp.eq.s32.totalorder %s10, 0
    %p42 = por %p40, %p41
    %p43 = scmp.ne.s32.totalorder %s32, %s35
    %p44 = scmp.eq.s32.totalorder %s15, 1
    %p45 = por %p43, %p44
    %p46 = scmp.ne.s32.totalorder %s35, %s36
    %p47 = scmp.eq.s32.totalorder %s15, 0
    %p48 = por %p46, %p47
    %p49 = scmp.ne.s32.totalorder %s35, %s36
    %p50 = scmp.eq.s32.totalorder %s16, 1
    %p51 = por %p49, %p50
    %p53 = scmp.ne.s32.totalorder %s36, %s52
    %p54 = scmp.eq.s32.totalorder %s16, 0
    %p55 = por %p53, %p54
    %s57 = sadd.s32 %s56, 1
    %p60 = scmp.eq.s32.totalorder %s10, 1
    %p61 = scmp.ne.s32.totalorder %s56, %s58
    %p62 = scmp.eq.s32.totalorder %s10, 0
    %p63 = por %p61, %p62
    %p64 = scmp.ne.s32.totalorder %s56, %s58
    %p65 = scmp.eq.s32.totalorder %s15, 1
    %p66 = por %p64, %p65
    %p67 = scmp.ne.s32.totalorder %s58, %s59
    %p68 = scmp.eq.s32.totalorder %s15, 0
    %p69 = por %p67, %p68
    %p70 = scmp.ne.s32.totalorder %s58, %s59
    %p71 = scmp.eq.s32.totalorder %s16, 1
    %p72 = por %p70, %p71
    %p74 = scmp.ne.s32.totalorder %s59, %s73
    %p75 = scmp.eq.s32.totalorder %s16, 0
    %p76 = por %p74, %p75
    %s77 = ssub.s32 %s17, %s29
    %p78 = scmp.eq.s32.totalorder %s77, 0
    %s80 = sadd.s32 %s79, 1
    %s81 = scalar_select %p78, %s79, %s80
    %p84 = pneg %p78
    %p85 = scmp.eq.s32.totalorder %s10, 1
    %p86 = por %p84, %p85
    %p87 = scmp.ne.s32.totalorder %s79, %s82
    %p88 = scmp.eq.s32.totalorder %s10, 0
    %p89 = por %p87, %p88
    %p90 = scmp.ne.s32.totalorder %s79, %s82
    %p91 = scmp.eq.s32.totalorder %s15, 1
    %p92 = por %p90, %p91
    %p93 = scmp.ne.s32.totalorder %s82, %s83
    %p94 = scmp.eq.s32.totalorder %s15, 0
    %p95 = por %p93, %p94
    %p96 = scmp.ne.s32.totalorder %s82, %s83
    %p97 = scmp.eq.s32.totalorder %s16, 1
    %p98 = por %p96, %p97
    %p100 = scmp.ne.s32.totalorder %s83, %s99
    %p101 = scmp.eq.s32.totalorder %s16, 0
    %p102 = por %p100, %p101
    %s103 = ssub.s32 %s17, %s29
    %p104 = scmp.eq.s32.totalorder %s103, 0
    %s106 = sadd.s32 %s105, 1
    %s107 = scalar_select %p104, %s105, %s106
    %p110 = pneg %p104
    %p111 = scmp.eq.s32.totalorder %s10, 1
    %p112 = por %p110, %p111
    %p113 = scmp.ne.s32.totalorder %s105, %s108
    %p114 = scmp.eq.s32.totalorder %s10, 0
    %p115 = por %p113, %p114
    %p116 = scmp.ne.s32.totalorder %s105, %s108
    %p117 = scmp.eq.s32.totalorder %s15, 1
    %p118 = por %p116, %p117
    %p119 = scmp.ne.s32.totalorder %s108, %s109
    %p120 = scmp.eq.s32.totalorder %s15, 0
    %p121 = por %p119, %p120
    %p122 = scmp.ne.s32.totalorder %s108, %s109
    %p123 = scmp.eq.s32.totalorder %s16, 1
    %p124 = por %p122, %p123
    %p126 = scmp.ne.s32.totalorder %s109, %s125
    %p127 = scmp.eq.s32.totalorder %s16, 0
    %p128 = por %p126, %p127
    %p129 = scmp.le.s32.totalorder 1, %s10
    %p130 = scmp.lt.s32.totalorder %s10, 3
    %p131 = pnand %p129, %p130
    %p132 = pneg %p131
    // Predicated region
    $region9: #{conv2d_batchnorm.2} parent=5 // pred_check
      _
    $region10: #{conv2d_batchnorm.2} parent=5 // pred_check_branch
      %134 = sbr.rel (%p131) target = $region12
    $region11: #{conv2d_batchnorm.2} parent=5 // pred_region
      %s135 = ssub.s32 %s10, 1
      // Predicated region
      $region13: #{conv2d_batchnorm.2} parent=11 // pred_check
        %p136 = pneg %p69
      $region14: #{conv2d_batchnorm.2} parent=11 // pred_check_branch
        %138 = sbr.rel (%p136) target = $region16
      $region15: #{conv2d_batchnorm.2} parent=11 // pred_region
        _
      $region16: #{conv2d_batchnorm.2} parent=11 // pred_fallthru
        _
    $region12: #{conv2d_batchnorm.2} parent=5 // pred_fallthru
      _
    %p139 = scmp.lt.s32.totalorder %s10, 2
    // Predicated region
    $region17: #{conv2d_batchnorm.2} parent=5 // pred_check
      %p140 = pneg %p139
    $region18: #{conv2d_batchnorm.2} parent=5 // pred_check_branch
      %142 = sbr.rel (%p140) target = $region20
    $region19: #{conv2d_batchnorm.2} parent=5 // pred_region
      // Predicated region
      $region21: #{conv2d_batchnorm.2} parent=19 // pred_check
        %p143 = pneg %p42
      $region22: #{conv2d_batchnorm.2} parent=19 // pred_check_branch
        %145 = sbr.rel (%p143) target = $region24
      $region23: #{conv2d_batchnorm.2} parent=19 // pred_region
        %p146 = scmp.lt.s32.totalorder %s17, 1
        %s147 = scalar_select %p146, %s17, 1
        %s148 = smul.addr %s147, 54
        %s149 = smul.addr %s148, 8
        %s150 = scalar_lea.vmem %s0, %s149
      $region24: #{conv2d_batchnorm.2} parent=19 // pred_fallthru
        _
    $region20: #{conv2d_batchnorm.2} parent=5 // pred_fallthru
      _
    %p151 = scmp.le.s32.totalorder 1, %s10
    %p152 = scmp.lt.s32.totalorder %s10, 3
    %p153 = pnand %p151, %p152
    %p154 = pneg %p153
    // Predicated region
    $region25: #{conv2d_batchnorm.2} parent=5 // pred_check
      _
    $region26: #{conv2d_batchnorm.2} parent=5 // pred_check_branch
      %156 = sbr.rel (%p153) target = $region28
    $region27: #{conv2d_batchnorm.2} parent=5 // pred_region
      %s157 = ssub.s32 %s10, 1
      %p158 = scmp.lt.s32.totalorder %s19, 1
      %s159 = scalar_select %p158, %s19, 1
      %s160 = smul.addr %s159, 54
      %s161 = smul.addr %s160, 8
      %s162 = scalar_lea.vmem %s0, %s161
      %p163 = pneg %p48
      %p164 = pneg %p45
      %p165 = pneg %p69
      %p166 = pneg %p66
      %p167 = pneg %p95
      %p168 = pneg %p92
      %p169 = scmp.lt.s32.totalorder %s19, 1
      %s170 = scalar_select %p169, %s19, 1
      %s171 = scalar_lea.vmem %s2, %s170
      %p172 = pneg %p121
      %p173 = pneg %p118
      %p174 = scmp.lt.s32.totalorder %s19, 1
      %s175 = scalar_select %p174, %s19, 1
      %s176 = scalar_lea.vmem %s3, %s175
      %p177 = scmp.lt.s32.totalorder %s19, 1
      %s178 = scalar_select %p177, %s19, 1
      %s179 = smul.addr %s178, 54
      %s180 = smul.addr %s179, 8
      %s181 = scalar_lea.vmem %s0, %s180
      %p182 = scmp.lt.s32.totalorder %s19, 1
      %s183 = scalar_select %p182, %s19, 1
      %s184 = scalar_lea.vmem %s2, %s183
      %p185 = scmp.lt.s32.totalorder %s19, 1
      %s186 = scalar_select %p185, %s19, 1
      %s187 = scalar_lea.vmem %s3, %s186
      %p188 = scmp.eq.s32.totalorder %s20, 0
      // Predicated region
      $region29: #{conv2d_batchnorm.2} parent=27 // pred_check
        %p189 = pneg %p188
      $region30: #{conv2d_batchnorm.2} parent=27 // pred_check_branch
        %191 = sbr.rel (%p189) target = $region32
      $region31: #{conv2d_batchnorm.2} parent=27 // pred_region
        %192 = vst [vmem:[%s184] sm:$0x1] 0.0
        %193 = vst [vmem:[%s187] sm:$0x1] 0.0
      $region32: #{conv2d_batchnorm.2} parent=27 // pred_fallthru
        _
      %s194 = smul.u32 %s20, 16
      %s195 = smul.u32 %s194, 24
      %s196 = scalar_lea.vmem %s181, %s195
      %v197 = vld [vmem:[%s196] sm:$0xff]
      %v198 = vld [vmem:[%s196 + $0x8] sm:$0xff]
      %v199 = vld [vmem:[%s196 + $0x18] sm:$0xff]
      %v200 = vld [vmem:[%s196 + $0x20] sm:$0xff]
      %v201 = vld [vmem:[%s196 + $0x30] sm:$0xff]
      %v202 = vld [vmem:[%s196 + $0x38] sm:$0xff]
      %v203 = vld [vmem:[%s196 + $0x48] sm:$0xff]
      %v204 = vld [vmem:[%s196 + $0x50] sm:$0xff]
      %v205 = vld [vmem:[%s196 + $0x60] sm:$0xff]
      %v206 = vld [vmem:[%s196 + $0x68] sm:$0xff]
      %v207 = vld [vmem:[%s196 + $0x78] sm:$0xff]
      %v208 = vld [vmem:[%s196 + $0x80] sm:$0xff]
      %v209 = vld [vmem:[%s196 + $0x90] sm:$0xff]
      %v210 = vld [vmem:[%s196 + $0x98] sm:$0xff]
      %v211 = vld [vmem:[%s196 + $0xa8] sm:$0xff]
      %v212 = vld [vmem:[%s196 + $0xb0] sm:$0xff]
      %v213 = vld [vmem:[%s196 + $0xc0] sm:$0xff]
      %v214 = vld [vmem:[%s196 + $0xc8] sm:$0xff]
      %v215 = vld [vmem:[%s196 + $0xd8] sm:$0xff]
      %v216 = vld [vmem:[%s196 + $0xe0] sm:$0xff]
      %v217 = vld [vmem:[%s196 + $0xf0] sm:$0xff]
      %v218 = vld [vmem:[%s196 + $0xf8] sm:$0xff]
      %v219 = vld [vmem:[%s196 + $0x108] sm:$0xff]
      %v220 = vld [vmem:[%s196 + $0x110] sm:$0xff]
      %v221 = vld [vmem:[%s196 + $0x120] sm:$0xff]
      %v222 = vld [vmem:[%s196 + $0x128] sm:$0xff]
      %v223 = vld [vmem:[%s196 + $0x138] sm:$0xff]
      %v224 = vld [vmem:[%s196 + $0x140] sm:$0xff]
      %v225 = vld [vmem:[%s196 + $0x150] sm:$0xff]
      %v226 = vld [vmem:[%s196 + $0x158] sm:$0xff]
      %v227 = vld [vmem:[%s196 + $0x168] sm:$0xff]
      %v228 = vld [vmem:[%s196 + $0x170] sm:$0xff]
      %v229 = vld [vmem:[%s196 + $0x1] sm:$0xff]
      %v230 = vld [vmem:[%s196 + $0x9] sm:$0xff]
      %v231 = vld [vmem:[%s196 + $0x19] sm:$0xff]
      %v232 = vld [vmem:[%s196 + $0x21] sm:$0xff]
      %v233 = vld [vmem:[%s196 + $0x31] sm:$0xff]
      %v234 = vld [vmem:[%s196 + $0x39] sm:$0xff]
      %v235 = vld [vmem:[%s196 + $0x49] sm:$0xff]
      %v236 = vld [vmem:[%s196 + $0x51] sm:$0xff]
      %v237 = vld [vmem:[%s196 + $0x61] sm:$0xff]
      %v238 = vld [vmem:[%s196 + $0x69] sm:$0xff]
      %v239 = vld [vmem:[%s196 + $0x79] sm:$0xff]
      %v240 = vld [vmem:[%s196 + $0x81] sm:$0xff]
      %v241 = vld [vmem:[%s196 + $0x91] sm:$0xff]
      %v242 = vld [vmem:[%s196 + $0x99] sm:$0xff]
      %v243 = vld [vmem:[%s196 + $0xa9] sm:$0xff]
      %v244 = vld [vmem:[%s196 + $0xb1] sm:$0xff]
      %v245 = vld [vmem:[%s196 + $0xc1] sm:$0xff]
      %v246 = vld [vmem:[%s196 + $0xc9] sm:$0xff]
      %v247 = vld [vmem:[%s196 + $0xd9] sm:$0xff]
      %v248 = vld [vmem:[%s196 + $0xe1] sm:$0xff]
      %v249 = vld [vmem:[%s196 + $0xf1] sm:$0xff]
      %v250 = vld [vmem:[%s196 + $0xf9] sm:$0xff]
      %v251 = vld [vmem:[%s196 + $0x109] sm:$0xff]
      %v252 = vld [vmem:[%s196 + $0x111] sm:$0xff]
      %v253 = vld [vmem:[%s196 + $0x121] sm:$0xff]
      %v254 = vld [vmem:[%s196 + $0x129] sm:$0xff]
      %v255 = vld [vmem:[%s196 + $0x139] sm:$0xff]
      %v256 = vld [vmem:[%s196 + $0x141] sm:$0xff]
      %v257 = vld [vmem:[%s196 + $0x151] sm:$0xff]
      %v258 = vld [vmem:[%s196 + $0x159] sm:$0xff]
      %v259 = vld [vmem:[%s196 + $0x169] sm:$0xff]
      %v260 = vld [vmem:[%s196 + $0x171] sm:$0xff]
      %v261 = vld [vmem:[%s196 + $0x2] sm:$0xff]
      %v262 = vld [vmem:[%s196 + $0xa] sm:$0xff]
      %v263 = vld [vmem:[%s196 + $0x1a] sm:$0xff]
      %v264 = vld [vmem:[%s196 + $0x22] sm:$0xff]
      %v265 = vld [vmem:[%s196 + $0x32] sm:$0xff]
      %v266 = vld [vmem:[%s196 + $0x3a] sm:$0xff]
      %v267 = vld [vmem:[%s196 + $0x4a] sm:$0xff]
      %v268 = vld [vmem:[%s196 + $0x52] sm:$0xff]
      %v269 = vld [vmem:[%s196 + $0x62] sm:$0xff]
      %v270 = vld [vmem:[%s196 + $0x6a] sm:$0xff]
      %v271 = vld [vmem:[%s196 + $0x7a] sm:$0xff]
      %v272 = vld [vmem:[%s196 + $0x82] sm:$0xff]
      %v273 = vld [vmem:[%s196 + $0x92] sm:$0xff]
      %v274 = vld [vmem:[%s196 + $0x9a] sm:$0xff]
      %v275 = vld [vmem:[%s196 + $0xaa] sm:$0xff]
      %v276 = vld [vmem:[%s196 + $0xb2] sm:$0xff]
      %v277 = vld [vmem:[%s196 + $0xc2] sm:$0xff]
      %v278 = vld [vmem:[%s196 + $0xca] sm:$0xff]
      %v279 = vld [vmem:[%s196 + $0xda] sm:$0xff]
      %v280 = vld [vmem:[%s196 + $0xe2] sm:$0xff]
      %v281 = vld [vmem:[%s196 + $0xf2] sm:$0xff]
      %v282 = vld [vmem:[%s196 + $0xfa] sm:$0xff]
      %v283 = vld [vmem:[%s196 + $0x10a] sm:$0xff]
      %v284 = vld [vmem:[%s196 + $0x112] sm:$0xff]
      %v285 = vld [vmem:[%s196 + $0x122] sm:$0xff]
      %v286 = vld [vmem:[%s196 + $0x12a] sm:$0xff]
      %v287 = vld [vmem:[%s196 + $0x13a] sm:$0xff]
      %v288 = vld [vmem:[%s196 + $0x142] sm:$0xff]
      %v289 = vld [vmem:[%s196 + $0x152] sm:$0xff]
      %v290 = vld [vmem:[%s196 + $0x15a] sm:$0xff]
      %v291 = vld [vmem:[%s196 + $0x16a] sm:$0xff]
      %v292 = vld [vmem:[%s196 + $0x172] sm:$0xff]
      %s293 = sadd.s32 %s194, 1
      %s294 = smul.u32 %s293, 24
      %s295 = scalar_lea.vmem %s181, %s294
      %v296 = vld [vmem:[%s295] sm:$0xff]
      %v297 = vld [vmem:[%s295 + $0x8] sm:$0xff]
      %v298 = vld [vmem:[%s295 + $0x18] sm:$0xff]
      %v299 = vld [vmem:[%s295 + $0x20] sm:$0xff]
      %v300 = vld [vmem:[%s295 + $0x30] sm:$0xff]
      %v301 = vld [vmem:[%s295 + $0x38] sm:$0xff]
      %v302 = vld [vmem:[%s295 + $0x48] sm:$0xff]
      %v303 = vld [vmem:[%s295 + $0x50] sm:$0xff]
      %v304 = vld [vmem:[%s295 + $0x60] sm:$0xff]
      %v305 = vld [vmem:[%s295 + $0x68] sm:$0xff]
      %v306 = vld [vmem:[%s295 + $0x78] sm:$0xff]
      %v307 = vld [vmem:[%s295 + $0x80] sm:$0xff]
      %v308 = vld [vmem:[%s295 + $0x90] sm:$0xff]
      %v309 = vld [vmem:[%s295 + $0x98] sm:$0xff]
      %v310 = vld [vmem:[%s295 + $0xa8] sm:$0xff]
      %v311 = vld [vmem:[%s295 + $0xb0] sm:$0xff]
      %v312 = vld [vmem:[%s295 + $0xc0] sm:$0xff]
      %v313 = vld [vmem:[%s295 + $0xc8] sm:$0xff]
      %v314 = vld [vmem:[%s295 + $0xd8] sm:$0xff]
      %v315 = vld [vmem:[%s295 + $0xe0] sm:$0xff]
      %v316 = vld [vmem:[%s295 + $0xf0] sm:$0xff]
      %v317 = vld [vmem:[%s295 + $0xf8] sm:$0xff]
      %v318 = vld [vmem:[%s295 + $0x108] sm:$0xff]
      %v319 = vld [vmem:[%s295 + $0x110] sm:$0xff]
      %v320 = vld [vmem:[%s295 + $0x120] sm:$0xff]
      %v321 = vld [vmem:[%s295 + $0x128] sm:$0xff]
      %v322 = vld [vmem:[%s295 + $0x138] sm:$0xff]
      %v323 = vld [vmem:[%s295 + $0x140] sm:$0xff]
      %v324 = vld [vmem:[%s295 + $0x150] sm:$0xff]
      %v325 = vld [vmem:[%s295 + $0x158] sm:$0xff]
      %v326 = vld [vmem:[%s295 + $0x168] sm:$0xff]
      %v327 = vld [vmem:[%s295 + $0x170] sm:$0xff]
      %v328 = vld [vmem:[%s295 + $0x1] sm:$0xff]
      %v329 = vld [vmem:[%s295 + $0x9] sm:$0xff]
      %v330 = vld [vmem:[%s295 + $0x19] sm:$0xff]
      %v331 = vld [vmem:[%s295 + $0x21] sm:$0xff]
      %v332 = vld [vmem:[%s295 + $0x31] sm:$0xff]
      %v333 = vld [vmem:[%s295 + $0x39] sm:$0xff]
      %v334 = vld [vmem:[%s295 + $0x49] sm:$0xff]
      %v335 = vld [vmem:[%s295 + $0x51] sm:$0xff]
      %v336 = vld [vmem:[%s295 + $0x61] sm:$0xff]
      %v337 = vld [vmem:[%s295 + $0x69] sm:$0xff]
      %v338 = vld [vmem:[%s295 + $0x79] sm:$0xff]
      %v339 = vld [vmem:[%s295 + $0x81] sm:$0xff]
      %v340 = vld [vmem:[%s295 + $0x91] sm:$0xff]
      %v341 = vld [vmem:[%s295 + $0x99] sm:$0xff]
      %v342 = vld [vmem:[%s295 + $0xa9] sm:$0xff]
      %v343 = vld [vmem:[%s295 + $0xb1] sm:$0xff]
      %v344 = vld [vmem:[%s295 + $0xc1] sm:$0xff]
      %v345 = vld [vmem:[%s295 + $0xc9] sm:$0xff]
      %v346 = vld [vmem:[%s295 + $0xd9] sm:$0xff]
      %v347 = vld [vmem:[%s295 + $0xe1] sm:$0xff]
      %v348 = vld [vmem:[%s295 + $0xf1] sm:$0xff]
      %v349 = vld [vmem:[%s295 + $0xf9] sm:$0xff]
      %v350 = vld [vmem:[%s295 + $0x109] sm:$0xff]
      %v351 = vld [vmem:[%s295 + $0x111] sm:$0xff]
      %v352 = vld [vmem:[%s295 + $0x121] sm:$0xff]
      %v353 = vld [vmem:[%s295 + $0x129] sm:$0xff]
      %v354 = vld [vmem:[%s295 + $0x139] sm:$0xff]
      %v355 = vld [vmem:[%s295 + $0x141] sm:$0xff]
      %v356 = vld [vmem:[%s295 + $0x151] sm:$0xff]
      %v357 = vld [vmem:[%s295 + $0x159] sm:$0xff]
      %v358 = vld [vmem:[%s295 + $0x169] sm:$0xff]
      %v359 = vld [vmem:[%s295 + $0x171] sm:$0xff]
      %v360 = vld [vmem:[%s295 + $0x2] sm:$0xff]
      %v361 = vld [vmem:[%s295 + $0xa] sm:$0xff]
      %v362 = vld [vmem:[%s295 + $0x1a] sm:$0xff]
      %v363 = vld [vmem:[%s295 + $0x22] sm:$0xff]
      %v364 = vld [vmem:[%s295 + $0x32] sm:$0xff]
      %v365 = vld [vmem:[%s295 + $0x3a] sm:$0xff]
      %v366 = vld [vmem:[%s295 + $0x4a] sm:$0xff]
      %v367 = vld [vmem:[%s295 + $0x52] sm:$0xff]
      %v368 = vld [vmem:[%s295 + $0x62] sm:$0xff]
      %v369 = vld [vmem:[%s295 + $0x6a] sm:$0xff]
      %v370 = vld [vmem:[%s295 + $0x7a] sm:$0xff]
      %v371 = vld [vmem:[%s295 + $0x82] sm:$0xff]
      %v372 = vld [vmem:[%s295 + $0x92] sm:$0xff]
      %v373 = vld [vmem:[%s295 + $0x9a] sm:$0xff]
      %v374 = vld [vmem:[%s295 + $0xaa] sm:$0xff]
      %v375 = vld [vmem:[%s295 + $0xb2] sm:$0xff]
      %v376 = vld [vmem:[%s295 + $0xc2] sm:$0xff]
      %v377 = vld [vmem:[%s295 + $0xca] sm:$0xff]
      %v378 = vld [vmem:[%s295 + $0xda] sm:$0xff]
      %v379 = vld [vmem:[%s295 + $0xe2] sm:$0xff]
      %v380 = vld [vmem:[%s295 + $0xf2] sm:$0xff]
      %v381 = vld [vmem:[%s295 + $0xfa] sm:$0xff]
      %v382 = vld [vmem:[%s295 + $0x10a] sm:$0xff]
      %v383 = vld [vmem:[%s295 + $0x112] sm:$0xff]
      %v384 = vld [vmem:[%s295 + $0x122] sm:$0xff]
      %v385 = vld [vmem:[%s295 + $0x12a] sm:$0xff]
      %v386 = vld [vmem:[%s295 + $0x13a] sm:$0xff]
      %v387 = vld [vmem:[%s295 + $0x142] sm:$0xff]
      %v388 = vld [vmem:[%s295 + $0x152] sm:$0xff]
      %v389 = vld [vmem:[%s295 + $0x15a] sm:$0xff]
      %v390 = vld [vmem:[%s295 + $0x16a] sm:$0xff]
      %v391 = vld [vmem:[%s295 + $0x172] sm:$0xff]
      %s392 = sadd.s32 %s194, 2
      %s393 = smul.u32 %s392, 24
      %s394 = scalar_lea.vmem %s181, %s393
      %v395 = vld [vmem:[%s394] sm:$0xff]
      %v396 = vld [vmem:[%s394 + $0x8] sm:$0xff]
      %v397 = vld [vmem:[%s394 + $0x18] sm:$0xff]
      %v398 = vld [vmem:[%s394 + $0x20] sm:$0xff]
      %v399 = vld [vmem:[%s394 + $0x30] sm:$0xff]
      %v400 = vld [vmem:[%s394 + $0x38] sm:$0xff]
      %v401 = vld [vmem:[%s394 + $0x48] sm:$0xff]
      %v402 = vld [vmem:[%s394 + $0x50] sm:$0xff]
      %v403 = vld [vmem:[%s394 + $0x60] sm:$0xff]
      %v404 = vld [vmem:[%s394 + $0x68] sm:$0xff]
      %v405 = vld [vmem:[%s394 + $0x78] sm:$0xff]
      %v406 = vld [vmem:[%s394 + $0x80] sm:$0xff]
      %v407 = vld [vmem:[%s394 + $0x90] sm:$0xff]
      %v408 = vld [vmem:[%s394 + $0x98] sm:$0xff]
      %v409 = vld [vmem:[%s394 + $0xa8] sm:$0xff]
      %v410 = vld [vmem:[%s394 + $0xb0] sm:$0xff]
      %v411 = vld [vmem:[%s394 + $0xc0] sm:$0xff]
      %v412 = vld [vmem:[%s394 + $0xc8] sm:$0xff]
      %v413 = vld [vmem:[%s394 + $0xd8] sm:$0xff]
      %v414 = vld [vmem:[%s394 + $0xe0] sm:$0xff]
      %v415 = vld [vmem:[%s394 + $0xf0] sm:$0xff]
      %v416 = vld [vmem:[%s394 + $0xf8] sm:$0xff]
      %v417 = vld [vmem:[%s394 + $0x108] sm:$0xff]
      %v418 = vld [vmem:[%s394 + $0x110] sm:$0xff]
      %v419 = vld [vmem:[%s394 + $0x120] sm:$0xff]
      %v420 = vld [vmem:[%s394 + $0x128] sm:$0xff]
      %v421 = vld [vmem:[%s394 + $0x138] sm:$0xff]
      %v422 = vld [vmem:[%s394 + $0x140] sm:$0xff]
      %v423 = vld [vmem:[%s394 + $0x150] sm:$0xff]
      %v424 = vld [vmem:[%s394 + $0x158] sm:$0xff]
      %v425 = vld [vmem:[%s394 + $0x168] sm:$0xff]
      %v426 = vld [vmem:[%s394 + $0x170] sm:$0xff]
      %v427 = vld [vmem:[%s394 + $0x1] sm:$0xff]
      %v428 = vld [vmem:[%s394 + $0x9] sm:$0xff]
      %v429 = vld [vmem:[%s394 + $0x19] sm:$0xff]
      %v430 = vld [vmem:[%s394 + $0x21] sm:$0xff]
      %v431 = vld [vmem:[%s394 + $0x31] sm:$0xff]
      %v432 = vld [vmem:[%s394 + $0x39] sm:$0xff]
      %v433 = vld [vmem:[%s394 + $0x49] sm:$0xff]
      %v434 = vld [vmem:[%s394 + $0x51] sm:$0xff]
      %v435 = vld [vmem:[%s394 + $0x61] sm:$0xff]
      %v436 = vld [vmem:[%s394 + $0x69] sm:$0xff]
      %v437 = vld [vmem:[%s394 + $0x79] sm:$0xff]
      %v438 = vld [vmem:[%s394 + $0x81] sm:$0xff]
      %v439 = vld [vmem:[%s394 + $0x91] sm:$0xff]
      %v440 = vld [vmem:[%s394 + $0x99] sm:$0xff]
      %v441 = vld [vmem:[%s394 + $0xa9] sm:$0xff]
      %v442 = vld [vmem:[%s394 + $0xb1] sm:$0xff]
      %v443 = vld [vmem:[%s394 + $0xc1] sm:$0xff]
      %v444 = vld [vmem:[%s394 + $0xc9] sm:$0xff]
      %v445 = vld [vmem:[%s394 + $0xd9] sm:$0xff]
      %v446 = vld [vmem:[%s394 + $0xe1] sm:$0xff]
      %v447 = vld [vmem:[%s394 + $0xf1] sm:$0xff]
      %v448 = vld [vmem:[%s394 + $0xf9] sm:$0xff]
      %v449 = vld [vmem:[%s394 + $0x109] sm:$0xff]
      %v450 = vld [vmem:[%s394 + $0x111] sm:$0xff]
      %v451 = vld [vmem:[%s394 + $0x121] sm:$0xff]
      %v452 = vld [vmem:[%s394 + $0x129] sm:$0xff]
      %v453 = vld [vmem:[%s394 + $0x139] sm:$0xff]
      %v454 = vld [vmem:[%s394 + $0x141] sm:$0xff]
      %v455 = vld [vmem:[%s394 + $0x151] sm:$0xff]
      %v456 = vld [vmem:[%s394 + $0x159] sm:$0xff]
      %v457 = vld [vmem:[%s394 + $0x169] sm:$0xff]
      %v458 = vld [vmem:[%s394 + $0x171] sm:$0xff]
      %v459 = vld [vmem:[%s394 + $0x2] sm:$0xff]
      %v460 = vld [vmem:[%s394 + $0xa] sm:$0xff]
      %v461 = vld [vmem:[%s394 + $0x1a] sm:$0xff]
      %v462 = vld [vmem:[%s394 + $0x22] sm:$0xff]
      %v463 = vld [vmem:[%s394 + $0x32] sm:$0xff]
      %v464 = vld [vmem:[%s394 + $0x3a] sm:$0xff]
      %v465 = vld [vmem:[%s394 + $0x4a] sm:$0xff]
      %v466 = vld [vmem:[%s394 + $0x52] sm:$0xff]
      %v467 = vld [vmem:[%s394 + $0x62] sm:$0xff]
      %v468 = vld [vmem:[%s394 + $0x6a] sm:$0xff]
      %v469 = vld [vmem:[%s394 + $0x7a] sm:$0xff]
      %v470 = vld [vmem:[%s394 + $0x82] sm:$0xff]
      %v471 = vld [vmem:[%s394 + $0x92] sm:$0xff]
      %v472 = vld [vmem:[%s394 + $0x9a] sm:$0xff]
      %v473 = vld [vmem:[%s394 + $0xaa] sm:$0xff]
      %v474 = vld [vmem:[%s394 + $0xb2] sm:$0xff]
      %v475 = vld [vmem:[%s394 + $0xc2] sm:$0xff]
      %v476 = vld [vmem:[%s394 + $0xca] sm:$0xff]
      %v477 = vld [vmem:[%s394 + $0xda] sm:$0xff]
      %v478 = vld [vmem:[%s394 + $0xe2] sm:$0xff]
      %v479 = vld [vmem:[%s394 + $0xf2] sm:$0xff]
      %v480 = vld [vmem:[%s394 + $0xfa] sm:$0xff]
      %v481 = vld [vmem:[%s394 + $0x10a] sm:$0xff]
      %v482 = vld [vmem:[%s394 + $0x112] sm:$0xff]
      %v483 = vld [vmem:[%s394 + $0x122] sm:$0xff]
      %v484 = vld [vmem:[%s394 + $0x12a] sm:$0xff]
      %v485 = vld [vmem:[%s394 + $0x13a] sm:$0xff]
      %v486 = vld [vmem:[%s394 + $0x142] sm:$0xff]
      %v487 = vld [vmem:[%s394 + $0x152] sm:$0xff]
      %v488 = vld [vmem:[%s394 + $0x15a] sm:$0xff]
      %v489 = vld [vmem:[%s394 + $0x16a] sm:$0xff]
      %v490 = vld [vmem:[%s394 + $0x172] sm:$0xff]
      %523 = vrot.lane.b32.xlu0 %v229, 4
      %v524 = vpop.permute.xlu0 %523
      %525 = vrot.lane.b32.xlu0 %v230, 4
      %v526 = vpop.permute.xlu0 %525
      %527 = vrot.lane.b32.xlu0 %v231, 4
      %v528 = vpop.permute.xlu0 %527
      %529 = vrot.lane.b32.xlu0 %v232, 4
      %v530 = vpop.permute.xlu0 %529
      %531 = vrot.lane.b32.xlu0 %v233, 4
      %v532 = vpop.permute.xlu0 %531
      %533 = vrot.lane.b32.xlu0 %v234, 4
      %v534 = vpop.permute.xlu0 %533
      %535 = vrot.lane.b32.xlu0 %v235, 4
      %v536 = vpop.permute.xlu0 %535
      %537 = vrot.lane.b32.xlu0 %v236, 4
      %v538 = vpop.permute.xlu0 %537
      %539 = vrot.lane.b32.xlu0 %v237, 4
      %v540 = vpop.permute.xlu0 %539
      %541 = vrot.lane.b32.xlu0 %v238, 4
      %v542 = vpop.permute.xlu0 %541
      %543 = vrot.lane.b32.xlu0 %v239, 4
      %v544 = vpop.permute.xlu0 %543
      %545 = vrot.lane.b32.xlu0 %v240, 4
      %v546 = vpop.permute.xlu0 %545
      %547 = vrot.lane.b32.xlu0 %v241, 4
      %v548 = vpop.permute.xlu0 %547
      %549 = vrot.lane.b32.xlu0 %v242, 4
      %v550 = vpop.permute.xlu0 %549
      %551 = vrot.lane.b32.xlu0 %v243, 4
      %v552 = vpop.permute.xlu0 %551
      %553 = vrot.lane.b32.xlu0 %v244, 4
      %v554 = vpop.permute.xlu0 %553
      %555 = vrot.lane.b32.xlu0 %v245, 4
      %v556 = vpop.permute.xlu0 %555
      %557 = vrot.lane.b32.xlu0 %v246, 4
      %v558 = vpop.permute.xlu0 %557
      %559 = vrot.lane.b32.xlu0 %v247, 4
      %v560 = vpop.permute.xlu0 %559
      %561 = vrot.lane.b32.xlu0 %v248, 4
      %v562 = vpop.permute.xlu0 %561
      %563 = vrot.lane.b32.xlu0 %v249, 4
      %v564 = vpop.permute.xlu0 %563
      %565 = vrot.lane.b32.xlu0 %v250, 4
      %v566 = vpop.permute.xlu0 %565
      %567 = vrot.lane.b32.xlu0 %v251, 4
      %v568 = vpop.permute.xlu0 %567
      %569 = vrot.lane.b32.xlu0 %v252, 4
      %v570 = vpop.permute.xlu0 %569
      %571 = vrot.lane.b32.xlu0 %v253, 4
      %v572 = vpop.permute.xlu0 %571
      %573 = vrot.lane.b32.xlu0 %v254, 4
      %v574 = vpop.permute.xlu0 %573
      %575 = vrot.lane.b32.xlu0 %v255, 4
      %v576 = vpop.permute.xlu0 %575
      %577 = vrot.lane.b32.xlu0 %v256, 4
      %v578 = vpop.permute.xlu0 %577
      %579 = vrot.lane.b32.xlu0 %v257, 4
      %v580 = vpop.permute.xlu0 %579
      %581 = vrot.lane.b32.xlu0 %v258, 4
      %v582 = vpop.permute.xlu0 %581
      %583 = vrot.lane.b32.xlu0 %v259, 4
      %v584 = vpop.permute.xlu0 %583
      %585 = vrot.lane.b32.xlu0 %v260, 4
      %v586 = vpop.permute.xlu0 %585
      %651 = vrot.lane.b32.xlu0 %v261, 8
      %v652 = vpop.permute.xlu0 %651
      %653 = vrot.lane.b32.xlu0 %v262, 8
      %v654 = vpop.permute.xlu0 %653
      %655 = vrot.lane.b32.xlu0 %v263, 8
      %v656 = vpop.permute.xlu0 %655
      %657 = vrot.lane.b32.xlu0 %v264, 8
      %v658 = vpop.permute.xlu0 %657
      %659 = vrot.lane.b32.xlu0 %v265, 8
      %v660 = vpop.permute.xlu0 %659
      %661 = vrot.lane.b32.xlu0 %v266, 8
      %v662 = vpop.permute.xlu0 %661
      %663 = vrot.lane.b32.xlu0 %v267, 8
      %v664 = vpop.permute.xlu0 %663
      %665 = vrot.lane.b32.xlu0 %v268, 8
      %v666 = vpop.permute.xlu0 %665
      %667 = vrot.lane.b32.xlu0 %v269, 8
      %v668 = vpop.permute.xlu0 %667
      %669 = vrot.lane.b32.xlu0 %v270, 8
      %v670 = vpop.permute.xlu0 %669
      %671 = vrot.lane.b32.xlu0 %v271, 8
      %v672 = vpop.permute.xlu0 %671
      %673 = vrot.lane.b32.xlu0 %v272, 8
      %v674 = vpop.permute.xlu0 %673
      %675 = vrot.lane.b32.xlu0 %v273, 8
      %v676 = vpop.permute.xlu0 %675
      %677 = vrot.lane.b32.xlu0 %v274, 8
      %v678 = vpop.permute.xlu0 %677
      %679 = vrot.lane.b32.xlu0 %v275, 8
      %v680 = vpop.permute.xlu0 %679
      %681 = vrot.lane.b32.xlu0 %v276, 8
      %v682 = vpop.permute.xlu0 %681
      %683 = vrot.lane.b32.xlu0 %v277, 8
      %v684 = vpop.permute.xlu0 %683
      %685 = vrot.lane.b32.xlu0 %v278, 8
      %v686 = vpop.permute.xlu0 %685
      %687 = vrot.lane.b32.xlu0 %v279, 8
      %v688 = vpop.permute.xlu0 %687
      %689 = vrot.lane.b32.xlu0 %v280, 8
      %v690 = vpop.permute.xlu0 %689
      %691 = vrot.lane.b32.xlu0 %v281, 8
      %v692 = vpop.permute.xlu0 %691
      %693 = vrot.lane.b32.xlu0 %v282, 8
      %v694 = vpop.permute.xlu0 %693
      %695 = vrot.lane.b32.xlu0 %v283, 8
      %v696 = vpop.permute.xlu0 %695
      %697 = vrot.lane.b32.xlu0 %v284, 8
      %v698 = vpop.permute.xlu0 %697
      %699 = vrot.lane.b32.xlu0 %v285, 8
      %v700 = vpop.permute.xlu0 %699
      %701 = vrot.lane.b32.xlu0 %v286, 8
      %v702 = vpop.permute.xlu0 %701
      %703 = vrot.lane.b32.xlu0 %v287, 8
      %v704 = vpop.permute.xlu0 %703
      %705 = vrot.lane.b32.xlu0 %v288, 8
      %v706 = vpop.permute.xlu0 %705
      %707 = vrot.lane.b32.xlu0 %v289, 8
      %v708 = vpop.permute.xlu0 %707
      %709 = vrot.lane.b32.xlu0 %v290, 8
      %v710 = vpop.permute.xlu0 %709
      %711 = vrot.lane.b32.xlu0 %v291, 8
      %v712 = vpop.permute.xlu0 %711
      %713 = vrot.lane.b32.xlu0 %v292, 8
      %v714 = vpop.permute.xlu0 %713
      %779 = vrot.lane.b32.xlu0 %v296, 12
      %v780 = vpop.permute.xlu0 %779
      %781 = vrot.lane.b32.xlu0 %v297, 12
      %v782 = vpop.permute.xlu0 %781
      %783 = vrot.lane.b32.xlu0 %v298, 12
      %v784 = vpop.permute.xlu0 %783
      %785 = vrot.lane.b32.xlu0 %v299, 12
      %v786 = vpop.permute.xlu0 %785
      %787 = vrot.lane.b32.xlu0 %v300, 12
      %v788 = vpop.permute.xlu0 %787
      %789 = vrot.lane.b32.xlu0 %v301, 12
      %v790 = vpop.permute.xlu0 %789
      %791 = vrot.lane.b32.xlu0 %v302, 12
      %v792 = vpop.permute.xlu0 %791
      %793 = vrot.lane.b32.xlu0 %v303, 12
      %v794 = vpop.permute.xlu0 %793
      %795 = vrot.lane.b32.xlu0 %v304, 12
      %v796 = vpop.permute.xlu0 %795
      %797 = vrot.lane.b32.xlu0 %v305, 12
      %v798 = vpop.permute.xlu0 %797
      %799 = vrot.lane.b32.xlu0 %v306, 12
      %v800 = vpop.permute.xlu0 %799
      %801 = vrot.lane.b32.xlu0 %v307, 12
      %v802 = vpop.permute.xlu0 %801
      %803 = vrot.lane.b32.xlu0 %v308, 12
      %v804 = vpop.permute.xlu0 %803
      %805 = vrot.lane.b32.xlu0 %v309, 12
      %v806 = vpop.permute.xlu0 %805
      %807 = vrot.lane.b32.xlu0 %v310, 12
      %v808 = vpop.permute.xlu0 %807
      %809 = vrot.lane.b32.xlu0 %v311, 12
      %v810 = vpop.permute.xlu0 %809
      %811 = vrot.lane.b32.xlu0 %v312, 12
      %v812 = vpop.permute.xlu0 %811
      %813 = vrot.lane.b32.xlu0 %v313, 12
      %v814 = vpop.permute.xlu0 %813
      %815 = vrot.lane.b32.xlu0 %v314, 12
      %v816 = vpop.permute.xlu0 %815
      %817 = vrot.lane.b32.xlu0 %v315, 12
      %v818 = vpop.permute.xlu0 %817
      %819 = vrot.lane.b32.xlu0 %v316, 12
      %v820 = vpop.permute.xlu0 %819
      %821 = vrot.lane.b32.xlu0 %v317, 12
      %v822 = vpop.permute.xlu0 %821
      %823 = vrot.lane.b32.xlu0 %v318, 12
      %v824 = vpop.permute.xlu0 %823
      %825 = vrot.lane.b32.xlu0 %v319, 12
      %v826 = vpop.permute.xlu0 %825
      %827 = vrot.lane.b32.xlu0 %v320, 12
      %v828 = vpop.permute.xlu0 %827
      %829 = vrot.lane.b32.xlu0 %v321, 12
      %v830 = vpop.permute.xlu0 %829
      %831 = vrot.lane.b32.xlu0 %v322, 12
      %v832 = vpop.permute.xlu0 %831
      %833 = vrot.lane.b32.xlu0 %v323, 12
      %v834 = vpop.permute.xlu0 %833
      %835 = vrot.lane.b32.xlu0 %v324, 12
      %v836 = vpop.permute.xlu0 %835
      %837 = vrot.lane.b32.xlu0 %v325, 12
      %v838 = vpop.permute.xlu0 %837
      %839 = vrot.lane.b32.xlu0 %v326, 12
      %v840 = vpop.permute.xlu0 %839
      %841 = vrot.lane.b32.xlu0 %v327, 12
      %v842 = vpop.permute.xlu0 %841
      %907 = vrot.lane.b32.xlu0 %v328, 16
      %v908 = vpop.permute.xlu0 %907
      %909 = vrot.lane.b32.xlu0 %v329, 16
      %v910 = vpop.permute.xlu0 %909
      %911 = vrot.lane.b32.xlu0 %v330, 16
      %v912 = vpop.permute.xlu0 %911
      %913 = vrot.lane.b32.xlu0 %v331, 16
      %v914 = vpop.permute.xlu0 %913
      %915 = vrot.lane.b32.xlu0 %v332, 16
      %v916 = vpop.permute.xlu0 %915
      %917 = vrot.lane.b32.xlu0 %v333, 16
      %v918 = vpop.permute.xlu0 %917
      %919 = vrot.lane.b32.xlu0 %v334, 16
      %v920 = vpop.permute.xlu0 %919
      %921 = vrot.lane.b32.xlu0 %v335, 16
      %v922 = vpop.permute.xlu0 %921
      %923 = vrot.lane.b32.xlu0 %v336, 16
      %v924 = vpop.permute.xlu0 %923
      %925 = vrot.lane.b32.xlu0 %v337, 16
      %v926 = vpop.permute.xlu0 %925
      %927 = vrot.lane.b32.xlu0 %v338, 16
      %v928 = vpop.permute.xlu0 %927
      %929 = vrot.lane.b32.xlu0 %v339, 16
      %v930 = vpop.permute.xlu0 %929
      %931 = vrot.lane.b32.xlu0 %v340, 16
      %v932 = vpop.permute.xlu0 %931
      %933 = vrot.lane.b32.xlu0 %v341, 16
      %v934 = vpop.permute.xlu0 %933
      %935 = vrot.lane.b32.xlu0 %v342, 16
      %v936 = vpop.permute.xlu0 %935
      %937 = vrot.lane.b32.xlu0 %v343, 16
      %v938 = vpop.permute.xlu0 %937
      %939 = vrot.lane.b32.xlu0 %v344, 16
      %v940 = vpop.permute.xlu0 %939
      %941 = vrot.lane.b32.xlu0 %v345, 16
      %v942 = vpop.permute.xlu0 %941
      %943 = vrot.lane.b32.xlu0 %v346, 16
      %v944 = vpop.permute.xlu0 %943
      %945 = vrot.lane.b32.xlu0 %v347, 16
      %v946 = vpop.permute.xlu0 %945
      %947 = vrot.lane.b32.xlu0 %v348, 16
      %v948 = vpop.permute.xlu0 %947
      %949 = vrot.lane.b32.xlu0 %v349, 16
      %v950 = vpop.permute.xlu0 %949
      %951 = vrot.lane.b32.xlu0 %v350, 16
      %v952 = vpop.permute.xlu0 %951
      %953 = vrot.lane.b32.xlu0 %v351, 16
      %v954 = vpop.permute.xlu0 %953
      %955 = vrot.lane.b32.xlu0 %v352, 16
      %v956 = vpop.permute.xlu0 %955
      %957 = vrot.lane.b32.xlu0 %v353, 16
      %v958 = vpop.permute.xlu0 %957
      %959 = vrot.lane.b32.xlu0 %v354, 16
      %v960 = vpop.permute.xlu0 %959
      %961 = vrot.lane.b32.xlu0 %v355, 16
      %v962 = vpop.permute.xlu0 %961
      %963 = vrot.lane.b32.xlu0 %v356, 16
      %v964 = vpop.permute.xlu0 %963
      %965 = vrot.lane.b32.xlu0 %v357, 16
      %v966 = vpop.permute.xlu0 %965
      %967 = vrot.lane.b32.xlu0 %v358, 16
      %v968 = vpop.permute.xlu0 %967
      %969 = vrot.lane.b32.xlu0 %v359, 16
      %v970 = vpop.permute.xlu0 %969
      %1035 = vrot.lane.b32.xlu0 %v360, 20
      %v1036 = vpop.permute.xlu0 %1035
      %1037 = vrot.lane.b32.xlu0 %v361, 20
      %v1038 = vpop.permute.xlu0 %1037
      %1039 = vrot.lane.b32.xlu0 %v362, 20
      %v1040 = vpop.permute.xlu0 %1039
      %1041 = vrot.lane.b32.xlu0 %v363, 20
      %v1042 = vpop.permute.xlu0 %1041
      %1043 = vrot.lane.b32.xlu0 %v364, 20
      %v1044 = vpop.permute.xlu0 %1043
      %1045 = vrot.lane.b32.xlu0 %v365, 20
      %v1046 = vpop.permute.xlu0 %1045
      %1047 = vrot.lane.b32.xlu0 %v366, 20
      %v1048 = vpop.permute.xlu0 %1047
      %1049 = vrot.lane.b32.xlu0 %v367, 20
      %v1050 = vpop.permute.xlu0 %1049
      %1051 = vrot.lane.b32.xlu0 %v368, 20
      %v1052 = vpop.permute.xlu0 %1051
      %1053 = vrot.lane.b32.xlu0 %v369, 20
      %v1054 = vpop.permute.xlu0 %1053
      %1055 = vrot.lane.b32.xlu0 %v370, 20
      %v1056 = vpop.permute.xlu0 %1055
      %1057 = vrot.lane.b32.xlu0 %v371, 20
      %v1058 = vpop.permute.xlu0 %1057
      %1059 = vrot.lane.b32.xlu0 %v372, 20
      %v1060 = vpop.permute.xlu0 %1059
      %1061 = vrot.lane.b32.xlu0 %v373, 20
      %v1062 = vpop.permute.xlu0 %1061
      %1063 = vrot.lane.b32.xlu0 %v374, 20
      %v1064 = vpop.permute.xlu0 %1063
      %1065 = vrot.lane.b32.xlu0 %v375, 20
      %v1066 = vpop.permute.xlu0 %1065
      %1067 = vrot.lane.b32.xlu0 %v376, 20
      %v1068 = vpop.permute.xlu0 %1067
      %1069 = vrot.lane.b32.xlu0 %v377, 20
      %v1070 = vpop.permute.xlu0 %1069
      %1071 = vrot.lane.b32.xlu0 %v378, 20
      %v1072 = vpop.permute.xlu0 %1071
      %1073 = vrot.lane.b32.xlu0 %v379, 20
      %v1074 = vpop.permute.xlu0 %1073
      %1075 = vrot.lane.b32.xlu0 %v380, 20
      %v1076 = vpop.permute.xlu0 %1075
      %1077 = vrot.lane.b32.xlu0 %v381, 20
      %v1078 = vpop.permute.xlu0 %1077
      %1079 = vrot.lane.b32.xlu0 %v382, 20
      %v1080 = vpop.permute.xlu0 %1079
      %1081 = vrot.lane.b32.xlu0 %v383, 20
      %v1082 = vpop.permute.xlu0 %1081
      %1083 = vrot.lane.b32.xlu0 %v384, 20
      %v1084 = vpop.permute.xlu0 %1083
      %1085 = vrot.lane.b32.xlu0 %v385, 20
      %v1086 = vpop.permute.xlu0 %1085
      %1087 = vrot.lane.b32.xlu0 %v386, 20
      %v1088 = vpop.permute.xlu0 %1087
      %1089 = vrot.lane.b32.xlu0 %v387, 20
      %v1090 = vpop.permute.xlu0 %1089
      %1091 = vrot.lane.b32.xlu0 %v388, 20
      %v1092 = vpop.permute.xlu0 %1091
      %1093 = vrot.lane.b32.xlu0 %v389, 20
      %v1094 = vpop.permute.xlu0 %1093
      %1095 = vrot.lane.b32.xlu0 %v390, 20
      %v1096 = vpop.permute.xlu0 %1095
      %1097 = vrot.lane.b32.xlu0 %v391, 20
      %v1098 = vpop.permute.xlu0 %1097
      %1163 = vrot.lane.b32.xlu0 %v395, 24
      %v1164 = vpop.permute.xlu0 %1163
      %1165 = vrot.lane.b32.xlu0 %v396, 24
      %v1166 = vpop.permute.xlu0 %1165
      %1167 = vrot.lane.b32.xlu0 %v397, 24
      %v1168 = vpop.permute.xlu0 %1167
      %1169 = vrot.lane.b32.xlu0 %v398, 24
      %v1170 = vpop.permute.xlu0 %1169
      %1171 = vrot.lane.b32.xlu0 %v399, 24
      %v1172 = vpop.permute.xlu0 %1171
      %1173 = vrot.lane.b32.xlu0 %v400, 24
      %v1174 = vpop.permute.xlu0 %1173
      %1175 = vrot.lane.b32.xlu0 %v401, 24
      %v1176 = vpop.permute.xlu0 %1175
      %1177 = vrot.lane.b32.xlu0 %v402, 24
      %v1178 = vpop.permute.xlu0 %1177
      %1179 = vrot.lane.b32.xlu0 %v403, 24
      %v1180 = vpop.permute.xlu0 %1179
      %1181 = vrot.lane.b32.xlu0 %v404, 24
      %v1182 = vpop.permute.xlu0 %1181
      %1183 = vrot.lane.b32.xlu0 %v405, 24
      %v1184 = vpop.permute.xlu0 %1183
      %1185 = vrot.lane.b32.xlu0 %v406, 24
      %v1186 = vpop.permute.xlu0 %1185
      %1187 = vrot.lane.b32.xlu0 %v407, 24
      %v1188 = vpop.permute.xlu0 %1187
      %1189 = vrot.lane.b32.xlu0 %v408, 24
      %v1190 = vpop.permute.xlu0 %1189
      %1191 = vrot.lane.b32.xlu0 %v409, 24
      %v1192 = vpop.permute.xlu0 %1191
      %1193 = vrot.lane.b32.xlu0 %v410, 24
      %v1194 = vpop.permute.xlu0 %1193
      %1195 = vrot.lane.b32.xlu0 %v411, 24
      %v1196 = vpop.permute.xlu0 %1195
      %1197 = vrot.lane.b32.xlu0 %v412, 24
      %v1198 = vpop.permute.xlu0 %1197
      %1199 = vrot.lane.b32.xlu0 %v413, 24
      %v1200 = vpop.permute.xlu0 %1199
      %1201 = vrot.lane.b32.xlu0 %v414, 24
      %v1202 = vpop.permute.xlu0 %1201
      %1203 = vrot.lane.b32.xlu0 %v415, 24
      %v1204 = vpop.permute.xlu0 %1203
      %1205 = vrot.lane.b32.xlu0 %v416, 24
      %v1206 = vpop.permute.xlu0 %1205
      %1207 = vrot.lane.b32.xlu0 %v417, 24
      %v1208 = vpop.permute.xlu0 %1207
      %1209 = vrot.lane.b32.xlu0 %v418, 24
      %v1210 = vpop.permute.xlu0 %1209
      %1211 = vrot.lane.b32.xlu0 %v419, 24
      %v1212 = vpop.permute.xlu0 %1211
      %1213 = vrot.lane.b32.xlu0 %v420, 24
      %v1214 = vpop.permute.xlu0 %1213
      %1215 = vrot.lane.b32.xlu0 %v421, 24
      %v1216 = vpop.permute.xlu0 %1215
      %1217 = vrot.lane.b32.xlu0 %v422, 24
      %v1218 = vpop.permute.xlu0 %1217
      %1219 = vrot.lane.b32.xlu0 %v423, 24
      %v1220 = vpop.permute.xlu0 %1219
      %1221 = vrot.lane.b32.xlu0 %v424, 24
      %v1222 = vpop.permute.xlu0 %1221
      %1223 = vrot.lane.b32.xlu0 %v425, 24
      %v1224 = vpop.permute.xlu0 %1223
      %1225 = vrot.lane.b32.xlu0 %v426, 24
      %v1226 = vpop.permute.xlu0 %1225
      %1291 = vrot.lane.b32.xlu0 %v427, 28
      %v1292 = vpop.permute.xlu0 %1291
      %1293 = vrot.lane.b32.xlu0 %v428, 28
      %v1294 = vpop.permute.xlu0 %1293
      %1295 = vrot.lane.b32.xlu0 %v429, 28
      %v1296 = vpop.permute.xlu0 %1295
      %1297 = vrot.lane.b32.xlu0 %v430, 28
      %v1298 = vpop.permute.xlu0 %1297
      %1299 = vrot.lane.b32.xlu0 %v431, 28
      %v1300 = vpop.permute.xlu0 %1299
      %1301 = vrot.lane.b32.xlu0 %v432, 28
      %v1302 = vpop.permute.xlu0 %1301
      %1303 = vrot.lane.b32.xlu0 %v433, 28
      %v1304 = vpop.permute.xlu0 %1303
      %1305 = vrot.lane.b32.xlu0 %v434, 28
      %v1306 = vpop.permute.xlu0 %1305
      %1307 = vrot.lane.b32.xlu0 %v435, 28
      %v1308 = vpop.permute.xlu0 %1307
      %1309 = vrot.lane.b32.xlu0 %v436, 28
      %v1310 = vpop.permute.xlu0 %1309
      %1311 = vrot.lane.b32.xlu0 %v437, 28
      %v1312 = vpop.permute.xlu0 %1311
      %1313 = vrot.lane.b32.xlu0 %v438, 28
      %v1314 = vpop.permute.xlu0 %1313
      %1315 = vrot.lane.b32.xlu0 %v439, 28
      %v1316 = vpop.permute.xlu0 %1315
      %1317 = vrot.lane.b32.xlu0 %v440, 28
      %v1318 = vpop.permute.xlu0 %1317
      %1319 = vrot.lane.b32.xlu0 %v441, 28
      %v1320 = vpop.permute.xlu0 %1319
      %1321 = vrot.lane.b32.xlu0 %v442, 28
      %v1322 = vpop.permute.xlu0 %1321
      %1323 = vrot.lane.b32.xlu0 %v443, 28
      %v1324 = vpop.permute.xlu0 %1323
      %1325 = vrot.lane.b32.xlu0 %v444, 28
      %v1326 = vpop.permute.xlu0 %1325
      %1327 = vrot.lane.b32.xlu0 %v445, 28
      %v1328 = vpop.permute.xlu0 %1327
      %1329 = vrot.lane.b32.xlu0 %v446, 28
      %v1330 = vpop.permute.xlu0 %1329
      %1331 = vrot.lane.b32.xlu0 %v447, 28
      %v1332 = vpop.permute.xlu0 %1331
      %1333 = vrot.lane.b32.xlu0 %v448, 28
      %v1334 = vpop.permute.xlu0 %1333
      %1335 = vrot.lane.b32.xlu0 %v449, 28
      %v1336 = vpop.permute.xlu0 %1335
      %1337 = vrot.lane.b32.xlu0 %v450, 28
      %v1338 = vpop.permute.xlu0 %1337
      %1339 = vrot.lane.b32.xlu0 %v451, 28
      %v1340 = vpop.permute.xlu0 %1339
      %1341 = vrot.lane.b32.xlu0 %v452, 28
      %v1342 = vpop.permute.xlu0 %1341
      %1343 = vrot.lane.b32.xlu0 %v453, 28
      %v1344 = vpop.permute.xlu0 %1343
      %1345 = vrot.lane.b32.xlu0 %v454, 28
      %v1346 = vpop.permute.xlu0 %1345
      %1347 = vrot.lane.b32.xlu0 %v455, 28
      %v1348 = vpop.permute.xlu0 %1347
      %1349 = vrot.lane.b32.xlu0 %v456, 28
      %v1350 = vpop.permute.xlu0 %1349
      %1351 = vrot.lane.b32.xlu0 %v457, 28
      %v1352 = vpop.permute.xlu0 %1351
      %1353 = vrot.lane.b32.xlu0 %v458, 28
      %v1354 = vpop.permute.xlu0 %1353
      %1419 = vrot.lane.b32.xlu0 %v459, 32
      %v1420 = vpop.permute.xlu0 %1419
      %1421 = vrot.lane.b32.xlu0 %v460, 32
      %v1422 = vpop.permute.xlu0 %1421
      %1423 = vrot.lane.b32.xlu0 %v461, 32
      %v1424 = vpop.permute.xlu0 %1423
      %1425 = vrot.lane.b32.xlu0 %v462, 32
      %v1426 = vpop.permute.xlu0 %1425
      %1427 = vrot.lane.b32.xlu0 %v463, 32
      %v1428 = vpop.permute.xlu0 %1427
      %1429 = vrot.lane.b32.xlu0 %v464, 32
      %v1430 = vpop.permute.xlu0 %1429
      %1431 = vrot.lane.b32.xlu0 %v465, 32
      %v1432 = vpop.permute.xlu0 %1431
      %1433 = vrot.lane.b32.xlu0 %v466, 32
      %v1434 = vpop.permute.xlu0 %1433
      %1435 = vrot.lane.b32.xlu0 %v467, 32
      %v1436 = vpop.permute.xlu0 %1435
      %1437 = vrot.lane.b32.xlu0 %v468, 32
      %v1438 = vpop.permute.xlu0 %1437
      %1439 = vrot.lane.b32.xlu0 %v469, 32
      %v1440 = vpop.permute.xlu0 %1439
      %1441 = vrot.lane.b32.xlu0 %v470, 32
      %v1442 = vpop.permute.xlu0 %1441
      %1443 = vrot.lane.b32.xlu0 %v471, 32
      %v1444 = vpop.permute.xlu0 %1443
      %1445 = vrot.lane.b32.xlu0 %v472, 32
      %v1446 = vpop.permute.xlu0 %1445
      %1447 = vrot.lane.b32.xlu0 %v473, 32
      %v1448 = vpop.permute.xlu0 %1447
      %1449 = vrot.lane.b32.xlu0 %v474, 32
      %v1450 = vpop.permute.xlu0 %1449
      %1451 = vrot.lane.b32.xlu0 %v475, 32
      %v1452 = vpop.permute.xlu0 %1451
      %1453 = vrot.lane.b32.xlu0 %v476, 32
      %v1454 = vpop.permute.xlu0 %1453
      %1455 = vrot.lane.b32.xlu0 %v477, 32
      %v1456 = vpop.permute.xlu0 %1455
      %1457 = vrot.lane.b32.xlu0 %v478, 32
      %v1458 = vpop.permute.xlu0 %1457
      %1459 = vrot.lane.b32.xlu0 %v479, 32
      %v1460 = vpop.permute.xlu0 %1459
      %1461 = vrot.lane.b32.xlu0 %v480, 32
      %v1462 = vpop.permute.xlu0 %1461
      %1463 = vrot.lane.b32.xlu0 %v481, 32
      %v1464 = vpop.permute.xlu0 %1463
      %1465 = vrot.lane.b32.xlu0 %v482, 32
      %v1466 = vpop.permute.xlu0 %1465
      %1467 = vrot.lane.b32.xlu0 %v483, 32
      %v1468 = vpop.permute.xlu0 %1467
      %1469 = vrot.lane.b32.xlu0 %v484, 32
      %v1470 = vpop.permute.xlu0 %1469
      %1471 = vrot.lane.b32.xlu0 %v485, 32
      %v1472 = vpop.permute.xlu0 %1471
      %1473 = vrot.lane.b32.xlu0 %v486, 32
      %v1474 = vpop.permute.xlu0 %1473
      %1475 = vrot.lane.b32.xlu0 %v487, 32
      %v1476 = vpop.permute.xlu0 %1475
      %1477 = vrot.lane.b32.xlu0 %v488, 32
      %v1478 = vpop.permute.xlu0 %1477
      %1479 = vrot.lane.b32.xlu0 %v489, 32
      %v1480 = vpop.permute.xlu0 %1479
      %1481 = vrot.lane.b32.xlu0 %v490, 32
      %v1482 = vpop.permute.xlu0 %1481
      %vm1515 = vcmask 31744
      %v1516 = vsel %vm1515, %v197, %v524
      %v1517 = vsel %vm1515, %v198, %v526
      %v1518 = vsel %vm1515, %v199, %v528
      %v1519 = vsel %vm1515, %v200, %v530
      %v1520 = vsel %vm1515, %v201, %v532
      %v1521 = vsel %vm1515, %v202, %v534
      %v1522 = vsel %vm1515, %v203, %v536
      %v1523 = vsel %vm1515, %v204, %v538
      %v1524 = vsel %vm1515, %v205, %v540
      %v1525 = vsel %vm1515, %v206, %v542
      %v1526 = vsel %vm1515, %v207, %v544
      %v1527 = vsel %vm1515, %v208, %v546
      %v1528 = vsel %vm1515, %v209, %v548
      %v1529 = vsel %vm1515, %v210, %v550
      %v1530 = vsel %vm1515, %v211, %v552
      %v1531 = vsel %vm1515, %v212, %v554
      %v1532 = vsel %vm1515, %v213, %v556
      %v1533 = vsel %vm1515, %v214, %v558
      %v1534 = vsel %vm1515, %v215, %v560
      %v1535 = vsel %vm1515, %v216, %v562
      %v1536 = vsel %vm1515, %v217, %v564
      %v1537 = vsel %vm1515, %v218, %v566
      %v1538 = vsel %vm1515, %v219, %v568
      %v1539 = vsel %vm1515, %v220, %v570
      %v1540 = vsel %vm1515, %v221, %v572
      %v1541 = vsel %vm1515, %v222, %v574
      %v1542 = vsel %vm1515, %v223, %v576
      %v1543 = vsel %vm1515, %v224, %v578
      %v1544 = vsel %vm1515, %v225, %v580
      %v1545 = vsel %vm1515, %v226, %v582
      %v1546 = vsel %vm1515, %v227, %v584
      %v1547 = vsel %vm1515, %v228, %v586
      %vm1548 = vcmask 64512
      %v1549 = vsel %vm1548, %v1516, %v652
      %v1550 = vsel %vm1548, %v1517, %v654
      %v1551 = vsel %vm1548, %v1518, %v656
      %v1552 = vsel %vm1548, %v1519, %v658
      %v1553 = vsel %vm1548, %v1520, %v660
      %v1554 = vsel %vm1548, %v1521, %v662
      %v1555 = vsel %vm1548, %v1522, %v664
      %v1556 = vsel %vm1548, %v1523, %v666
      %v1557 = vsel %vm1548, %v1524, %v668
      %v1558 = vsel %vm1548, %v1525, %v670
      %v1559 = vsel %vm1548, %v1526, %v672
      %v1560 = vsel %vm1548, %v1527, %v674
      %v1561 = vsel %vm1548, %v1528, %v676
      %v1562 = vsel %vm1548, %v1529, %v678
      %v1563 = vsel %vm1548, %v1530, %v680
      %v1564 = vsel %vm1548, %v1531, %v682
      %v1565 = vsel %vm1548, %v1532, %v684
      %v1566 = vsel %vm1548, %v1533, %v686
      %v1567 = vsel %vm1548, %v1534, %v688
      %v1568 = vsel %vm1548, %v1535, %v690
      %v1569 = vsel %vm1548, %v1536, %v692
      %v1570 = vsel %vm1548, %v1537, %v694
      %v1571 = vsel %vm1548, %v1538, %v696
      %v1572 = vsel %vm1548, %v1539, %v698
      %v1573 = vsel %vm1548, %v1540, %v700
      %v1574 = vsel %vm1548, %v1541, %v702
      %v1575 = vsel %vm1548, %v1542, %v704
      %v1576 = vsel %vm1548, %v1543, %v706
      %v1577 = vsel %vm1548, %v1544, %v708
      %v1578 = vsel %vm1548, %v1545, %v710
      %v1579 = vsel %vm1548, %v1546, %v712
      %v1580 = vsel %vm1548, %v1547, %v714
      %vm1581 = vcmask 97280
      %v1582 = vsel %vm1581, %v1549, %v780
      %v1583 = vsel %vm1581, %v1550, %v782
      %v1584 = vsel %vm1581, %v1551, %v784
      %v1585 = vsel %vm1581, %v1552, %v786
      %v1586 = vsel %vm1581, %v1553, %v788
      %v1587 = vsel %vm1581, %v1554, %v790
      %v1588 = vsel %vm1581, %v1555, %v792
      %v1589 = vsel %vm1581, %v1556, %v794
      %v1590 = vsel %vm1581, %v1557, %v796
      %v1591 = vsel %vm1581, %v1558, %v798
      %v1592 = vsel %vm1581, %v1559, %v800
      %v1593 = vsel %vm1581, %v1560, %v802
      %v1594 = vsel %vm1581, %v1561, %v804
      %v1595 = vsel %vm1581, %v1562, %v806
      %v1596 = vsel %vm1581, %v1563, %v808
      %v1597 = vsel %vm1581, %v1564, %v810
      %v1598 = vsel %vm1581, %v1565, %v812
      %v1599 = vsel %vm1581, %v1566, %v814
      %v1600 = vsel %vm1581, %v1567, %v816
      %v1601 = vsel %vm1581, %v1568, %v818
      %v1602 = vsel %vm1581, %v1569, %v820
      %v1603 = vsel %vm1581, %v1570, %v822
      %v1604 = vsel %vm1581, %v1571, %v824
      %v1605 = vsel %vm1581, %v1572, %v826
      %v1606 = vsel %vm1581, %v1573, %v828
      %v1607 = vsel %vm1581, %v1574, %v830
      %v1608 = vsel %vm1581, %v1575, %v832
      %v1609 = vsel %vm1581, %v1576, %v834
      %v1610 = vsel %vm1581, %v1577, %v836
      %v1611 = vsel %vm1581, %v1578, %v838
      %v1612 = vsel %vm1581, %v1579, %v840
      %v1613 = vsel %vm1581, %v1580, %v842
      %vm1614 = vcmask 130048
      %v1615 = vsel %vm1614, %v1582, %v908
      %v1616 = vsel %vm1614, %v1583, %v910
      %v1617 = vsel %vm1614, %v1584, %v912
      %v1618 = vsel %vm1614, %v1585, %v914
      %v1619 = vsel %vm1614, %v1586, %v916
      %v1620 = vsel %vm1614, %v1587, %v918
      %v1621 = vsel %vm1614, %v1588, %v920
      %v1622 = vsel %vm1614, %v1589, %v922
      %v1623 = vsel %vm1614, %v1590, %v924
      %v1624 = vsel %vm1614, %v1591, %v926
      %v1625 = vsel %vm1614, %v1592, %v928
      %v1626 = vsel %vm1614, %v1593, %v930
      %v1627 = vsel %vm1614, %v1594, %v932
      %v1628 = vsel %vm1614, %v1595, %v934
      %v1629 = vsel %vm1614, %v1596, %v936
      %v1630 = vsel %vm1614, %v1597, %v938
      %v1631 = vsel %vm1614, %v1598, %v940
      %v1632 = vsel %vm1614, %v1599, %v942
      %v1633 = vsel %vm1614, %v1600, %v944
      %v1634 = vsel %vm1614, %v1601, %v946
      %v1635 = vsel %vm1614, %v1602, %v948
      %v1636 = vsel %vm1614, %v1603, %v950
      %v1637 = vsel %vm1614, %v1604, %v952
      %v1638 = vsel %vm1614, %v1605, %v954
      %v1639 = vsel %vm1614, %v1606, %v956
      %v1640 = vsel %vm1614, %v1607, %v958
      %v1641 = vsel %vm1614, %v1608, %v960
      %v1642 = vsel %vm1614, %v1609, %v962
      %v1643 = vsel %vm1614, %v1610, %v964
      %v1644 = vsel %vm1614, %v1611, %v966
      %v1645 = vsel %vm1614, %v1612, %v968
      %v1646 = vsel %vm1614, %v1613, %v970
      %vm1647 = vcmask 162816
      %v1648 = vsel %vm1647, %v1615, %v1036
      %v1649 = vsel %vm1647, %v1616, %v1038
      %v1650 = vsel %vm1647, %v1617, %v1040
      %v1651 = vsel %vm1647, %v1618, %v1042
      %v1652 = vsel %vm1647, %v1619, %v1044
      %v1653 = vsel %vm1647, %v1620, %v1046
      %v1654 = vsel %vm1647, %v1621, %v1048
      %v1655 = vsel %vm1647, %v1622, %v1050
      %v1656 = vsel %vm1647, %v1623, %v1052
      %v1657 = vsel %vm1647, %v1624, %v1054
      %v1658 = vsel %vm1647, %v1625, %v1056
      %v1659 = vsel %vm1647, %v1626, %v1058
      %v1660 = vsel %vm1647, %v1627, %v1060
      %v1661 = vsel %vm1647, %v1628, %v1062
      %v1662 = vsel %vm1647, %v1629, %v1064
      %v1663 = vsel %vm1647, %v1630, %v1066
      %v1664 = vsel %vm1647, %v1631, %v1068
      %v1665 = vsel %vm1647, %v1632, %v1070
      %v1666 = vsel %vm1647, %v1633, %v1072
      %v1667 = vsel %vm1647, %v1634, %v1074
      %v1668 = vsel %vm1647, %v1635, %v1076
      %v1669 = vsel %vm1647, %v1636, %v1078
      %v1670 = vsel %vm1647, %v1637, %v1080
      %v1671 = vsel %vm1647, %v1638, %v1082
      %v1672 = vsel %vm1647, %v1639, %v1084
      %v1673 = vsel %vm1647, %v1640, %v1086
      %v1674 = vsel %vm1647, %v1641, %v1088
      %v1675 = vsel %vm1647, %v1642, %v1090
      %v1676 = vsel %vm1647, %v1643, %v1092
      %v1677 = vsel %vm1647, %v1644, %v1094
      %v1678 = vsel %vm1647, %v1645, %v1096
      %v1679 = vsel %vm1647, %v1646, %v1098
      %vm1680 = vcmask 195584
      %v1681 = vsel %vm1680, %v1648, %v1164
      %v1682 = vsel %vm1680, %v1649, %v1166
      %v1683 = vsel %vm1680, %v1650, %v1168
      %v1684 = vsel %vm1680, %v1651, %v1170
      %v1685 = vsel %vm1680, %v1652, %v1172
      %v1686 = vsel %vm1680, %v1653, %v1174
      %v1687 = vsel %vm1680, %v1654, %v1176
      %v1688 = vsel %vm1680, %v1655, %v1178
      %v1689 = vsel %vm1680, %v1656, %v1180
      %v1690 = vsel %vm1680, %v1657, %v1182
      %v1691 = vsel %vm1680, %v1658, %v1184
      %v1692 = vsel %vm1680, %v1659, %v1186
      %v1693 = vsel %vm1680, %v1660, %v1188
      %v1694 = vsel %vm1680, %v1661, %v1190
      %v1695 = vsel %vm1680, %v1662, %v1192
      %v1696 = vsel %vm1680, %v1663, %v1194
      %v1697 = vsel %vm1680, %v1664, %v1196
      %v1698 = vsel %vm1680, %v1665, %v1198
      %v1699 = vsel %vm1680, %v1666, %v1200
      %v1700 = vsel %vm1680, %v1667, %v1202
      %v1701 = vsel %vm1680, %v1668, %v1204
      %v1702 = vsel %vm1680, %v1669, %v1206
      %v1703 = vsel %vm1680, %v1670, %v1208
      %v1704 = vsel %vm1680, %v1671, %v1210
      %v1705 = vsel %vm1680, %v1672, %v1212
      %v1706 = vsel %vm1680, %v1673, %v1214
      %v1707 = vsel %vm1680, %v1674, %v1216
      %v1708 = vsel %vm1680, %v1675, %v1218
      %v1709 = vsel %vm1680, %v1676, %v1220
      %v1710 = vsel %vm1680, %v1677, %v1222
      %v1711 = vsel %vm1680, %v1678, %v1224
      %v1712 = vsel %vm1680, %v1679, %v1226
      %vm1713 = vcmask 228352
      %v1714 = vsel %vm1713, %v1681, %v1292
      %v1715 = vsel %vm1713, %v1682, %v1294
      %v1716 = vsel %vm1713, %v1683, %v1296
      %v1717 = vsel %vm1713, %v1684, %v1298
      %v1718 = vsel %vm1713, %v1685, %v1300
      %v1719 = vsel %vm1713, %v1686, %v1302
      %v1720 = vsel %vm1713, %v1687, %v1304
      %v1721 = vsel %vm1713, %v1688, %v1306
      %v1722 = vsel %vm1713, %v1689, %v1308
      %v1723 = vsel %vm1713, %v1690, %v1310
      %v1724 = vsel %vm1713, %v1691, %v1312
      %v1725 = vsel %vm1713, %v1692, %v1314
      %v1726 = vsel %vm1713, %v1693, %v1316
      %v1727 = vsel %vm1713, %v1694, %v1318
      %v1728 = vsel %vm1713, %v1695, %v1320
      %v1729 = vsel %vm1713, %v1696, %v1322
      %v1730 = vsel %vm1713, %v1697, %v1324
      %v1731 = vsel %vm1713, %v1698, %v1326
      %v1732 = vsel %vm1713, %v1699, %v1328
      %v1733 = vsel %vm1713, %v1700, %v1330
      %v1734 = vsel %vm1713, %v1701, %v1332
      %v1735 = vsel %vm1713, %v1702, %v1334
      %v1736 = vsel %vm1713, %v1703, %v1336
      %v1737 = vsel %vm1713, %v1704, %v1338
      %v1738 = vsel %vm1713, %v1705, %v1340
      %v1739 = vsel %vm1713, %v1706, %v1342
      %v1740 = vsel %vm1713, %v1707, %v1344
      %v1741 = vsel %vm1713, %v1708, %v1346
      %v1742 = vsel %vm1713, %v1709, %v1348
      %v1743 = vsel %vm1713, %v1710, %v1350
      %v1744 = vsel %vm1713, %v1711, %v1352
      %v1745 = vsel %vm1713, %v1712, %v1354
      %vm1746 = vcmask 261120
      %v1747 = vsel %vm1746, %v1714, %v1420
      %v1748 = vsel %vm1746, %v1715, %v1422
      %v1749 = vsel %vm1746, %v1716, %v1424
      %v1750 = vsel %vm1746, %v1717, %v1426
      %v1751 = vsel %vm1746, %v1718, %v1428
      %v1752 = vsel %vm1746, %v1719, %v1430
      %v1753 = vsel %vm1746, %v1720, %v1432
      %v1754 = vsel %vm1746, %v1721, %v1434
      %v1755 = vsel %vm1746, %v1722, %v1436
      %v1756 = vsel %vm1746, %v1723, %v1438
      %v1757 = vsel %vm1746, %v1724, %v1440
      %v1758 = vsel %vm1746, %v1725, %v1442
      %v1759 = vsel %vm1746, %v1726, %v1444
      %v1760 = vsel %vm1746, %v1727, %v1446
      %v1761 = vsel %vm1746, %v1728, %v1448
      %v1762 = vsel %vm1746, %v1729, %v1450
      %v1763 = vsel %vm1746, %v1730, %v1452
      %v1764 = vsel %vm1746, %v1731, %v1454
      %v1765 = vsel %vm1746, %v1732, %v1456
      %v1766 = vsel %vm1746, %v1733, %v1458
      %v1767 = vsel %vm1746, %v1734, %v1460
      %v1768 = vsel %vm1746, %v1735, %v1462
      %v1769 = vsel %vm1746, %v1736, %v1464
      %v1770 = vsel %vm1746, %v1737, %v1466
      %v1771 = vsel %vm1746, %v1738, %v1468
      %v1772 = vsel %vm1746, %v1739, %v1470
      %v1773 = vsel %vm1746, %v1740, %v1472
      %v1774 = vsel %vm1746, %v1741, %v1474
      %v1775 = vsel %vm1746, %v1742, %v1476
      %v1776 = vsel %vm1746, %v1743, %v1478
      %v1777 = vsel %vm1746, %v1744, %v1480
      %v1778 = vsel %vm1746, %v1745, %v1482
      %v1779 = vld [vmem:[%s1] sm:$0xff]
      %v1780 = vld [vmem:[%s1 + $0x8] sm:$0xff]
      %v1781 = vld [vmem:[%s1 + $0x10] sm:$0xff]
      %v1782 = vld [vmem:[%s1 + $0x18] sm:$0xff]
      %v1783 = vld [vmem:[%s1 + $0x20] sm:$0xf]
      %vm1784 = vcmask 293888
      %v1786 = vsel %vm1784, %v1747, 0
      %v1789 = vsel %vm1784, %v1748, 0
      %v1792 = vsel %vm1784, %v1749, 0
      %v1795 = vsel %vm1784, %v1750, 0
      %v1798 = vsel %vm1784, %v1751, 0
      %v1801 = vsel %vm1784, %v1752, 0
      %v1804 = vsel %vm1784, %v1753, 0
      %v1807 = vsel %vm1784, %v1754, 0
      %v1810 = vsel %vm1784, %v1755, 0
      %v1813 = vsel %vm1784, %v1756, 0
      %v1816 = vsel %vm1784, %v1757, 0
      %v1819 = vsel %vm1784, %v1758, 0
      %v1822 = vsel %vm1784, %v1759, 0
      %v1825 = vsel %vm1784, %v1760, 0
      %v1828 = vsel %vm1784, %v1761, 0
      %v1831 = vsel %vm1784, %v1762, 0
      %v1834 = vsel %vm1784, %v1763, 0
      %v1837 = vsel %vm1784, %v1764, 0
      %v1840 = vsel %vm1784, %v1765, 0
      %v1843 = vsel %vm1784, %v1766, 0
      %v1846 = vsel %vm1784, %v1767, 0
      %v1849 = vsel %vm1784, %v1768, 0
      %v1852 = vsel %vm1784, %v1769, 0
      %v1855 = vsel %vm1784, %v1770, 0
      %v1858 = vsel %vm1784, %v1771, 0
      %v1861 = vsel %vm1784, %v1772, 0
      %v1864 = vsel %vm1784, %v1773, 0
      %v1867 = vsel %vm1784, %v1774, 0
      %v1870 = vsel %vm1784, %v1775, 0
      %v1873 = vsel %vm1784, %v1776, 0
      %v1876 = vsel %vm1784, %v1777, 0
      %v1879 = vsel %vm1784, %v1778, 0
      %vm1881 = vcmask 1043456
      %v1883 = vsel %vm1881, %v1783, 0
      %1885 = vmatprep.subr.mxu0 0.0
      %1886 = vmatpush1.msra.mxu0 %v1779
      %1887 = vmatprep.subr.mxu0 0.0
      %1888 = vmatpush1.msra.mxu0 %v1780
      %1889 = vmatprep.subr.mxu0 0.0
      %1890 = vmatpush1.msra.mxu0 %v1781
      %1891 = vmatprep.subr.mxu0 0.0
      %1892 = vmatpush1.msra.mxu0 %v1782
      %1893 = vmatprep.subr.mxu0 0.0
      %1894 = vmatpush1.msra.mxu0 %v1883
      %1895 = vmatprep.subr.mxu0 0.0
      %1896 = vmatpush1.msra.mxu0 0.0
      %1897 = vmatprep.subr.mxu0 0.0
      %1898 = vmatpush1.msra.mxu0 0.0
      %1899 = vmatprep.subr.mxu0 0.0
      %1900 = vmatpush1.msra.mxu0 0.0
      %1901 = vmatprep.subr.mxu0 0.0
      %1902 = vmatpush1.msra.mxu0 0.0
      %1903 = vmatprep.subr.mxu0 0.0
      %1904 = vmatpush1.msra.mxu0 0.0
      %1905 = vmatprep.subr.mxu0 0.0
      %1906 = vmatpush1.msra.mxu0 0.0
      %1907 = vmatprep.subr.mxu0 0.0
      %1908 = vmatpush1.msra.mxu0 0.0
      %1909 = vmatprep.subr.mxu0 0.0
      %1910 = vmatpush1.msra.mxu0 0.0
      %1911 = vmatprep.subr.mxu0 0.0
      %1912 = vmatpush1.msra.mxu0 0.0
      %1913 = vmatprep.subr.mxu0 0.0
      %1914 = vmatpush1.msra.mxu0 0.0
      %1915 = vmatprep.subr.mxu0 0.0
      %1916 = vmatpush1.msra.mxu0 0.0
      %1917 = vmatprep.subr.mxu0 0.0
      %1918 = vmatpush1.msra.mxu0 0.0
      %1919 = vmatprep.subr.mxu0 0.0
      %1920 = vmatpush1.msra.mxu0 0.0
      %1921 = vmatprep.subr.mxu0 0.0
      %1922 = vmatpush1.msra.mxu0 0.0
      %1923 = vmatprep.subr.mxu0 0.0
      %1924 = vmatpush1.msra.mxu0 0.0
      %1925 = vmatprep.subr.mxu0 0.0
      %1926 = vmatpush1.msra.mxu0 0.0
      %1927 = vmatprep.subr.mxu0 0.0
      %1928 = vmatpush1.msra.mxu0 0.0
      %1929 = vmatprep.subr.mxu0 0.0
      %1930 = vmatpush1.msra.mxu0 0.0
      %1931 = vmatprep.subr.mxu0 0.0
      %1932 = vmatpush1.msra.mxu0 0.0
      %1933 = vmatprep.subr.mxu0 0.0
      %1934 = vmatpush1.msra.mxu0 0.0
      %1935 = vmatprep.subr.mxu0 0.0
      %1936 = vmatpush1.msra.mxu0 0.0
      %1937 = vmatprep.subr.mxu0 0.0
      %1938 = vmatpush1.msra.mxu0 0.0
      %1939 = vmatprep.subr.mxu0 0.0
      %1940 = vmatpush1.msra.mxu0 0.0
      %1941 = vmatprep.subr.mxu0 0.0
      %1942 = vmatpush1.msra.mxu0 0.0
      %1943 = vmatprep.subr.mxu0 0.0
      %1944 = vmatpush1.msra.mxu0 0.0
      %1945 = vmatprep.subr.mxu0 0.0
      %1946 = vmatpush1.msra.mxu0 0.0
      %1947 = vmatprep.subr.mxu0 0.0
      %1948 = vmatpush1.msra.mxu0 0.0
      %1949 = vmatprep.mubr.f32.mxu0 0.0
      %1950 = vmatmul.mubr.f32.gmra.mrb[0].mxu0 %v1786
      %v1951 = vpop.f32.mrb[0].mxu0
      %v1952 = vadd.f32 0.0, %v1951
      %v1953 = vpop.f32.mrb[0].mxu0
      %1954 = vmatprep.mubr.f32.mxu0 0.0
      %1955 = vmatmul.mubr.f32.gmra.mrb[0].mxu0 %v1789
      %v1956 = vpop.f32.mrb[0].mxu0
      %v1957 = vadd.f32 0.0, %v1956
      %v1958 = vpop.f32.mrb[0].mxu0
      %1959 = vmatprep.mubr.f32.mxu0 0.0
      %1960 = vmatmul.mubr.f32.gmra.mrb[0].mxu0 %v1792
      %v1961 = vpop.f32.mrb[0].mxu0
      %v1962 = vadd.f32 0.0, %v1961
      %v1963 = vpop.f32.mrb[0].mxu0
      %1964 = vmatprep.mubr.f32.mxu0 0.0
      %1965 = vmatmul.mubr.f32.gmra.mrb[0].mxu0 %v1795
      %v1966 = vpop.f32.mrb[0].mxu0
      %v1967 = vadd.f32 0.0, %v1966
      %v1968 = vpop.f32.mrb[0].mxu0
      %1969 = vmatprep.mubr.f32.mxu0 0.0
      %1970 = vmatmul.mubr.f32.gmra.mrb[0].mxu0 %v1798
      %v1971 = vpop.f32.mrb[0].mxu0
      %v1972 = vadd.f32 0.0, %v1971
      %v1973 = vpop.f32.mrb[0].mxu0
      %1974 = vmatprep.mubr.f32.mxu0 0.0
      %1975 = vmatmul.mubr.f32.gmra.mrb[0].mxu0 %v1801
      %v1976 = vpop.f32.mrb[0].mxu0
      %v1977 = vadd.f32 0.0, %v1976
      %v1978 = vpop.f32.mrb[0].mxu0
      %1979 = vmatprep.mubr.f32.mxu0 0.0
      %1980 = vmatmul.mubr.f32.gmra.mrb[0].mxu0 %v1804
      %v1981 = vpop.f32.mrb[0].mxu0
      %v1982 = vadd.f32 0.0, %v1981
      %v1983 = vpop.f32.mrb[0].mxu0
      %1984 = vmatprep.mubr.f32.mxu0 0.0
      %1985 = vmatmul.mubr.f32.gmra.mrb[0].mxu0 %v1807
      %v1986 = vpop.f32.mrb[0].mxu0
      %v1987 = vadd.f32 0.0, %v1986
      %v1988 = vpop.f32.mrb[0].mxu0
      %1989 = vmatprep.mubr.f32.mxu0 0.0
      %1990 = vmatmul.mubr.f32.gmra.mrb[0].mxu0 %v1810
      %v1991 = vpop.f32.mrb[0].mxu0
      %v1992 = vadd.f32 0.0, %v1991
      %v1993 = vpop.f32.mrb[0].mxu0
      %1994 = vmatprep.mubr.f32.mxu0 0.0
      %1995 = vmatmul.mubr.f32.gmra.mrb[0].mxu0 %v1813
      %v1996 = vpop.f32.mrb[0].mxu0
      %v1997 = vadd.f32 0.0, %v1996
      %v1998 = vpop.f32.mrb[0].mxu0
      %1999 = vmatprep.mubr.f32.mxu0 0.0
      %2000 = vmatmul.mubr.f32.gmra.mrb[0].mxu0 %v1816
      %v2001 = vpop.f32.mrb[0].mxu0
      %v2002 = vadd.f32 0.0, %v2001
      %v2003 = vpop.f32.mrb[0].mxu0
      %2004 = vmatprep.mubr.f32.mxu0 0.0
      %2005 = vmatmul.mubr.f32.gmra.mrb[0].mxu0 %v1819
      %v2006 = vpop.f32.mrb[0].mxu0
      %v2007 = vadd.f32 0.0, %v2006
      %v2008 = vpop.f32.mrb[0].mxu0
      %2009 = vmatprep.mubr.f32.mxu0 0.0
      %2010 = vmatmul.mubr.f32.gmra.mrb[0].mxu0 %v1822
      %v2011 = vpop.f32.mrb[0].mxu0
      %v2012 = vadd.f32 0.0, %v2011
      %v2013 = vpop.f32.mrb[0].mxu0
      %2014 = vmatprep.mubr.f32.mxu0 0.0
      %2015 = vmatmul.mubr.f32.gmra.mrb[0].mxu0 %v1825
      %v2016 = vpop.f32.mrb[0].mxu0
      %v2017 = vadd.f32 0.0, %v2016
      %v2018 = vpop.f32.mrb[0].mxu0
      %2019 = vmatprep.mubr.f32.mxu0 0.0
      %2020 = vmatmul.mubr.f32.gmra.mrb[0].mxu0 %v1828
      %v2021 = vpop.f32.mrb[0].mxu0
      %v2022 = vadd.f32 0.0, %v2021
      %v2023 = vpop.f32.mrb[0].mxu0
      %2024 = vmatprep.mubr.f32.mxu0 0.0
      %2025 = vmatmul.mubr.f32.gmra.mrb[0].mxu0 %v1831
      %v2026 = vpop.f32.mrb[0].mxu0
      %v2027 = vadd.f32 0.0, %v2026
      %v2028 = vpop.f32.mrb[0].mxu0
      %2029 = vmatprep.mubr.f32.mxu0 0.0
      %2030 = vmatmul.mubr.f32.gmra.mrb[0].mxu0 %v1834
      %v2031 = vpop.f32.mrb[0].mxu0
      %v2032 = vadd.f32 0.0, %v2031
      %v2033 = vpop.f32.mrb[0].mxu0
      %2034 = vmatprep.mubr.f32.mxu0 0.0
      %2035 = vmatmul.mubr.f32.gmra.mrb[0].mxu0 %v1837
      %v2036 = vpop.f32.mrb[0].mxu0
      %v2037 = vadd.f32 0.0, %v2036
      %v2038 = vpop.f32.mrb[0].mxu0
      %2039 = vmatprep.mubr.f32.mxu0 0.0
      %2040 = vmatmul.mubr.f32.gmra.mrb[0].mxu0 %v1840
      %v2041 = vpop.f32.mrb[0].mxu0
      %v2042 = vadd.f32 0.0, %v2041
      %v2043 = vpop.f32.mrb[0].mxu0
      %2044 = vmatprep.mubr.f32.mxu0 0.0
      %2045 = vmatmul.mubr.f32.gmra.mrb[0].mxu0 %v1843
      %v2046 = vpop.f32.mrb[0].mxu0
      %v2047 = vadd.f32 0.0, %v2046
      %v2048 = vpop.f32.mrb[0].mxu0
      %2049 = vmatprep.mubr.f32.mxu0 0.0
      %2050 = vmatmul.mubr.f32.gmra.mrb[0].mxu0 %v1846
      %v2051 = vpop.f32.mrb[0].mxu0
      %v2052 = vadd.f32 0.0, %v2051
      %v2053 = vpop.f32.mrb[0].mxu0
      %2054 = vmatprep.mubr.f32.mxu0 0.0
      %2055 = vmatmul.mubr.f32.gmra.mrb[0].mxu0 %v1849
      %v2056 = vpop.f32.mrb[0].mxu0
      %v2057 = vadd.f32 0.0, %v2056
      %v2058 = vpop.f32.mrb[0].mxu0
      %2059 = vmatprep.mubr.f32.mxu0 0.0
      %2060 = vmatmul.mubr.f32.gmra.mrb[0].mxu0 %v1852
      %v2061 = vpop.f32.mrb[0].mxu0
      %v2062 = vadd.f32 0.0, %v2061
      %v2063 = vpop.f32.mrb[0].mxu0
      %2064 = vmatprep.mubr.f32.mxu0 0.0
      %2065 = vmatmul.mubr.f32.gmra.mrb[0].mxu0 %v1855
      %v2066 = vpop.f32.mrb[0].mxu0
      %v2067 = vadd.f32 0.0, %v2066
      %v2068 = vpop.f32.mrb[0].mxu0
      %2069 = vmatprep.mubr.f32.mxu0 0.0
      %2070 = vmatmul.mubr.f32.gmra.mrb[0].mxu0 %v1858
      %v2071 = vpop.f32.mrb[0].mxu0
      %v2072 = vadd.f32 0.0, %v2071
      %v2073 = vpop.f32.mrb[0].mxu0
      %2074 = vmatprep.mubr.f32.mxu0 0.0
      %2075 = vmatmul.mubr.f32.gmra.mrb[0].mxu0 %v1861
      %v2076 = vpop.f32.mrb[0].mxu0
      %v2077 = vadd.f32 0.0, %v2076
      %v2078 = vpop.f32.mrb[0].mxu0
      %2079 = vmatprep.mubr.f32.mxu0 0.0
      %2080 = vmatmul.mubr.f32.gmra.mrb[0].mxu0 %v1864
      %v2081 = vpop.f32.mrb[0].mxu0
      %v2082 = vadd.f32 0.0, %v2081
      %v2083 = vpop.f32.mrb[0].mxu0
      %2084 = vmatprep.mubr.f32.mxu0 0.0
      %2085 = vmatmul.mubr.f32.gmra.mrb[0].mxu0 %v1867
      %v2086 = vpop.f32.mrb[0].mxu0
      %v2087 = vadd.f32 0.0, %v2086
      %v2088 = vpop.f32.mrb[0].mxu0
      %2089 = vmatprep.mubr.f32.mxu0 0.0
      %2090 = vmatmul.mubr.f32.gmra.mrb[0].mxu0 %v1870
      %v2091 = vpop.f32.mrb[0].mxu0
      %v2092 = vadd.f32 0.0, %v2091
      %v2093 = vpop.f32.mrb[0].mxu0
      %2094 = vmatprep.mubr.f32.mxu0 0.0
      %2095 = vmatmul.mubr.f32.gmra.mrb[0].mxu0 %v1873
      %v2096 = vpop.f32.mrb[0].mxu0
      %v2097 = vadd.f32 0.0, %v2096
      %v2098 = vpop.f32.mrb[0].mxu0
      %2099 = vmatprep.mubr.f32.mxu0 0.0
      %2100 = vmatmul.mubr.f32.gmra.mrb[0].mxu0 %v1876
      %v2101 = vpop.f32.mrb[0].mxu0
      %v2102 = vadd.f32 0.0, %v2101
      %v2103 = vpop.f32.mrb[0].mxu0
      %2104 = vmatprep.mubr.f32.mxu0 0.0
      %2105 = vmatmul.mubr.f32.gmra.mrb[0].mxu0 %v1879
      %v2106 = vpop.f32.mrb[0].mxu0
      %v2107 = vadd.f32 0.0, %v2106
      %v2108 = vpop.f32.mrb[0].mxu0
      %2109 = vdwg.mxu0
      %v2110 = vld [vmem:[%s184] sm:$0x1]
      %v2111 = vadd.f32 %v1952, %v1957
      %v2112 = vadd.f32 %v2111, %v1962
      %v2113 = vadd.f32 %v2112, %v1967
      %v2114 = vadd.f32 %v2113, %v1972
      %v2115 = vadd.f32 %v2114, %v1977
      %v2116 = vadd.f32 %v2115, %v1982
      %v2117 = vadd.f32 %v2116, %v1987
      %v2118 = vadd.f32 %v2117, %v1992
      %v2119 = vadd.f32 %v2118, %v1997
      %v2120 = vadd.f32 %v2119, %v2002
      %v2121 = vadd.f32 %v2120, %v2007
      %v2122 = vadd.f32 %v2121, %v2012
      %v2123 = vadd.f32 %v2122, %v2017
      %v2124 = vadd.f32 %v2123, %v2022
      %v2125 = vadd.f32 %v2124, %v2027
      %v2126 = vadd.f32 %v2125, %v2032
      %v2127 = vadd.f32 %v2126, %v2037
      %v2128 = vadd.f32 %v2127, %v2042
      %v2129 = vadd.f32 %v2128, %v2047
      %v2130 = vadd.f32 %v2129, %v2052
      %v2131 = vadd.f32 %v2130, %v2057
      %v2132 = vadd.f32 %v2131, %v2062
      %v2133 = vadd.f32 %v2132, %v2067
      %v2134 = vadd.f32 %v2133, %v2072
      %v2135 = vadd.f32 %v2134, %v2077
      %v2136 = vadd.f32 %v2135, %v2082
      %v2137 = vadd.f32 %v2136, %v2087
      %v2138 = vadd.f32 %v2137, %v2092
      %v2139 = vadd.f32 %v2138, %v2097
      %v2140 = vadd.f32 %v2139, %v2102
      %v2141 = vadd.f32 %v2140, %v2107
      %v2142 = vrot.slane %v2141, 4
      %v2143 = vadd.f32 %v2141, %v2142
      %v2144 = vrot.slane %v2143, 2
      %v2145 = vadd.f32 %v2143, %v2144
      %v2146 = vrot.slane %v2145, 1
      %v2147 = vadd.f32 %v2145, %v2146
      %v2148 = vadd.f32 %v2110, %v2147
      %2149 = vst [vmem:[%s184] sm:$0x1] %v2148
      %v2150 = vld [vmem:[%s187] sm:$0x1]
      %v2151 = vmul.f32 %v1952, %v1952
      %v2152 = vmul.f32 %v1957, %v1957
      %v2153 = vmul.f32 %v1962, %v1962
      %v2154 = vmul.f32 %v1967, %v1967
      %v2155 = vmul.f32 %v1972, %v1972
      %v2156 = vmul.f32 %v1977, %v1977
      %v2157 = vmul.f32 %v1982, %v1982
      %v2158 = vmul.f32 %v1987, %v1987
      %v2159 = vmul.f32 %v1992, %v1992
      %v2160 = vmul.f32 %v1997, %v1997
      %v2161 = vmul.f32 %v2002, %v2002
      %v2162 = vmul.f32 %v2007, %v2007
      %v2163 = vmul.f32 %v2012, %v2012
      %v2164 = vmul.f32 %v2017, %v2017
      %v2165 = vmul.f32 %v2022, %v2022
      %v2166 = vmul.f32 %v2027, %v2027
      %v2167 = vmul.f32 %v2032, %v2032
      %v2168 = vmul.f32 %v2037, %v2037
      %v2169 = vmul.f32 %v2042, %v2042
      %v2170 = vmul.f32 %v2047, %v2047
      %v2171 = vmul.f32 %v2052, %v2052
      %v2172 = vmul.f32 %v2057, %v2057
      %v2173 = vmul.f32 %v2062, %v2062
      %v2174 = vmul.f32 %v2067, %v2067
      %v2175 = vmul.f32 %v2072, %v2072
      %v2176 = vmul.f32 %v2077, %v2077
      %v2177 = vmul.f32 %v2082, %v2082
      %v2178 = vmul.f32 %v2087, %v2087
      %v2179 = vmul.f32 %v2092, %v2092
      %v2180 = vmul.f32 %v2097, %v2097
      %v2181 = vmul.f32 %v2102, %v2102
      %v2182 = vmul.f32 %v2107, %v2107
      %v2183 = vadd.f32 %v2151, %v2152
      %v2184 = vadd.f32 %v2183, %v2153
      %v2185 = vadd.f32 %v2184, %v2154
      %v2186 = vadd.f32 %v2185, %v2155
      %v2187 = vadd.f32 %v2186, %v2156
      %v2188 = vadd.f32 %v2187, %v2157
      %v2189 = vadd.f32 %v2188, %v2158
      %v2190 = vadd.f32 %v2189, %v2159
      %v2191 = vadd.f32 %v2190, %v2160
      %v2192 = vadd.f32 %v2191, %v2161
      %v2193 = vadd.f32 %v2192, %v2162
      %v2194 = vadd.f32 %v2193, %v2163
      %v2195 = vadd.f32 %v2194, %v2164
      %v2196 = vadd.f32 %v2195, %v2165
      %v2197 = vadd.f32 %v2196, %v2166
      %v2198 = vadd.f32 %v2197, %v2167
      %v2199 = vadd.f32 %v2198, %v2168
      %v2200 = vadd.f32 %v2199, %v2169
      %v2201 = vadd.f32 %v2200, %v2170
      %v2202 = vadd.f32 %v2201, %v2171
      %v2203 = vadd.f32 %v2202, %v2172
      %v2204 = vadd.f32 %v2203, %v2173
      %v2205 = vadd.f32 %v2204, %v2174
      %v2206 = vadd.f32 %v2205, %v2175
      %v2207 = vadd.f32 %v2206, %v2176
      %v2208 = vadd.f32 %v2207, %v2177
      %v2209 = vadd.f32 %v2208, %v2178
      %v2210 = vadd.f32 %v2209, %v2179
      %v2211 = vadd.f32 %v2210, %v2180
      %v2212 = vadd.f32 %v2211, %v2181
      %v2213 = vadd.f32 %v2212, %v2182
      %v2214 = vrot.slane %v2213, 4
      %v2215 = vadd.f32 %v2213, %v2214
      %v2216 = vrot.slane %v2215, 2
      %v2217 = vadd.f32 %v2215, %v2216
      %v2218 = vrot.slane %v2217, 1
      %v2219 = vadd.f32 %v2217, %v2218
      %v2220 = vadd.f32 %v2150, %v2219
      %2221 = vst [vmem:[%s187] sm:$0x1] %v2220
      %p2222 = scmp.lt.s32.totalorder %s19, 1
      %s2223 = scalar_select %p2222, %s19, 1
      %s2224 = scalar_lea.vmem %s2, %s2223
      %p2225 = scmp.lt.s32.totalorder %s19, 1
      %s2226 = scalar_select %p2225, %s19, 1
      %s2227 = scalar_lea.vmem %s3, %s2226
      // Predicated region
      $region33: #{conv2d_batchnorm.2} parent=27 // pred_check
        %p2228 = pneg %p92
      $region34: #{conv2d_batchnorm.2} parent=27 // pred_check_branch
        %2230 = sbr.rel (%p2228) target = $region36
      $region35: #{conv2d_batchnorm.2} parent=27 // pred_region
        _
      $region36: #{conv2d_batchnorm.2} parent=27 // pred_fallthru
        _
      // Predicated region
      $region37: #{conv2d_batchnorm.2} parent=27 // pred_check
        %p2231 = pneg %p118
      $region38: #{conv2d_batchnorm.2} parent=27 // pred_check_branch
        %2233 = sbr.rel (%p2231) target = $region40
      $region39: #{conv2d_batchnorm.2} parent=27 // pred_region
        _
      $region40: #{conv2d_batchnorm.2} parent=27 // pred_fallthru
        _
    $region28: #{conv2d_batchnorm.2} parent=5 // pred_fallthru
      _
    %p2234 = scmp.le.s32.totalorder 2, %s10
    // Predicated region
    $region41: #{conv2d_batchnorm.2} parent=5 // pred_check
      %p2235 = pneg %p2234
    $region42: #{conv2d_batchnorm.2} parent=5 // pred_check_branch
      %2237 = sbr.rel (%p2235) target = $region44
    $region43: #{conv2d_batchnorm.2} parent=5 // pred_region
      %s2238 = ssub.s32 %s10, 2
      // Predicated region
      $region45: #{conv2d_batchnorm.2} parent=43 // pred_check
        %p2239 = pneg %p98
      $region46: #{conv2d_batchnorm.2} parent=43 // pred_check_branch
        %2241 = sbr.rel (%p2239) target = $region48
      $region47: #{conv2d_batchnorm.2} parent=43 // pred_region
        %p2242 = scmp.lt.s32.totalorder %s21, 1
        %s2243 = scalar_select %p2242, %s21, 1
        %s2244 = scalar_lea.vmem %s2, %s2243
      $region48: #{conv2d_batchnorm.2} parent=43 // pred_fallthru
        _
      // Predicated region
      $region49: #{conv2d_batchnorm.2} parent=43 // pred_check
        %p2245 = pneg %p124
      $region50: #{conv2d_batchnorm.2} parent=43 // pred_check_branch
        %2247 = sbr.rel (%p2245) target = $region52
      $region51: #{conv2d_batchnorm.2} parent=43 // pred_region
        %p2248 = scmp.lt.s32.totalorder %s21, 1
        %s2249 = scalar_select %p2248, %s21, 1
        %s2250 = scalar_lea.vmem %s3, %s2249
      $region52: #{conv2d_batchnorm.2} parent=43 // pred_fallthru
        _
    $region44: #{conv2d_batchnorm.2} parent=5 // pred_fallthru
      _
  $region6: #{conv2d_batchnorm.2} parent=0 // loop_footer
    %s14 = sadd.s32 1, %s10
  $region7: #{conv2d_batchnorm.2} parent=0 // loop_footer_branch
    %9 = sbr.rel target = $region3
  $region8: #{conv2d_batchnorm.2} parent=0 // loop_exit
    _

// kernel: conv2d_batchnorm.3
$region0: #{conv2d_batchnorm.3}
  #allocation0 [shape = 'u32[]', space=smem, size = 0x4, offset = 0x4, fixed_abs, tag = 'smem constant byte address 0x4 - core index']
  #allocation1 [shape = 'u32[144,128]{1,0:T(1,128)}', space=vmem, size = 0x12000, scoped, tag = 'internal scratch']
  %s0 = inlined_call_operand.vmem [shape: f32[2,18,18,4], index: 0, kind: input, shape index: {}]
  %s1 = inlined_call_operand.vmem [shape: f32[36,128], index: 1, kind: input, shape index: {}]
  %s2 = inlined_call_operand.vmem [shape: f32[1,128], index: 2, kind: input, shape index: {}]
  %s3 = inlined_call_operand.vmem [shape: f32[1,128], index: 3, kind: input, shape index: {}]
  %s4 = inlined_call_operand.vmem [shape: f32[2,16,16,128], index: 4, kind: output, shape index: {}]
  %s5 = sld [smem:[#allocation0]]
  $region49: #{conv2d_batchnorm.3} parent=0
    _
  %s7 = ssub.s32 1, %s5
  %s8 = scalar_select 0, %s7, %s5
  loop: start=0, step=1, limit=4
  $region2: #{conv2d_batchnorm.3} parent=0 // loop_pre_header
    _
  $region3: #{conv2d_batchnorm.3} parent=0 // loop_header
    %s10 = sphi 0, %s14
    %p11 = scmp.ge.s32.totalorder %s10, 4
    %s17 = sphi 0, %s29
    %s18 = sphi 0, %s25
    %s19 = sphi 0, %s17
    %s20 = sphi 0, %s18
    %s21 = sphi 0, %s19
    %s22 = sphi 0, %s20
    %s32 = sphi 0, %s34
    %s35 = sphi 0, %s32
    %s36 = sphi 0, %s35
    %s52 = sphi 0, %s36
    %s56 = sphi 0, %s56
    %s58 = sphi 0, %s56
    %s59 = sphi 0, %s58
    %s73 = sphi 0, %s59
    %s77 = sphi 0, %s77
    %s79 = sphi 0, %s77
    %s80 = sphi 0, %s79
    %s94 = sphi 0, %s80
    %s98 = sphi 0, %s98
    %s100 = sphi 0, %s98
    %s101 = sphi 0, %s100
    %s115 = sphi 0, %s101
    %s123 = sphi 0, %s125
    %s126 = sphi 0, %s123
    %s127 = sphi 0, %s126
    %s143 = sphi 0, %s127
  $region4: #{conv2d_batchnorm.3} parent=0 // loop_header_branch
    %13 = sbr.rel (%p11) target = $region8
  $region5: #{conv2d_batchnorm.3} parent=0 // loop_body
    %s15 = ssub.s32 %s10, 1
    %s16 = ssub.s32 %s10, 2
    %s23 = sadd.s32 1, %s18
    %p24 = scmp.ge.s32.totalorder %s23, 1
    %s25 = scalar_select %p24, 0, %s23
    %s26 = sadd.s32 1, %s17
    %s27 = scalar_select %p24, %s26, %s17
    %p28 = scmp.ge.s32.totalorder %s27, 2
    %s29 = scalar_select %p28, 0, %s27
    %s30 = ssub.s32 %s17, %s29
    %p31 = scmp.eq.s32.totalorder %s30, 0
    %s33 = sadd.s32 %s32, 1
    %s34 = scalar_select %p31, %s32, %s33
    %p37 = pneg %p31
    %p38 = scmp.eq.s32.totalorder %s10, 1
    %p39 = por %p37, %p38
    %p40 = scmp.ne.s32.totalorder %s32, %s35
    %p41 = scmp.eq.s32.totalorder %s10, 0
    %p42 = por %p40, %p41
    %p43 = scmp.ne.s32.totalorder %s32, %s35
    %p44 = scmp.eq.s32.totalorder %s15, 1
    %p45 = por %p43, %p44
    %p46 = scmp.ne.s32.totalorder %s35, %s36
    %p47 = scmp.eq.s32.totalorder %s15, 0
    %p48 = por %p46, %p47
    %p49 = scmp.ne.s32.totalorder %s35, %s36
    %p50 = scmp.eq.s32.totalorder %s16, 1
    %p51 = por %p49, %p50
    %p53 = scmp.ne.s32.totalorder %s36, %s52
    %p54 = scmp.eq.s32.totalorder %s16, 0
    %p55 = por %p53, %p54
    %s57 = sadd.s32 %s56, 1
    %p60 = scmp.eq.s32.totalorder %s10, 1
    %p61 = scmp.ne.s32.totalorder %s56, %s58
    %p62 = scmp.eq.s32.totalorder %s10, 0
    %p63 = por %p61, %p62
    %p64 = scmp.ne.s32.totalorder %s56, %s58
    %p65 = scmp.eq.s32.totalorder %s15, 1
    %p66 = por %p64, %p65
    %p67 = scmp.ne.s32.totalorder %s58, %s59
    %p68 = scmp.eq.s32.totalorder %s15, 0
    %p69 = por %p67, %p68
    %p70 = scmp.ne.s32.totalorder %s58, %s59
    %p71 = scmp.eq.s32.totalorder %s16, 1
    %p72 = por %p70, %p71
    %p74 = scmp.ne.s32.totalorder %s59, %s73
    %p75 = scmp.eq.s32.totalorder %s16, 0
    %p76 = por %p74, %p75
    %s78 = sadd.s32 %s77, 1
    %p81 = scmp.eq.s32.totalorder %s10, 1
    %p82 = scmp.ne.s32.totalorder %s77, %s79
    %p83 = scmp.eq.s32.totalorder %s10, 0
    %p84 = por %p82, %p83
    %p85 = scmp.ne.s32.totalorder %s77, %s79
    %p86 = scmp.eq.s32.totalorder %s15, 1
    %p87 = por %p85, %p86
    %p88 = scmp.ne.s32.totalorder %s79, %s80
    %p89 = scmp.eq.s32.totalorder %s15, 0
    %p90 = por %p88, %p89
    %p91 = scmp.ne.s32.totalorder %s79, %s80
    %p92 = scmp.eq.s32.totalorder %s16, 1
    %p93 = por %p91, %p92
    %p95 = scmp.ne.s32.totalorder %s80, %s94
    %p96 = scmp.eq.s32.totalorder %s16, 0
    %p97 = por %p95, %p96
    %s99 = sadd.s32 %s98, 1
    %p102 = scmp.eq.s32.totalorder %s10, 1
    %p103 = scmp.ne.s32.totalorder %s98, %s100
    %p104 = scmp.eq.s32.totalorder %s10, 0
    %p105 = por %p103, %p104
    %p106 = scmp.ne.s32.totalorder %s98, %s100
    %p107 = scmp.eq.s32.totalorder %s15, 1
    %p108 = por %p106, %p107
    %p109 = scmp.ne.s32.totalorder %s100, %s101
    %p110 = scmp.eq.s32.totalorder %s15, 0
    %p111 = por %p109, %p110
    %p112 = scmp.ne.s32.totalorder %s100, %s101
    %p113 = scmp.eq.s32.totalorder %s16, 1
    %p114 = por %p112, %p113
    %p116 = scmp.ne.s32.totalorder %s101, %s115
    %p117 = scmp.eq.s32.totalorder %s16, 0
    %p118 = por %p116, %p117
    %s119 = ssub.s32 %s17, %s29
    %s120 = ssub.s32 %s18, %s25
    %s121 = sor.u32 %s119, %s120
    %p122 = scmp.eq.s32.totalorder %s121, 0
    %s124 = sadd.s32 %s123, 1
    %s125 = scalar_select %p122, %s123, %s124
    %p128 = pneg %p122
    %p129 = scmp.eq.s32.totalorder %s10, 1
    %p130 = por %p128, %p129
    %p131 = scmp.ne.s32.totalorder %s123, %s126
    %p132 = scmp.eq.s32.totalorder %s10, 0
    %p133 = por %p131, %p132
    %p134 = scmp.ne.s32.totalorder %s123, %s126
    %p135 = scmp.eq.s32.totalorder %s15, 1
    %p136 = por %p134, %p135
    %p137 = scmp.ne.s32.totalorder %s126, %s127
    %p138 = scmp.eq.s32.totalorder %s15, 0
    %p139 = por %p137, %p138
    %p140 = scmp.ne.s32.totalorder %s126, %s127
    %p141 = scmp.eq.s32.totalorder %s16, 1
    %p142 = por %p140, %p141
    %p144 = scmp.ne.s32.totalorder %s127, %s143
    %p145 = scmp.eq.s32.totalorder %s16, 0
    %p146 = por %p144, %p145
    %p147 = scmp.le.s32.totalorder 1, %s10
    %p148 = scmp.lt.s32.totalorder %s10, 3
    %p149 = pnand %p147, %p148
    %p150 = pneg %p149
    // Predicated region
    $region9: #{conv2d_batchnorm.3} parent=5 // pred_check
      _
    $region10: #{conv2d_batchnorm.3} parent=5 // pred_check_branch
      %152 = sbr.rel (%p149) target = $region12
    $region11: #{conv2d_batchnorm.3} parent=5 // pred_region
      %s153 = ssub.s32 %s10, 1
      // Predicated region
      $region13: #{conv2d_batchnorm.3} parent=11 // pred_check
        %p154 = pneg %p69
      $region14: #{conv2d_batchnorm.3} parent=11 // pred_check_branch
        %156 = sbr.rel (%p154) target = $region16
      $region15: #{conv2d_batchnorm.3} parent=11 // pred_region
        _
      $region16: #{conv2d_batchnorm.3} parent=11 // pred_fallthru
        _
      // Predicated region
      $region17: #{conv2d_batchnorm.3} parent=11 // pred_check
        %p157 = pneg %p90
      $region18: #{conv2d_batchnorm.3} parent=11 // pred_check_branch
        %159 = sbr.rel (%p157) target = $region20
      $region19: #{conv2d_batchnorm.3} parent=11 // pred_region
        _
      $region20: #{conv2d_batchnorm.3} parent=11 // pred_fallthru
        _
      // Predicated region
      $region21: #{conv2d_batchnorm.3} parent=11 // pred_check
        %p160 = pneg %p111
      $region22: #{conv2d_batchnorm.3} parent=11 // pred_check_branch
        %162 = sbr.rel (%p160) target = $region24
      $region23: #{conv2d_batchnorm.3} parent=11 // pred_region
        _
      $region24: #{conv2d_batchnorm.3} parent=11 // pred_fallthru
        _
    $region12: #{conv2d_batchnorm.3} parent=5 // pred_fallthru
      _
    %p163 = scmp.lt.s32.totalorder %s10, 2
    // Predicated region
    $region25: #{conv2d_batchnorm.3} parent=5 // pred_check
      %p164 = pneg %p163
    $region26: #{conv2d_batchnorm.3} parent=5 // pred_check_branch
      %166 = sbr.rel (%p164) target = $region28
    $region27: #{conv2d_batchnorm.3} parent=5 // pred_region
      // Predicated region
      $region29: #{conv2d_batchnorm.3} parent=27 // pred_check
        %p167 = pneg %p42
      $region30: #{conv2d_batchnorm.3} parent=27 // pred_check_branch
        %169 = sbr.rel (%p167) target = $region32
      $region31: #{conv2d_batchnorm.3} parent=27 // pred_region
        %p170 = scmp.lt.s32.totalorder %s17, 1
        %s171 = scalar_select %p170, %s17, 1
        %s172 = smul.addr %s171, 54
        %s173 = smul.addr %s172, 8
        %s174 = scalar_lea.vmem %s0, %s173
      $region32: #{conv2d_batchnorm.3} parent=27 // pred_fallthru
        _
    $region28: #{conv2d_batchnorm.3} parent=5 // pred_fallthru
      _
    %p175 = scmp.le.s32.totalorder 1, %s10
    %p176 = scmp.lt.s32.totalorder %s10, 3
    %p177 = pnand %p175, %p176
    %p178 = pneg %p177
    // Predicated region
    $region33: #{conv2d_batchnorm.3} parent=5 // pred_check
      _
    $region34: #{conv2d_batchnorm.3} parent=5 // pred_check_branch
      %180 = sbr.rel (%p177) target = $region36
    $region35: #{conv2d_batchnorm.3} parent=5 // pred_region
      %s181 = ssub.s32 %s10, 1
      %p182 = scmp.lt.s32.totalorder %s19, 1
      %s183 = scalar_select %p182, %s19, 1
      %s184 = smul.addr %s183, 54
      %s185 = smul.addr %s184, 8
      %s186 = scalar_lea.vmem %s0, %s185
      %p187 = pneg %p48
      %p188 = pneg %p45
      %p189 = pneg %p69
      %p190 = pneg %p66
      %p191 = pneg %p90
      %p192 = pneg %p87
      %p193 = pneg %p111
      %p194 = pneg %p108
      %p195 = pneg %p139
      %p196 = pneg %p136
      %s197 = smul.u32 16, %s20
      %p198 = scmp.lt.s32.totalorder %s19, 1
      %s199 = scalar_select %p198, %s19, 1
      %p200 = scmp.lt.s32.totalorder %s197, 15
      %s201 = scalar_select %p200, %s197, 15
      %s202 = smul.addr %s201, 2
      %s203 = smul.addr %s199, 32
      %s204 = sadd.s32 %s202, %s203
      %s205 = smul.addr %s204, 8
      %s206 = scalar_lea.vmem %s4, %s205
      %p207 = scmp.lt.s32.totalorder %s19, 1
      %s208 = scalar_select %p207, %s19, 1
      %s209 = smul.addr %s208, 54
      %s210 = smul.addr %s209, 8
      %s211 = scalar_lea.vmem %s0, %s210
      %s212 = smul.u32 16, %s20
      %p213 = scmp.lt.s32.totalorder %s19, 1
      %s214 = scalar_select %p213, %s19, 1
      %p215 = scmp.lt.s32.totalorder %s212, 15
      %s216 = scalar_select %p215, %s212, 15
      %s217 = smul.addr %s216, 2
      %s218 = smul.addr %s214, 32
      %s219 = sadd.s32 %s217, %s218
      %s220 = smul.addr %s219, 8
      %s221 = scalar_lea.vmem %s4, %s220
      %s222 = smul.u32 16, %s20
      %s223 = smul.u32 %s20, 16
      %s224 = smul.u32 %s223, 24
      %s225 = scalar_lea.vmem %s211, %s224
      %v226 = vld [vmem:[%s225] sm:$0xff]
      %v227 = vld [vmem:[%s225 + $0x8] sm:$0xff]
      %v228 = vld [vmem:[%s225 + $0x18] sm:$0xff]
      %v229 = vld [vmem:[%s225 + $0x20] sm:$0xff]
      %v230 = vld [vmem:[%s225 + $0x30] sm:$0xff]
      %v231 = vld [vmem:[%s225 + $0x38] sm:$0xff]
      %v232 = vld [vmem:[%s225 + $0x48] sm:$0xff]
      %v233 = vld [vmem:[%s225 + $0x50] sm:$0xff]
      %v234 = vld [vmem:[%s225 + $0x60] sm:$0xff]
      %v235 = vld [vmem:[%s225 + $0x68] sm:$0xff]
      %v236 = vld [vmem:[%s225 + $0x78] sm:$0xff]
      %v237 = vld [vmem:[%s225 + $0x80] sm:$0xff]
      %v238 = vld [vmem:[%s225 + $0x90] sm:$0xff]
      %v239 = vld [vmem:[%s225 + $0x98] sm:$0xff]
      %v240 = vld [vmem:[%s225 + $0xa8] sm:$0xff]
      %v241 = vld [vmem:[%s225 + $0xb0] sm:$0xff]
      %v242 = vld [vmem:[%s225 + $0xc0] sm:$0xff]
      %v243 = vld [vmem:[%s225 + $0xc8] sm:$0xff]
      %v244 = vld [vmem:[%s225 + $0xd8] sm:$0xff]
      %v245 = vld [vmem:[%s225 + $0xe0] sm:$0xff]
      %v246 = vld [vmem:[%s225 + $0xf0] sm:$0xff]
      %v247 = vld [vmem:[%s225 + $0xf8] sm:$0xff]
      %v248 = vld [vmem:[%s225 + $0x108] sm:$0xff]
      %v249 = vld [vmem:[%s225 + $0x110] sm:$0xff]
      %v250 = vld [vmem:[%s225 + $0x120] sm:$0xff]
      %v251 = vld [vmem:[%s225 + $0x128] sm:$0xff]
      %v252 = vld [vmem:[%s225 + $0x138] sm:$0xff]
      %v253 = vld [vmem:[%s225 + $0x140] sm:$0xff]
      %v254 = vld [vmem:[%s225 + $0x150] sm:$0xff]
      %v255 = vld [vmem:[%s225 + $0x158] sm:$0xff]
      %v256 = vld [vmem:[%s225 + $0x168] sm:$0xff]
      %v257 = vld [vmem:[%s225 + $0x170] sm:$0xff]
      %v258 = vld [vmem:[%s225 + $0x1] sm:$0xff]
      %v259 = vld [vmem:[%s225 + $0x9] sm:$0xff]
      %v260 = vld [vmem:[%s225 + $0x19] sm:$0xff]
      %v261 = vld [vmem:[%s225 + $0x21] sm:$0xff]
      %v262 = vld [vmem:[%s225 + $0x31] sm:$0xff]
      %v263 = vld [vmem:[%s225 + $0x39] sm:$0xff]
      %v264 = vld [vmem:[%s225 + $0x49] sm:$0xff]
      %v265 = vld [vmem:[%s225 + $0x51] sm:$0xff]
      %v266 = vld [vmem:[%s225 + $0x61] sm:$0xff]
      %v267 = vld [vmem:[%s225 + $0x69] sm:$0xff]
      %v268 = vld [vmem:[%s225 + $0x79] sm:$0xff]
      %v269 = vld [vmem:[%s225 + $0x81] sm:$0xff]
      %v270 = vld [vmem:[%s225 + $0x91] sm:$0xff]
      %v271 = vld [vmem:[%s225 + $0x99] sm:$0xff]
      %v272 = vld [vmem:[%s225 + $0xa9] sm:$0xff]
      %v273 = vld [vmem:[%s225 + $0xb1] sm:$0xff]
      %v274 = vld [vmem:[%s225 + $0xc1] sm:$0xff]
      %v275 = vld [vmem:[%s225 + $0xc9] sm:$0xff]
      %v276 = vld [vmem:[%s225 + $0xd9] sm:$0xff]
      %v277 = vld [vmem:[%s225 + $0xe1] sm:$0xff]
      %v278 = vld [vmem:[%s225 + $0xf1] sm:$0xff]
      %v279 = vld [vmem:[%s225 + $0xf9] sm:$0xff]
      %v280 = vld [vmem:[%s225 + $0x109] sm:$0xff]
      %v281 = vld [vmem:[%s225 + $0x111] sm:$0xff]
      %v282 = vld [vmem:[%s225 + $0x121] sm:$0xff]
      %v283 = vld [vmem:[%s225 + $0x129] sm:$0xff]
      %v284 = vld [vmem:[%s225 + $0x139] sm:$0xff]
      %v285 = vld [vmem:[%s225 + $0x141] sm:$0xff]
      %v286 = vld [vmem:[%s225 + $0x151] sm:$0xff]
      %v287 = vld [vmem:[%s225 + $0x159] sm:$0xff]
      %v288 = vld [vmem:[%s225 + $0x169] sm:$0xff]
      %v289 = vld [vmem:[%s225 + $0x171] sm:$0xff]
      %v290 = vld [vmem:[%s225 + $0x2] sm:$0xff]
      %v291 = vld [vmem:[%s225 + $0xa] sm:$0xff]
      %v292 = vld [vmem:[%s225 + $0x1a] sm:$0xff]
      %v293 = vld [vmem:[%s225 + $0x22] sm:$0xff]
      %v294 = vld [vmem:[%s225 + $0x32] sm:$0xff]
      %v295 = vld [vmem:[%s225 + $0x3a] sm:$0xff]
      %v296 = vld [vmem:[%s225 + $0x4a] sm:$0xff]
      %v297 = vld [vmem:[%s225 + $0x52] sm:$0xff]
      %v298 = vld [vmem:[%s225 + $0x62] sm:$0xff]
      %v299 = vld [vmem:[%s225 + $0x6a] sm:$0xff]
      %v300 = vld [vmem:[%s225 + $0x7a] sm:$0xff]
      %v301 = vld [vmem:[%s225 + $0x82] sm:$0xff]
      %v302 = vld [vmem:[%s225 + $0x92] sm:$0xff]
      %v303 = vld [vmem:[%s225 + $0x9a] sm:$0xff]
      %v304 = vld [vmem:[%s225 + $0xaa] sm:$0xff]
      %v305 = vld [vmem:[%s225 + $0xb2] sm:$0xff]
      %v306 = vld [vmem:[%s225 + $0xc2] sm:$0xff]
      %v307 = vld [vmem:[%s225 + $0xca] sm:$0xff]
      %v308 = vld [vmem:[%s225 + $0xda] sm:$0xff]
      %v309 = vld [vmem:[%s225 + $0xe2] sm:$0xff]
      %v310 = vld [vmem:[%s225 + $0xf2] sm:$0xff]
      %v311 = vld [vmem:[%s225 + $0xfa] sm:$0xff]
      %v312 = vld [vmem:[%s225 + $0x10a] sm:$0xff]
      %v313 = vld [vmem:[%s225 + $0x112] sm:$0xff]
      %v314 = vld [vmem:[%s225 + $0x122] sm:$0xff]
      %v315 = vld [vmem:[%s225 + $0x12a] sm:$0xff]
      %v316 = vld [vmem:[%s225 + $0x13a] sm:$0xff]
      %v317 = vld [vmem:[%s225 + $0x142] sm:$0xff]
      %v318 = vld [vmem:[%s225 + $0x152] sm:$0xff]
      %v319 = vld [vmem:[%s225 + $0x15a] sm:$0xff]
      %v320 = vld [vmem:[%s225 + $0x16a] sm:$0xff]
      %v321 = vld [vmem:[%s225 + $0x172] sm:$0xff]
      %s322 = sadd.s32 %s223, 1
      %s323 = smul.u32 %s322, 24
      %s324 = scalar_lea.vmem %s211, %s323
      %v325 = vld [vmem:[%s324] sm:$0xff]
      %v326 = vld [vmem:[%s324 + $0x8] sm:$0xff]
      %v327 = vld [vmem:[%s324 + $0x18] sm:$0xff]
      %v328 = vld [vmem:[%s324 + $0x20] sm:$0xff]
      %v329 = vld [vmem:[%s324 + $0x30] sm:$0xff]
      %v330 = vld [vmem:[%s324 + $0x38] sm:$0xff]
      %v331 = vld [vmem:[%s324 + $0x48] sm:$0xff]
      %v332 = vld [vmem:[%s324 + $0x50] sm:$0xff]
      %v333 = vld [vmem:[%s324 + $0x60] sm:$0xff]
      %v334 = vld [vmem:[%s324 + $0x68] sm:$0xff]
      %v335 = vld [vmem:[%s324 + $0x78] sm:$0xff]
      %v336 = vld [vmem:[%s324 + $0x80] sm:$0xff]
      %v337 = vld [vmem:[%s324 + $0x90] sm:$0xff]
      %v338 = vld [vmem:[%s324 + $0x98] sm:$0xff]
      %v339 = vld [vmem:[%s324 + $0xa8] sm:$0xff]
      %v340 = vld [vmem:[%s324 + $0xb0] sm:$0xff]
      %v341 = vld [vmem:[%s324 + $0xc0] sm:$0xff]
      %v342 = vld [vmem:[%s324 + $0xc8] sm:$0xff]
      %v343 = vld [vmem:[%s324 + $0xd8] sm:$0xff]
      %v344 = vld [vmem:[%s324 + $0xe0] sm:$0xff]
      %v345 = vld [vmem:[%s324 + $0xf0] sm:$0xff]
      %v346 = vld [vmem:[%s324 + $0xf8] sm:$0xff]
      %v347 = vld [vmem:[%s324 + $0x108] sm:$0xff]
      %v348 = vld [vmem:[%s324 + $0x110] sm:$0xff]
      %v349 = vld [vmem:[%s324 + $0x120] sm:$0xff]
      %v350 = vld [vmem:[%s324 + $0x128] sm:$0xff]
      %v351 = vld [vmem:[%s324 + $0x138] sm:$0xff]
      %v352 = vld [vmem:[%s324 + $0x140] sm:$0xff]
      %v353 = vld [vmem:[%s324 + $0x150] sm:$0xff]
      %v354 = vld [vmem:[%s324 + $0x158] sm:$0xff]
      %v355 = vld [vmem:[%s324 + $0x168] sm:$0xff]
      %v356 = vld [vmem:[%s324 + $0x170] sm:$0xff]
      %v357 = vld [vmem:[%s324 + $0x1] sm:$0xff]
      %v358 = vld [vmem:[%s324 + $0x9] sm:$0xff]
      %v359 = vld [vmem:[%s324 + $0x19] sm:$0xff]
      %v360 = vld [vmem:[%s324 + $0x21] sm:$0xff]
      %v361 = vld [vmem:[%s324 + $0x31] sm:$0xff]
      %v362 = vld [vmem:[%s324 + $0x39] sm:$0xff]
      %v363 = vld [vmem:[%s324 + $0x49] sm:$0xff]
      %v364 = vld [vmem:[%s324 + $0x51] sm:$0xff]
      %v365 = vld [vmem:[%s324 + $0x61] sm:$0xff]
      %v366 = vld [vmem:[%s324 + $0x69] sm:$0xff]
      %v367 = vld [vmem:[%s324 + $0x79] sm:$0xff]
      %v368 = vld [vmem:[%s324 + $0x81] sm:$0xff]
      %v369 = vld [vmem:[%s324 + $0x91] sm:$0xff]
      %v370 = vld [vmem:[%s324 + $0x99] sm:$0xff]
      %v371 = vld [vmem:[%s324 + $0xa9] sm:$0xff]
      %v372 = vld [vmem:[%s324 + $0xb1] sm:$0xff]
      %v373 = vld [vmem:[%s324 + $0xc1] sm:$0xff]
      %v374 = vld [vmem:[%s324 + $0xc9] sm:$0xff]
      %v375 = vld [vmem:[%s324 + $0xd9] sm:$0xff]
      %v376 = vld [vmem:[%s324 + $0xe1] sm:$0xff]
      %v377 = vld [vmem:[%s324 + $0xf1] sm:$0xff]
      %v378 = vld [vmem:[%s324 + $0xf9] sm:$0xff]
      %v379 = vld [vmem:[%s324 + $0x109] sm:$0xff]
      %v380 = vld [vmem:[%s324 + $0x111] sm:$0xff]
      %v381 = vld [vmem:[%s324 + $0x121] sm:$0xff]
      %v382 = vld [vmem:[%s324 + $0x129] sm:$0xff]
      %v383 = vld [vmem:[%s324 + $0x139] sm:$0xff]
      %v384 = vld [vmem:[%s324 + $0x141] sm:$0xff]
      %v385 = vld [vmem:[%s324 + $0x151] sm:$0xff]
      %v386 = vld [vmem:[%s324 + $0x159] sm:$0xff]
      %v387 = vld [vmem:[%s324 + $0x169] sm:$0xff]
      %v388 = vld [vmem:[%s324 + $0x171] sm:$0xff]
      %v389 = vld [vmem:[%s324 + $0x2] sm:$0xff]
      %v390 = vld [vmem:[%s324 + $0xa] sm:$0xff]
      %v391 = vld [vmem:[%s324 + $0x1a] sm:$0xff]
      %v392 = vld [vmem:[%s324 + $0x22] sm:$0xff]
      %v393 = vld [vmem:[%s324 + $0x32] sm:$0xff]
      %v394 = vld [vmem:[%s324 + $0x3a] sm:$0xff]
      %v395 = vld [vmem:[%s324 + $0x4a] sm:$0xff]
      %v396 = vld [vmem:[%s324 + $0x52] sm:$0xff]
      %v397 = vld [vmem:[%s324 + $0x62] sm:$0xff]
      %v398 = vld [vmem:[%s324 + $0x6a] sm:$0xff]
      %v399 = vld [vmem:[%s324 + $0x7a] sm:$0xff]
      %v400 = vld [vmem:[%s324 + $0x82] sm:$0xff]
      %v401 = vld [vmem:[%s324 + $0x92] sm:$0xff]
      %v402 = vld [vmem:[%s324 + $0x9a] sm:$0xff]
      %v403 = vld [vmem:[%s324 + $0xaa] sm:$0xff]
      %v404 = vld [vmem:[%s324 + $0xb2] sm:$0xff]
      %v405 = vld [vmem:[%s324 + $0xc2] sm:$0xff]
      %v406 = vld [vmem:[%s324 + $0xca] sm:$0xff]
      %v407 = vld [vmem:[%s324 + $0xda] sm:$0xff]
      %v408 = vld [vmem:[%s324 + $0xe2] sm:$0xff]
      %v409 = vld [vmem:[%s324 + $0xf2] sm:$0xff]
      %v410 = vld [vmem:[%s324 + $0xfa] sm:$0xff]
      %v411 = vld [vmem:[%s324 + $0x10a] sm:$0xff]
      %v412 = vld [vmem:[%s324 + $0x112] sm:$0xff]
      %v413 = vld [vmem:[%s324 + $0x122] sm:$0xff]
      %v414 = vld [vmem:[%s324 + $0x12a] sm:$0xff]
      %v415 = vld [vmem:[%s324 + $0x13a] sm:$0xff]
      %v416 = vld [vmem:[%s324 + $0x142] sm:$0xff]
      %v417 = vld [vmem:[%s324 + $0x152] sm:$0xff]
      %v418 = vld [vmem:[%s324 + $0x15a] sm:$0xff]
      %v419 = vld [vmem:[%s324 + $0x16a] sm:$0xff]
      %v420 = vld [vmem:[%s324 + $0x172] sm:$0xff]
      %s421 = sadd.s32 %s223, 2
      %s422 = smul.u32 %s421, 24
      %s423 = scalar_lea.vmem %s211, %s422
      %v424 = vld [vmem:[%s423] sm:$0xff]
      %v425 = vld [vmem:[%s423 + $0x8] sm:$0xff]
      %v426 = vld [vmem:[%s423 + $0x18] sm:$0xff]
      %v427 = vld [vmem:[%s423 + $0x20] sm:$0xff]
      %v428 = vld [vmem:[%s423 + $0x30] sm:$0xff]
      %v429 = vld [vmem:[%s423 + $0x38] sm:$0xff]
      %v430 = vld [vmem:[%s423 + $0x48] sm:$0xff]
      %v431 = vld [vmem:[%s423 + $0x50] sm:$0xff]
      %v432 = vld [vmem:[%s423 + $0x60] sm:$0xff]
      %v433 = vld [vmem:[%s423 + $0x68] sm:$0xff]
      %v434 = vld [vmem:[%s423 + $0x78] sm:$0xff]
      %v435 = vld [vmem:[%s423 + $0x80] sm:$0xff]
      %v436 = vld [vmem:[%s423 + $0x90] sm:$0xff]
      %v437 = vld [vmem:[%s423 + $0x98] sm:$0xff]
      %v438 = vld [vmem:[%s423 + $0xa8] sm:$0xff]
      %v439 = vld [vmem:[%s423 + $0xb0] sm:$0xff]
      %v440 = vld [vmem:[%s423 + $0xc0] sm:$0xff]
      %v441 = vld [vmem:[%s423 + $0xc8] sm:$0xff]
      %v442 = vld [vmem:[%s423 + $0xd8] sm:$0xff]
      %v443 = vld [vmem:[%s423 + $0xe0] sm:$0xff]
      %v444 = vld [vmem:[%s423 + $0xf0] sm:$0xff]
      %v445 = vld [vmem:[%s423 + $0xf8] sm:$0xff]
      %v446 = vld [vmem:[%s423 + $0x108] sm:$0xff]
      %v447 = vld [vmem:[%s423 + $0x110] sm:$0xff]
      %v448 = vld [vmem:[%s423 + $0x120] sm:$0xff]
      %v449 = vld [vmem:[%s423 + $0x128] sm:$0xff]
      %v450 = vld [vmem:[%s423 + $0x138] sm:$0xff]
      %v451 = vld [vmem:[%s423 + $0x140] sm:$0xff]
      %v452 = vld [vmem:[%s423 + $0x150] sm:$0xff]
      %v453 = vld [vmem:[%s423 + $0x158] sm:$0xff]
      %v454 = vld [vmem:[%s423 + $0x168] sm:$0xff]
      %v455 = vld [vmem:[%s423 + $0x170] sm:$0xff]
      %v456 = vld [vmem:[%s423 + $0x1] sm:$0xff]
      %v457 = vld [vmem:[%s423 + $0x9] sm:$0xff]
      %v458 = vld [vmem:[%s423 + $0x19] sm:$0xff]
      %v459 = vld [vmem:[%s423 + $0x21] sm:$0xff]
      %v460 = vld [vmem:[%s423 + $0x31] sm:$0xff]
      %v461 = vld [vmem:[%s423 + $0x39] sm:$0xff]
      %v462 = vld [vmem:[%s423 + $0x49] sm:$0xff]
      %v463 = vld [vmem:[%s423 + $0x51] sm:$0xff]
      %v464 = vld [vmem:[%s423 + $0x61] sm:$0xff]
      %v465 = vld [vmem:[%s423 + $0x69] sm:$0xff]
      %v466 = vld [vmem:[%s423 + $0x79] sm:$0xff]
      %v467 = vld [vmem:[%s423 + $0x81] sm:$0xff]
      %v468 = vld [vmem:[%s423 + $0x91] sm:$0xff]
      %v469 = vld [vmem:[%s423 + $0x99] sm:$0xff]
      %v470 = vld [vmem:[%s423 + $0xa9] sm:$0xff]
      %v471 = vld [vmem:[%s423 + $0xb1] sm:$0xff]
      %v472 = vld [vmem:[%s423 + $0xc1] sm:$0xff]
      %v473 = vld [vmem:[%s423 + $0xc9] sm:$0xff]
      %v474 = vld [vmem:[%s423 + $0xd9] sm:$0xff]
      %v475 = vld [vmem:[%s423 + $0xe1] sm:$0xff]
      %v476 = vld [vmem:[%s423 + $0xf1] sm:$0xff]
      %v477 = vld [vmem:[%s423 + $0xf9] sm:$0xff]
      %v478 = vld [vmem:[%s423 + $0x109] sm:$0xff]
      %v479 = vld [vmem:[%s423 + $0x111] sm:$0xff]
      %v480 = vld [vmem:[%s423 + $0x121] sm:$0xff]
      %v481 = vld [vmem:[%s423 + $0x129] sm:$0xff]
      %v482 = vld [vmem:[%s423 + $0x139] sm:$0xff]
      %v483 = vld [vmem:[%s423 + $0x141] sm:$0xff]
      %v484 = vld [vmem:[%s423 + $0x151] sm:$0xff]
      %v485 = vld [vmem:[%s423 + $0x159] sm:$0xff]
      %v486 = vld [vmem:[%s423 + $0x169] sm:$0xff]
      %v487 = vld [vmem:[%s423 + $0x171] sm:$0xff]
      %v488 = vld [vmem:[%s423 + $0x2] sm:$0xff]
      %v489 = vld [vmem:[%s423 + $0xa] sm:$0xff]
      %v490 = vld [vmem:[%s423 + $0x1a] sm:$0xff]
      %v491 = vld [vmem:[%s423 + $0x22] sm:$0xff]
      %v492 = vld [vmem:[%s423 + $0x32] sm:$0xff]
      %v493 = vld [vmem:[%s423 + $0x3a] sm:$0xff]
      %v494 = vld [vmem:[%s423 + $0x4a] sm:$0xff]
      %v495 = vld [vmem:[%s423 + $0x52] sm:$0xff]
      %v496 = vld [vmem:[%s423 + $0x62] sm:$0xff]
      %v497 = vld [vmem:[%s423 + $0x6a] sm:$0xff]
      %v498 = vld [vmem:[%s423 + $0x7a] sm:$0xff]
      %v499 = vld [vmem:[%s423 + $0x82] sm:$0xff]
      %v500 = vld [vmem:[%s423 + $0x92] sm:$0xff]
      %v501 = vld [vmem:[%s423 + $0x9a] sm:$0xff]
      %v502 = vld [vmem:[%s423 + $0xaa] sm:$0xff]
      %v503 = vld [vmem:[%s423 + $0xb2] sm:$0xff]
      %v504 = vld [vmem:[%s423 + $0xc2] sm:$0xff]
      %v505 = vld [vmem:[%s423 + $0xca] sm:$0xff]
      %v506 = vld [vmem:[%s423 + $0xda] sm:$0xff]
      %v507 = vld [vmem:[%s423 + $0xe2] sm:$0xff]
      %v508 = vld [vmem:[%s423 + $0xf2] sm:$0xff]
      %v509 = vld [vmem:[%s423 + $0xfa] sm:$0xff]
      %v510 = vld [vmem:[%s423 + $0x10a] sm:$0xff]
      %v511 = vld [vmem:[%s423 + $0x112] sm:$0xff]
      %v512 = vld [vmem:[%s423 + $0x122] sm:$0xff]
      %v513 = vld [vmem:[%s423 + $0x12a] sm:$0xff]
      %v514 = vld [vmem:[%s423 + $0x13a] sm:$0xff]
      %v515 = vld [vmem:[%s423 + $0x142] sm:$0xff]
      %v516 = vld [vmem:[%s423 + $0x152] sm:$0xff]
      %v517 = vld [vmem:[%s423 + $0x15a] sm:$0xff]
      %v518 = vld [vmem:[%s423 + $0x16a] sm:$0xff]
      %v519 = vld [vmem:[%s423 + $0x172] sm:$0xff]
      %552 = vrot.lane.b32.xlu0 %v258, 4
      %v553 = vpop.permute.xlu0 %552
      %554 = vrot.lane.b32.xlu0 %v259, 4
      %v555 = vpop.permute.xlu0 %554
      %556 = vrot.lane.b32.xlu0 %v260, 4
      %v557 = vpop.permute.xlu0 %556
      %558 = vrot.lane.b32.xlu0 %v261, 4
      %v559 = vpop.permute.xlu0 %558
      %560 = vrot.lane.b32.xlu0 %v262, 4
      %v561 = vpop.permute.xlu0 %560
      %562 = vrot.lane.b32.xlu0 %v263, 4
      %v563 = vpop.permute.xlu0 %562
      %564 = vrot.lane.b32.xlu0 %v264, 4
      %v565 = vpop.permute.xlu0 %564
      %566 = vrot.lane.b32.xlu0 %v265, 4
      %v567 = vpop.permute.xlu0 %566
      %568 = vrot.lane.b32.xlu0 %v266, 4
      %v569 = vpop.permute.xlu0 %568
      %570 = vrot.lane.b32.xlu0 %v267, 4
      %v571 = vpop.permute.xlu0 %570
      %572 = vrot.lane.b32.xlu0 %v268, 4
      %v573 = vpop.permute.xlu0 %572
      %574 = vrot.lane.b32.xlu0 %v269, 4
      %v575 = vpop.permute.xlu0 %574
      %576 = vrot.lane.b32.xlu0 %v270, 4
      %v577 = vpop.permute.xlu0 %576
      %578 = vrot.lane.b32.xlu0 %v271, 4
      %v579 = vpop.permute.xlu0 %578
      %580 = vrot.lane.b32.xlu0 %v272, 4
      %v581 = vpop.permute.xlu0 %580
      %582 = vrot.lane.b32.xlu0 %v273, 4
      %v583 = vpop.permute.xlu0 %582
      %584 = vrot.lane.b32.xlu0 %v274, 4
      %v585 = vpop.permute.xlu0 %584
      %586 = vrot.lane.b32.xlu0 %v275, 4
      %v587 = vpop.permute.xlu0 %586
      %588 = vrot.lane.b32.xlu0 %v276, 4
      %v589 = vpop.permute.xlu0 %588
      %590 = vrot.lane.b32.xlu0 %v277, 4
      %v591 = vpop.permute.xlu0 %590
      %592 = vrot.lane.b32.xlu0 %v278, 4
      %v593 = vpop.permute.xlu0 %592
      %594 = vrot.lane.b32.xlu0 %v279, 4
      %v595 = vpop.permute.xlu0 %594
      %596 = vrot.lane.b32.xlu0 %v280, 4
      %v597 = vpop.permute.xlu0 %596
      %598 = vrot.lane.b32.xlu0 %v281, 4
      %v599 = vpop.permute.xlu0 %598
      %600 = vrot.lane.b32.xlu0 %v282, 4
      %v601 = vpop.permute.xlu0 %600
      %602 = vrot.lane.b32.xlu0 %v283, 4
      %v603 = vpop.permute.xlu0 %602
      %604 = vrot.lane.b32.xlu0 %v284, 4
      %v605 = vpop.permute.xlu0 %604
      %606 = vrot.lane.b32.xlu0 %v285, 4
      %v607 = vpop.permute.xlu0 %606
      %608 = vrot.lane.b32.xlu0 %v286, 4
      %v609 = vpop.permute.xlu0 %608
      %610 = vrot.lane.b32.xlu0 %v287, 4
      %v611 = vpop.permute.xlu0 %610
      %612 = vrot.lane.b32.xlu0 %v288, 4
      %v613 = vpop.permute.xlu0 %612
      %614 = vrot.lane.b32.xlu0 %v289, 4
      %v615 = vpop.permute.xlu0 %614
      %680 = vrot.lane.b32.xlu0 %v290, 8
      %v681 = vpop.permute.xlu0 %680
      %682 = vrot.lane.b32.xlu0 %v291, 8
      %v683 = vpop.permute.xlu0 %682
      %684 = vrot.lane.b32.xlu0 %v292, 8
      %v685 = vpop.permute.xlu0 %684
      %686 = vrot.lane.b32.xlu0 %v293, 8
      %v687 = vpop.permute.xlu0 %686
      %688 = vrot.lane.b32.xlu0 %v294, 8
      %v689 = vpop.permute.xlu0 %688
      %690 = vrot.lane.b32.xlu0 %v295, 8
      %v691 = vpop.permute.xlu0 %690
      %692 = vrot.lane.b32.xlu0 %v296, 8
      %v693 = vpop.permute.xlu0 %692
      %694 = vrot.lane.b32.xlu0 %v297, 8
      %v695 = vpop.permute.xlu0 %694
      %696 = vrot.lane.b32.xlu0 %v298, 8
      %v697 = vpop.permute.xlu0 %696
      %698 = vrot.lane.b32.xlu0 %v299, 8
      %v699 = vpop.permute.xlu0 %698
      %700 = vrot.lane.b32.xlu0 %v300, 8
      %v701 = vpop.permute.xlu0 %700
      %702 = vrot.lane.b32.xlu0 %v301, 8
      %v703 = vpop.permute.xlu0 %702
      %704 = vrot.lane.b32.xlu0 %v302, 8
      %v705 = vpop.permute.xlu0 %704
      %706 = vrot.lane.b32.xlu0 %v303, 8
      %v707 = vpop.permute.xlu0 %706
      %708 = vrot.lane.b32.xlu0 %v304, 8
      %v709 = vpop.permute.xlu0 %708
      %710 = vrot.lane.b32.xlu0 %v305, 8
      %v711 = vpop.permute.xlu0 %710
      %712 = vrot.lane.b32.xlu0 %v306, 8
      %v713 = vpop.permute.xlu0 %712
      %714 = vrot.lane.b32.xlu0 %v307, 8
      %v715 = vpop.permute.xlu0 %714
      %716 = vrot.lane.b32.xlu0 %v308, 8
      %v717 = vpop.permute.xlu0 %716
      %718 = vrot.lane.b32.xlu0 %v309, 8
      %v719 = vpop.permute.xlu0 %718
      %720 = vrot.lane.b32.xlu0 %v310, 8
      %v721 = vpop.permute.xlu0 %720
      %722 = vrot.lane.b32.xlu0 %v311, 8
      %v723 = vpop.permute.xlu0 %722
      %724 = vrot.lane.b32.xlu0 %v312, 8
      %v725 = vpop.permute.xlu0 %724
      %726 = vrot.lane.b32.xlu0 %v313, 8
      %v727 = vpop.permute.xlu0 %726
      %728 = vrot.lane.b32.xlu0 %v314, 8
      %v729 = vpop.permute.xlu0 %728
      %730 = vrot.lane.b32.xlu0 %v315, 8
      %v731 = vpop.permute.xlu0 %730
      %732 = vrot.lane.b32.xlu0 %v316, 8
      %v733 = vpop.permute.xlu0 %732
      %734 = vrot.lane.b32.xlu0 %v317, 8
      %v735 = vpop.permute.xlu0 %734
      %736 = vrot.lane.b32.xlu0 %v318, 8
      %v737 = vpop.permute.xlu0 %736
      %738 = vrot.lane.b32.xlu0 %v319, 8
      %v739 = vpop.permute.xlu0 %738
      %740 = vrot.lane.b32.xlu0 %v320, 8
      %v741 = vpop.permute.xlu0 %740
      %742 = vrot.lane.b32.xlu0 %v321, 8
      %v743 = vpop.permute.xlu0 %742
      %808 = vrot.lane.b32.xlu0 %v325, 12
      %v809 = vpop.permute.xlu0 %808
      %810 = vrot.lane.b32.xlu0 %v326, 12
      %v811 = vpop.permute.xlu0 %810
      %812 = vrot.lane.b32.xlu0 %v327, 12
      %v813 = vpop.permute.xlu0 %812
      %814 = vrot.lane.b32.xlu0 %v328, 12
      %v815 = vpop.permute.xlu0 %814
      %816 = vrot.lane.b32.xlu0 %v329, 12
      %v817 = vpop.permute.xlu0 %816
      %818 = vrot.lane.b32.xlu0 %v330, 12
      %v819 = vpop.permute.xlu0 %818
      %820 = vrot.lane.b32.xlu0 %v331, 12
      %v821 = vpop.permute.xlu0 %820
      %822 = vrot.lane.b32.xlu0 %v332, 12
      %v823 = vpop.permute.xlu0 %822
      %824 = vrot.lane.b32.xlu0 %v333, 12
      %v825 = vpop.permute.xlu0 %824
      %826 = vrot.lane.b32.xlu0 %v334, 12
      %v827 = vpop.permute.xlu0 %826
      %828 = vrot.lane.b32.xlu0 %v335, 12
      %v829 = vpop.permute.xlu0 %828
      %830 = vrot.lane.b32.xlu0 %v336, 12
      %v831 = vpop.permute.xlu0 %830
      %832 = vrot.lane.b32.xlu0 %v337, 12
      %v833 = vpop.permute.xlu0 %832
      %834 = vrot.lane.b32.xlu0 %v338, 12
      %v835 = vpop.permute.xlu0 %834
      %836 = vrot.lane.b32.xlu0 %v339, 12
      %v837 = vpop.permute.xlu0 %836
      %838 = vrot.lane.b32.xlu0 %v340, 12
      %v839 = vpop.permute.xlu0 %838
      %840 = vrot.lane.b32.xlu0 %v341, 12
      %v841 = vpop.permute.xlu0 %840
      %842 = vrot.lane.b32.xlu0 %v342, 12
      %v843 = vpop.permute.xlu0 %842
      %844 = vrot.lane.b32.xlu0 %v343, 12
      %v845 = vpop.permute.xlu0 %844
      %846 = vrot.lane.b32.xlu0 %v344, 12
      %v847 = vpop.permute.xlu0 %846
      %848 = vrot.lane.b32.xlu0 %v345, 12
      %v849 = vpop.permute.xlu0 %848
      %850 = vrot.lane.b32.xlu0 %v346, 12
      %v851 = vpop.permute.xlu0 %850
      %852 = vrot.lane.b32.xlu0 %v347, 12
      %v853 = vpop.permute.xlu0 %852
      %854 = vrot.lane.b32.xlu0 %v348, 12
      %v855 = vpop.permute.xlu0 %854
      %856 = vrot.lane.b32.xlu0 %v349, 12
      %v857 = vpop.permute.xlu0 %856
      %858 = vrot.lane.b32.xlu0 %v350, 12
      %v859 = vpop.permute.xlu0 %858
      %860 = vrot.lane.b32.xlu0 %v351, 12
      %v861 = vpop.permute.xlu0 %860
      %862 = vrot.lane.b32.xlu0 %v352, 12
      %v863 = vpop.permute.xlu0 %862
      %864 = vrot.lane.b32.xlu0 %v353, 12
      %v865 = vpop.permute.xlu0 %864
      %866 = vrot.lane.b32.xlu0 %v354, 12
      %v867 = vpop.permute.xlu0 %866
      %868 = vrot.lane.b32.xlu0 %v355, 12
      %v869 = vpop.permute.xlu0 %868
      %870 = vrot.lane.b32.xlu0 %v356, 12
      %v871 = vpop.permute.xlu0 %870
      %936 = vrot.lane.b32.xlu0 %v357, 16
      %v937 = vpop.permute.xlu0 %936
      %938 = vrot.lane.b32.xlu0 %v358, 16
      %v939 = vpop.permute.xlu0 %938
      %940 = vrot.lane.b32.xlu0 %v359, 16
      %v941 = vpop.permute.xlu0 %940
      %942 = vrot.lane.b32.xlu0 %v360, 16
      %v943 = vpop.permute.xlu0 %942
      %944 = vrot.lane.b32.xlu0 %v361, 16
      %v945 = vpop.permute.xlu0 %944
      %946 = vrot.lane.b32.xlu0 %v362, 16
      %v947 = vpop.permute.xlu0 %946
      %948 = vrot.lane.b32.xlu0 %v363, 16
      %v949 = vpop.permute.xlu0 %948
      %950 = vrot.lane.b32.xlu0 %v364, 16
      %v951 = vpop.permute.xlu0 %950
      %952 = vrot.lane.b32.xlu0 %v365, 16
      %v953 = vpop.permute.xlu0 %952
      %954 = vrot.lane.b32.xlu0 %v366, 16
      %v955 = vpop.permute.xlu0 %954
      %956 = vrot.lane.b32.xlu0 %v367, 16
      %v957 = vpop.permute.xlu0 %956
      %958 = vrot.lane.b32.xlu0 %v368, 16
      %v959 = vpop.permute.xlu0 %958
      %960 = vrot.lane.b32.xlu0 %v369, 16
      %v961 = vpop.permute.xlu0 %960
      %962 = vrot.lane.b32.xlu0 %v370, 16
      %v963 = vpop.permute.xlu0 %962
      %964 = vrot.lane.b32.xlu0 %v371, 16
      %v965 = vpop.permute.xlu0 %964
      %966 = vrot.lane.b32.xlu0 %v372, 16
      %v967 = vpop.permute.xlu0 %966
      %968 = vrot.lane.b32.xlu0 %v373, 16
      %v969 = vpop.permute.xlu0 %968
      %970 = vrot.lane.b32.xlu0 %v374, 16
      %v971 = vpop.permute.xlu0 %970
      %972 = vrot.lane.b32.xlu0 %v375, 16
      %v973 = vpop.permute.xlu0 %972
      %974 = vrot.lane.b32.xlu0 %v376, 16
      %v975 = vpop.permute.xlu0 %974
      %976 = vrot.lane.b32.xlu0 %v377, 16
      %v977 = vpop.permute.xlu0 %976
      %978 = vrot.lane.b32.xlu0 %v378, 16
      %v979 = vpop.permute.xlu0 %978
      %980 = vrot.lane.b32.xlu0 %v379, 16
      %v981 = vpop.permute.xlu0 %980
      %982 = vrot.lane.b32.xlu0 %v380, 16
      %v983 = vpop.permute.xlu0 %982
      %984 = vrot.lane.b32.xlu0 %v381, 16
      %v985 = vpop.permute.xlu0 %984
      %986 = vrot.lane.b32.xlu0 %v382, 16
      %v987 = vpop.permute.xlu0 %986
      %988 = vrot.lane.b32.xlu0 %v383, 16
      %v989 = vpop.permute.xlu0 %988
      %990 = vrot.lane.b32.xlu0 %v384, 16
      %v991 = vpop.permute.xlu0 %990
      %992 = vrot.lane.b32.xlu0 %v385, 16
      %v993 = vpop.permute.xlu0 %992
      %994 = vrot.lane.b32.xlu0 %v386, 16
      %v995 = vpop.permute.xlu0 %994
      %996 = vrot.lane.b32.xlu0 %v387, 16
      %v997 = vpop.permute.xlu0 %996
      %998 = vrot.lane.b32.xlu0 %v388, 16
      %v999 = vpop.permute.xlu0 %998
      %1064 = vrot.lane.b32.xlu0 %v389, 20
      %v1065 = vpop.permute.xlu0 %1064
      %1066 = vrot.lane.b32.xlu0 %v390, 20
      %v1067 = vpop.permute.xlu0 %1066
      %1068 = vrot.lane.b32.xlu0 %v391, 20
      %v1069 = vpop.permute.xlu0 %1068
      %1070 = vrot.lane.b32.xlu0 %v392, 20
      %v1071 = vpop.permute.xlu0 %1070
      %1072 = vrot.lane.b32.xlu0 %v393, 20
      %v1073 = vpop.permute.xlu0 %1072
      %1074 = vrot.lane.b32.xlu0 %v394, 20
      %v1075 = vpop.permute.xlu0 %1074
      %1076 = vrot.lane.b32.xlu0 %v395, 20
      %v1077 = vpop.permute.xlu0 %1076
      %1078 = vrot.lane.b32.xlu0 %v396, 20
      %v1079 = vpop.permute.xlu0 %1078
      %1080 = vrot.lane.b32.xlu0 %v397, 20
      %v1081 = vpop.permute.xlu0 %1080
      %1082 = vrot.lane.b32.xlu0 %v398, 20
      %v1083 = vpop.permute.xlu0 %1082
      %1084 = vrot.lane.b32.xlu0 %v399, 20
      %v1085 = vpop.permute.xlu0 %1084
      %1086 = vrot.lane.b32.xlu0 %v400, 20
      %v1087 = vpop.permute.xlu0 %1086
      %1088 = vrot.lane.b32.xlu0 %v401, 20
      %v1089 = vpop.permute.xlu0 %1088
      %1090 = vrot.lane.b32.xlu0 %v402, 20
      %v1091 = vpop.permute.xlu0 %1090
      %1092 = vrot.lane.b32.xlu0 %v403, 20
      %v1093 = vpop.permute.xlu0 %1092
      %1094 = vrot.lane.b32.xlu0 %v404, 20
      %v1095 = vpop.permute.xlu0 %1094
      %1096 = vrot.lane.b32.xlu0 %v405, 20
      %v1097 = vpop.permute.xlu0 %1096
      %1098 = vrot.lane.b32.xlu0 %v406, 20
      %v1099 = vpop.permute.xlu0 %1098
      %1100 = vrot.lane.b32.xlu0 %v407, 20
      %v1101 = vpop.permute.xlu0 %1100
      %1102 = vrot.lane.b32.xlu0 %v408, 20
      %v1103 = vpop.permute.xlu0 %1102
      %1104 = vrot.lane.b32.xlu0 %v409, 20
      %v1105 = vpop.permute.xlu0 %1104
      %1106 = vrot.lane.b32.xlu0 %v410, 20
      %v1107 = vpop.permute.xlu0 %1106
      %1108 = vrot.lane.b32.xlu0 %v411, 20
      %v1109 = vpop.permute.xlu0 %1108
      %1110 = vrot.lane.b32.xlu0 %v412, 20
      %v1111 = vpop.permute.xlu0 %1110
      %1112 = vrot.lane.b32.xlu0 %v413, 20
      %v1113 = vpop.permute.xlu0 %1112
      %1114 = vrot.lane.b32.xlu0 %v414, 20
      %v1115 = vpop.permute.xlu0 %1114
      %1116 = vrot.lane.b32.xlu0 %v415, 20
      %v1117 = vpop.permute.xlu0 %1116
      %1118 = vrot.lane.b32.xlu0 %v416, 20
      %v1119 = vpop.permute.xlu0 %1118
      %1120 = vrot.lane.b32.xlu0 %v417, 20
      %v1121 = vpop.permute.xlu0 %1120
      %1122 = vrot.lane.b32.xlu0 %v418, 20
      %v1123 = vpop.permute.xlu0 %1122
      %1124 = vrot.lane.b32.xlu0 %v419, 20
      %v1125 = vpop.permute.xlu0 %1124
      %1126 = vrot.lane.b32.xlu0 %v420, 20
      %v1127 = vpop.permute.xlu0 %1126
      %1192 = vrot.lane.b32.xlu0 %v424, 24
      %v1193 = vpop.permute.xlu0 %1192
      %1194 = vrot.lane.b32.xlu0 %v425, 24
      %v1195 = vpop.permute.xlu0 %1194
      %1196 = vrot.lane.b32.xlu0 %v426, 24
      %v1197 = vpop.permute.xlu0 %1196
      %1198 = vrot.lane.b32.xlu0 %v427, 24
      %v1199 = vpop.permute.xlu0 %1198
      %1200 = vrot.lane.b32.xlu0 %v428, 24
      %v1201 = vpop.permute.xlu0 %1200
      %1202 = vrot.lane.b32.xlu0 %v429, 24
      %v1203 = vpop.permute.xlu0 %1202
      %1204 = vrot.lane.b32.xlu0 %v430, 24
      %v1205 = vpop.permute.xlu0 %1204
      %1206 = vrot.lane.b32.xlu0 %v431, 24
      %v1207 = vpop.permute.xlu0 %1206
      %1208 = vrot.lane.b32.xlu0 %v432, 24
      %v1209 = vpop.permute.xlu0 %1208
      %1210 = vrot.lane.b32.xlu0 %v433, 24
      %v1211 = vpop.permute.xlu0 %1210
      %1212 = vrot.lane.b32.xlu0 %v434, 24
      %v1213 = vpop.permute.xlu0 %1212
      %1214 = vrot.lane.b32.xlu0 %v435, 24
      %v1215 = vpop.permute.xlu0 %1214
      %1216 = vrot.lane.b32.xlu0 %v436, 24
      %v1217 = vpop.permute.xlu0 %1216
      %1218 = vrot.lane.b32.xlu0 %v437, 24
      %v1219 = vpop.permute.xlu0 %1218
      %1220 = vrot.lane.b32.xlu0 %v438, 24
      %v1221 = vpop.permute.xlu0 %1220
      %1222 = vrot.lane.b32.xlu0 %v439, 24
      %v1223 = vpop.permute.xlu0 %1222
      %1224 = vrot.lane.b32.xlu0 %v440, 24
      %v1225 = vpop.permute.xlu0 %1224
      %1226 = vrot.lane.b32.xlu0 %v441, 24
      %v1227 = vpop.permute.xlu0 %1226
      %1228 = vrot.lane.b32.xlu0 %v442, 24
      %v1229 = vpop.permute.xlu0 %1228
      %1230 = vrot.lane.b32.xlu0 %v443, 24
      %v1231 = vpop.permute.xlu0 %1230
      %1232 = vrot.lane.b32.xlu0 %v444, 24
      %v1233 = vpop.permute.xlu0 %1232
      %1234 = vrot.lane.b32.xlu0 %v445, 24
      %v1235 = vpop.permute.xlu0 %1234
      %1236 = vrot.lane.b32.xlu0 %v446, 24
      %v1237 = vpop.permute.xlu0 %1236
      %1238 = vrot.lane.b32.xlu0 %v447, 24
      %v1239 = vpop.permute.xlu0 %1238
      %1240 = vrot.lane.b32.xlu0 %v448, 24
      %v1241 = vpop.permute.xlu0 %1240
      %1242 = vrot.lane.b32.xlu0 %v449, 24
      %v1243 = vpop.permute.xlu0 %1242
      %1244 = vrot.lane.b32.xlu0 %v450, 24
      %v1245 = vpop.permute.xlu0 %1244
      %1246 = vrot.lane.b32.xlu0 %v451, 24
      %v1247 = vpop.permute.xlu0 %1246
      %1248 = vrot.lane.b32.xlu0 %v452, 24
      %v1249 = vpop.permute.xlu0 %1248
      %1250 = vrot.lane.b32.xlu0 %v453, 24
      %v1251 = vpop.permute.xlu0 %1250
      %1252 = vrot.lane.b32.xlu0 %v454, 24
      %v1253 = vpop.permute.xlu0 %1252
      %1254 = vrot.lane.b32.xlu0 %v455, 24
      %v1255 = vpop.permute.xlu0 %1254
      %1320 = vrot.lane.b32.xlu0 %v456, 28
      %v1321 = vpop.permute.xlu0 %1320
      %1322 = vrot.lane.b32.xlu0 %v457, 28
      %v1323 = vpop.permute.xlu0 %1322
      %1324 = vrot.lane.b32.xlu0 %v458, 28
      %v1325 = vpop.permute.xlu0 %1324
      %1326 = vrot.lane.b32.xlu0 %v459, 28
      %v1327 = vpop.permute.xlu0 %1326
      %1328 = vrot.lane.b32.xlu0 %v460, 28
      %v1329 = vpop.permute.xlu0 %1328
      %1330 = vrot.lane.b32.xlu0 %v461, 28
      %v1331 = vpop.permute.xlu0 %1330
      %1332 = vrot.lane.b32.xlu0 %v462, 28
      %v1333 = vpop.permute.xlu0 %1332
      %1334 = vrot.lane.b32.xlu0 %v463, 28
      %v1335 = vpop.permute.xlu0 %1334
      %1336 = vrot.lane.b32.xlu0 %v464, 28
      %v1337 = vpop.permute.xlu0 %1336
      %1338 = vrot.lane.b32.xlu0 %v465, 28
      %v1339 = vpop.permute.xlu0 %1338
      %1340 = vrot.lane.b32.xlu0 %v466, 28
      %v1341 = vpop.permute.xlu0 %1340
      %1342 = vrot.lane.b32.xlu0 %v467, 28
      %v1343 = vpop.permute.xlu0 %1342
      %1344 = vrot.lane.b32.xlu0 %v468, 28
      %v1345 = vpop.permute.xlu0 %1344
      %1346 = vrot.lane.b32.xlu0 %v469, 28
      %v1347 = vpop.permute.xlu0 %1346
      %1348 = vrot.lane.b32.xlu0 %v470, 28
      %v1349 = vpop.permute.xlu0 %1348
      %1350 = vrot.lane.b32.xlu0 %v471, 28
      %v1351 = vpop.permute.xlu0 %1350
      %1352 = vrot.lane.b32.xlu0 %v472, 28
      %v1353 = vpop.permute.xlu0 %1352
      %1354 = vrot.lane.b32.xlu0 %v473, 28
      %v1355 = vpop.permute.xlu0 %1354
      %1356 = vrot.lane.b32.xlu0 %v474, 28
      %v1357 = vpop.permute.xlu0 %1356
      %1358 = vrot.lane.b32.xlu0 %v475, 28
      %v1359 = vpop.permute.xlu0 %1358
      %1360 = vrot.lane.b32.xlu0 %v476, 28
      %v1361 = vpop.permute.xlu0 %1360
      %1362 = vrot.lane.b32.xlu0 %v477, 28
      %v1363 = vpop.permute.xlu0 %1362
      %1364 = vrot.lane.b32.xlu0 %v478, 28
      %v1365 = vpop.permute.xlu0 %1364
      %1366 = vrot.lane.b32.xlu0 %v479, 28
      %v1367 = vpop.permute.xlu0 %1366
      %1368 = vrot.lane.b32.xlu0 %v480, 28
      %v1369 = vpop.permute.xlu0 %1368
      %1370 = vrot.lane.b32.xlu0 %v481, 28
      %v1371 = vpop.permute.xlu0 %1370
      %1372 = vrot.lane.b32.xlu0 %v482, 28
      %v1373 = vpop.permute.xlu0 %1372
      %1374 = vrot.lane.b32.xlu0 %v483, 28
      %v1375 = vpop.permute.xlu0 %1374
      %1376 = vrot.lane.b32.xlu0 %v484, 28
      %v1377 = vpop.permute.xlu0 %1376
      %1378 = vrot.lane.b32.xlu0 %v485, 28
      %v1379 = vpop.permute.xlu0 %1378
      %1380 = vrot.lane.b32.xlu0 %v486, 28
      %v1381 = vpop.permute.xlu0 %1380
      %1382 = vrot.lane.b32.xlu0 %v487, 28
      %v1383 = vpop.permute.xlu0 %1382
      %1448 = vrot.lane.b32.xlu0 %v488, 32
      %v1449 = vpop.permute.xlu0 %1448
      %1450 = vrot.lane.b32.xlu0 %v489, 32
      %v1451 = vpop.permute.xlu0 %1450
      %1452 = vrot.lane.b32.xlu0 %v490, 32
      %v1453 = vpop.permute.xlu0 %1452
      %1454 = vrot.lane.b32.xlu0 %v491, 32
      %v1455 = vpop.permute.xlu0 %1454
      %1456 = vrot.lane.b32.xlu0 %v492, 32
      %v1457 = vpop.permute.xlu0 %1456
      %1458 = vrot.lane.b32.xlu0 %v493, 32
      %v1459 = vpop.permute.xlu0 %1458
      %1460 = vrot.lane.b32.xlu0 %v494, 32
      %v1461 = vpop.permute.xlu0 %1460
      %1462 = vrot.lane.b32.xlu0 %v495, 32
      %v1463 = vpop.permute.xlu0 %1462
      %1464 = vrot.lane.b32.xlu0 %v496, 32
      %v1465 = vpop.permute.xlu0 %1464
      %1466 = vrot.lane.b32.xlu0 %v497, 32
      %v1467 = vpop.permute.xlu0 %1466
      %1468 = vrot.lane.b32.xlu0 %v498, 32
      %v1469 = vpop.permute.xlu0 %1468
      %1470 = vrot.lane.b32.xlu0 %v499, 32
      %v1471 = vpop.permute.xlu0 %1470
      %1472 = vrot.lane.b32.xlu0 %v500, 32
      %v1473 = vpop.permute.xlu0 %1472
      %1474 = vrot.lane.b32.xlu0 %v501, 32
      %v1475 = vpop.permute.xlu0 %1474
      %1476 = vrot.lane.b32.xlu0 %v502, 32
      %v1477 = vpop.permute.xlu0 %1476
      %1478 = vrot.lane.b32.xlu0 %v503, 32
      %v1479 = vpop.permute.xlu0 %1478
      %1480 = vrot.lane.b32.xlu0 %v504, 32
      %v1481 = vpop.permute.xlu0 %1480
      %1482 = vrot.lane.b32.xlu0 %v505, 32
      %v1483 = vpop.permute.xlu0 %1482
      %1484 = vrot.lane.b32.xlu0 %v506, 32
      %v1485 = vpop.permute.xlu0 %1484
      %1486 = vrot.lane.b32.xlu0 %v507, 32
      %v1487 = vpop.permute.xlu0 %1486
      %1488 = vrot.lane.b32.xlu0 %v508, 32
      %v1489 = vpop.permute.xlu0 %1488
      %1490 = vrot.lane.b32.xlu0 %v509, 32
      %v1491 = vpop.permute.xlu0 %1490
      %1492 = vrot.lane.b32.xlu0 %v510, 32
      %v1493 = vpop.permute.xlu0 %1492
      %1494 = vrot.lane.b32.xlu0 %v511, 32
      %v1495 = vpop.permute.xlu0 %1494
      %1496 = vrot.lane.b32.xlu0 %v512, 32
      %v1497 = vpop.permute.xlu0 %1496
      %1498 = vrot.lane.b32.xlu0 %v513, 32
      %v1499 = vpop.permute.xlu0 %1498
      %1500 = vrot.lane.b32.xlu0 %v514, 32
      %v1501 = vpop.permute.xlu0 %1500
      %1502 = vrot.lane.b32.xlu0 %v515, 32
      %v1503 = vpop.permute.xlu0 %1502
      %1504 = vrot.lane.b32.xlu0 %v516, 32
      %v1505 = vpop.permute.xlu0 %1504
      %1506 = vrot.lane.b32.xlu0 %v517, 32
      %v1507 = vpop.permute.xlu0 %1506
      %1508 = vrot.lane.b32.xlu0 %v518, 32
      %v1509 = vpop.permute.xlu0 %1508
      %1510 = vrot.lane.b32.xlu0 %v519, 32
      %v1511 = vpop.permute.xlu0 %1510
      %vm1544 = vcmask 31744
      %v1545 = vsel %vm1544, %v226, %v553
      %v1546 = vsel %vm1544, %v227, %v555
      %v1547 = vsel %vm1544, %v228, %v557
      %v1548 = vsel %vm1544, %v229, %v559
      %v1549 = vsel %vm1544, %v230, %v561
      %v1550 = vsel %vm1544, %v231, %v563
      %v1551 = vsel %vm1544, %v232, %v565
      %v1552 = vsel %vm1544, %v233, %v567
      %v1553 = vsel %vm1544, %v234, %v569
      %v1554 = vsel %vm1544, %v235, %v571
      %v1555 = vsel %vm1544, %v236, %v573
      %v1556 = vsel %vm1544, %v237, %v575
      %v1557 = vsel %vm1544, %v238, %v577
      %v1558 = vsel %vm1544, %v239, %v579
      %v1559 = vsel %vm1544, %v240, %v581
      %v1560 = vsel %vm1544, %v241, %v583
      %v1561 = vsel %vm1544, %v242, %v585
      %v1562 = vsel %vm1544, %v243, %v587
      %v1563 = vsel %vm1544, %v244, %v589
      %v1564 = vsel %vm1544, %v245, %v591
      %v1565 = vsel %vm1544, %v246, %v593
      %v1566 = vsel %vm1544, %v247, %v595
      %v1567 = vsel %vm1544, %v248, %v597
      %v1568 = vsel %vm1544, %v249, %v599
      %v1569 = vsel %vm1544, %v250, %v601
      %v1570 = vsel %vm1544, %v251, %v603
      %v1571 = vsel %vm1544, %v252, %v605
      %v1572 = vsel %vm1544, %v253, %v607
      %v1573 = vsel %vm1544, %v254, %v609
      %v1574 = vsel %vm1544, %v255, %v611
      %v1575 = vsel %vm1544, %v256, %v613
      %v1576 = vsel %vm1544, %v257, %v615
      %vm1577 = vcmask 64512
      %v1578 = vsel %vm1577, %v1545, %v681
      %v1579 = vsel %vm1577, %v1546, %v683
      %v1580 = vsel %vm1577, %v1547, %v685
      %v1581 = vsel %vm1577, %v1548, %v687
      %v1582 = vsel %vm1577, %v1549, %v689
      %v1583 = vsel %vm1577, %v1550, %v691
      %v1584 = vsel %vm1577, %v1551, %v693
      %v1585 = vsel %vm1577, %v1552, %v695
      %v1586 = vsel %vm1577, %v1553, %v697
      %v1587 = vsel %vm1577, %v1554, %v699
      %v1588 = vsel %vm1577, %v1555, %v701
      %v1589 = vsel %vm1577, %v1556, %v703
      %v1590 = vsel %vm1577, %v1557, %v705
      %v1591 = vsel %vm1577, %v1558, %v707
      %v1592 = vsel %vm1577, %v1559, %v709
      %v1593 = vsel %vm1577, %v1560, %v711
      %v1594 = vsel %vm1577, %v1561, %v713
      %v1595 = vsel %vm1577, %v1562, %v715
      %v1596 = vsel %vm1577, %v1563, %v717
      %v1597 = vsel %vm1577, %v1564, %v719
      %v1598 = vsel %vm1577, %v1565, %v721
      %v1599 = vsel %vm1577, %v1566, %v723
      %v1600 = vsel %vm1577, %v1567, %v725
      %v1601 = vsel %vm1577, %v1568, %v727
      %v1602 = vsel %vm1577, %v1569, %v729
      %v1603 = vsel %vm1577, %v1570, %v731
      %v1604 = vsel %vm1577, %v1571, %v733
      %v1605 = vsel %vm1577, %v1572, %v735
      %v1606 = vsel %vm1577, %v1573, %v737
      %v1607 = vsel %vm1577, %v1574, %v739
      %v1608 = vsel %vm1577, %v1575, %v741
      %v1609 = vsel %vm1577, %v1576, %v743
      %vm1610 = vcmask 97280
      %v1611 = vsel %vm1610, %v1578, %v809
      %v1612 = vsel %vm1610, %v1579, %v811
      %v1613 = vsel %vm1610, %v1580, %v813
      %v1614 = vsel %vm1610, %v1581, %v815
      %v1615 = vsel %vm1610, %v1582, %v817
      %v1616 = vsel %vm1610, %v1583, %v819
      %v1617 = vsel %vm1610, %v1584, %v821
      %v1618 = vsel %vm1610, %v1585, %v823
      %v1619 = vsel %vm1610, %v1586, %v825
      %v1620 = vsel %vm1610, %v1587, %v827
      %v1621 = vsel %vm1610, %v1588, %v829
      %v1622 = vsel %vm1610, %v1589, %v831
      %v1623 = vsel %vm1610, %v1590, %v833
      %v1624 = vsel %vm1610, %v1591, %v835
      %v1625 = vsel %vm1610, %v1592, %v837
      %v1626 = vsel %vm1610, %v1593, %v839
      %v1627 = vsel %vm1610, %v1594, %v841
      %v1628 = vsel %vm1610, %v1595, %v843
      %v1629 = vsel %vm1610, %v1596, %v845
      %v1630 = vsel %vm1610, %v1597, %v847
      %v1631 = vsel %vm1610, %v1598, %v849
      %v1632 = vsel %vm1610, %v1599, %v851
      %v1633 = vsel %vm1610, %v1600, %v853
      %v1634 = vsel %vm1610, %v1601, %v855
      %v1635 = vsel %vm1610, %v1602, %v857
      %v1636 = vsel %vm1610, %v1603, %v859
      %v1637 = vsel %vm1610, %v1604, %v861
      %v1638 = vsel %vm1610, %v1605, %v863
      %v1639 = vsel %vm1610, %v1606, %v865
      %v1640 = vsel %vm1610, %v1607, %v867
      %v1641 = vsel %vm1610, %v1608, %v869
      %v1642 = vsel %vm1610, %v1609, %v871
      %vm1643 = vcmask 130048
      %v1644 = vsel %vm1643, %v1611, %v937
      %v1645 = vsel %vm1643, %v1612, %v939
      %v1646 = vsel %vm1643, %v1613, %v941
      %v1647 = vsel %vm1643, %v1614, %v943
      %v1648 = vsel %vm1643, %v1615, %v945
      %v1649 = vsel %vm1643, %v1616, %v947
      %v1650 = vsel %vm1643, %v1617, %v949
      %v1651 = vsel %vm1643, %v1618, %v951
      %v1652 = vsel %vm1643, %v1619, %v953
      %v1653 = vsel %vm1643, %v1620, %v955
      %v1654 = vsel %vm1643, %v1621, %v957
      %v1655 = vsel %vm1643, %v1622, %v959
      %v1656 = vsel %vm1643, %v1623, %v961
      %v1657 = vsel %vm1643, %v1624, %v963
      %v1658 = vsel %vm1643, %v1625, %v965
      %v1659 = vsel %vm1643, %v1626, %v967
      %v1660 = vsel %vm1643, %v1627, %v969
      %v1661 = vsel %vm1643, %v1628, %v971
      %v1662 = vsel %vm1643, %v1629, %v973
      %v1663 = vsel %vm1643, %v1630, %v975
      %v1664 = vsel %vm1643, %v1631, %v977
      %v1665 = vsel %vm1643, %v1632, %v979
      %v1666 = vsel %vm1643, %v1633, %v981
      %v1667 = vsel %vm1643, %v1634, %v983
      %v1668 = vsel %vm1643, %v1635, %v985
      %v1669 = vsel %vm1643, %v1636, %v987
      %v1670 = vsel %vm1643, %v1637, %v989
      %v1671 = vsel %vm1643, %v1638, %v991
      %v1672 = vsel %vm1643, %v1639, %v993
      %v1673 = vsel %vm1643, %v1640, %v995
      %v1674 = vsel %vm1643, %v1641, %v997
      %v1675 = vsel %vm1643, %v1642, %v999
      %vm1676 = vcmask 162816
      %v1677 = vsel %vm1676, %v1644, %v1065
      %v1678 = vsel %vm1676, %v1645, %v1067
      %v1679 = vsel %vm1676, %v1646, %v1069
      %v1680 = vsel %vm1676, %v1647, %v1071
      %v1681 = vsel %vm1676, %v1648, %v1073
      %v1682 = vsel %vm1676, %v1649, %v1075
      %v1683 = vsel %vm1676, %v1650, %v1077
      %v1684 = vsel %vm1676, %v1651, %v1079
      %v1685 = vsel %vm1676, %v1652, %v1081
      %v1686 = vsel %vm1676, %v1653, %v1083
      %v1687 = vsel %vm1676, %v1654, %v1085
      %v1688 = vsel %vm1676, %v1655, %v1087
      %v1689 = vsel %vm1676, %v1656, %v1089
      %v1690 = vsel %vm1676, %v1657, %v1091
      %v1691 = vsel %vm1676, %v1658, %v1093
      %v1692 = vsel %vm1676, %v1659, %v1095
      %v1693 = vsel %vm1676, %v1660, %v1097
      %v1694 = vsel %vm1676, %v1661, %v1099
      %v1695 = vsel %vm1676, %v1662, %v1101
      %v1696 = vsel %vm1676, %v1663, %v1103
      %v1697 = vsel %vm1676, %v1664, %v1105
      %v1698 = vsel %vm1676, %v1665, %v1107
      %v1699 = vsel %vm1676, %v1666, %v1109
      %v1700 = vsel %vm1676, %v1667, %v1111
      %v1701 = vsel %vm1676, %v1668, %v1113
      %v1702 = vsel %vm1676, %v1669, %v1115
      %v1703 = vsel %vm1676, %v1670, %v1117
      %v1704 = vsel %vm1676, %v1671, %v1119
      %v1705 = vsel %vm1676, %v1672, %v1121
      %v1706 = vsel %vm1676, %v1673, %v1123
      %v1707 = vsel %vm1676, %v1674, %v1125
      %v1708 = vsel %vm1676, %v1675, %v1127
      %vm1709 = vcmask 195584
      %v1710 = vsel %vm1709, %v1677, %v1193
      %v1711 = vsel %vm1709, %v1678, %v1195
      %v1712 = vsel %vm1709, %v1679, %v1197
      %v1713 = vsel %vm1709, %v1680, %v1199
      %v1714 = vsel %vm1709, %v1681, %v1201
      %v1715 = vsel %vm1709, %v1682, %v1203
      %v1716 = vsel %vm1709, %v1683, %v1205
      %v1717 = vsel %vm1709, %v1684, %v1207
      %v1718 = vsel %vm1709, %v1685, %v1209
      %v1719 = vsel %vm1709, %v1686, %v1211
      %v1720 = vsel %vm1709, %v1687, %v1213
      %v1721 = vsel %vm1709, %v1688, %v1215
      %v1722 = vsel %vm1709, %v1689, %v1217
      %v1723 = vsel %vm1709, %v1690, %v1219
      %v1724 = vsel %vm1709, %v1691, %v1221
      %v1725 = vsel %vm1709, %v1692, %v1223
      %v1726 = vsel %vm1709, %v1693, %v1225
      %v1727 = vsel %vm1709, %v1694, %v1227
      %v1728 = vsel %vm1709, %v1695, %v1229
      %v1729 = vsel %vm1709, %v1696, %v1231
      %v1730 = vsel %vm1709, %v1697, %v1233
      %v1731 = vsel %vm1709, %v1698, %v1235
      %v1732 = vsel %vm1709, %v1699, %v1237
      %v1733 = vsel %vm1709, %v1700, %v1239
      %v1734 = vsel %vm1709, %v1701, %v1241
      %v1735 = vsel %vm1709, %v1702, %v1243
      %v1736 = vsel %vm1709, %v1703, %v1245
      %v1737 = vsel %vm1709, %v1704, %v1247
      %v1738 = vsel %vm1709, %v1705, %v1249
      %v1739 = vsel %vm1709, %v1706, %v1251
      %v1740 = vsel %vm1709, %v1707, %v1253
      %v1741 = vsel %vm1709, %v1708, %v1255
      %vm1742 = vcmask 228352
      %v1743 = vsel %vm1742, %v1710, %v1321
      %v1744 = vsel %vm1742, %v1711, %v1323
      %v1745 = vsel %vm1742, %v1712, %v1325
      %v1746 = vsel %vm1742, %v1713, %v1327
      %v1747 = vsel %vm1742, %v1714, %v1329
      %v1748 = vsel %vm1742, %v1715, %v1331
      %v1749 = vsel %vm1742, %v1716, %v1333
      %v1750 = vsel %vm1742, %v1717, %v1335
      %v1751 = vsel %vm1742, %v1718, %v1337
      %v1752 = vsel %vm1742, %v1719, %v1339
      %v1753 = vsel %vm1742, %v1720, %v1341
      %v1754 = vsel %vm1742, %v1721, %v1343
      %v1755 = vsel %vm1742, %v1722, %v1345
      %v1756 = vsel %vm1742, %v1723, %v1347
      %v1757 = vsel %vm1742, %v1724, %v1349
      %v1758 = vsel %vm1742, %v1725, %v1351
      %v1759 = vsel %vm1742, %v1726, %v1353
      %v1760 = vsel %vm1742, %v1727, %v1355
      %v1761 = vsel %vm1742, %v1728, %v1357
      %v1762 = vsel %vm1742, %v1729, %v1359
      %v1763 = vsel %vm1742, %v1730, %v1361
      %v1764 = vsel %vm1742, %v1731, %v1363
      %v1765 = vsel %vm1742, %v1732, %v1365
      %v1766 = vsel %vm1742, %v1733, %v1367
      %v1767 = vsel %vm1742, %v1734, %v1369
      %v1768 = vsel %vm1742, %v1735, %v1371
      %v1769 = vsel %vm1742, %v1736, %v1373
      %v1770 = vsel %vm1742, %v1737, %v1375
      %v1771 = vsel %vm1742, %v1738, %v1377
      %v1772 = vsel %vm1742, %v1739, %v1379
      %v1773 = vsel %vm1742, %v1740, %v1381
      %v1774 = vsel %vm1742, %v1741, %v1383
      %vm1775 = vcmask 261120
      %v1776 = vsel %vm1775, %v1743, %v1449
      %v1777 = vsel %vm1775, %v1744, %v1451
      %v1778 = vsel %vm1775, %v1745, %v1453
      %v1779 = vsel %vm1775, %v1746, %v1455
      %v1780 = vsel %vm1775, %v1747, %v1457
      %v1781 = vsel %vm1775, %v1748, %v1459
      %v1782 = vsel %vm1775, %v1749, %v1461
      %v1783 = vsel %vm1775, %v1750, %v1463
      %v1784 = vsel %vm1775, %v1751, %v1465
      %v1785 = vsel %vm1775, %v1752, %v1467
      %v1786 = vsel %vm1775, %v1753, %v1469
      %v1787 = vsel %vm1775, %v1754, %v1471
      %v1788 = vsel %vm1775, %v1755, %v1473
      %v1789 = vsel %vm1775, %v1756, %v1475
      %v1790 = vsel %vm1775, %v1757, %v1477
      %v1791 = vsel %vm1775, %v1758, %v1479
      %v1792 = vsel %vm1775, %v1759, %v1481
      %v1793 = vsel %vm1775, %v1760, %v1483
      %v1794 = vsel %vm1775, %v1761, %v1485
      %v1795 = vsel %vm1775, %v1762, %v1487
      %v1796 = vsel %vm1775, %v1763, %v1489
      %v1797 = vsel %vm1775, %v1764, %v1491
      %v1798 = vsel %vm1775, %v1765, %v1493
      %v1799 = vsel %vm1775, %v1766, %v1495
      %v1800 = vsel %vm1775, %v1767, %v1497
      %v1801 = vsel %vm1775, %v1768, %v1499
      %v1802 = vsel %vm1775, %v1769, %v1501
      %v1803 = vsel %vm1775, %v1770, %v1503
      %v1804 = vsel %vm1775, %v1771, %v1505
      %v1805 = vsel %vm1775, %v1772, %v1507
      %v1806 = vsel %vm1775, %v1773, %v1509
      %v1807 = vsel %vm1775, %v1774, %v1511
      %v1808 = vld [vmem:[%s1] sm:$0xff]
      %v1809 = vld [vmem:[%s1 + $0x8] sm:$0xff]
      %v1810 = vld [vmem:[%s1 + $0x10] sm:$0xff]
      %v1811 = vld [vmem:[%s1 + $0x18] sm:$0xff]
      %v1812 = vld [vmem:[%s1 + $0x20] sm:$0xf]
      %vm1813 = vcmask 293888
      %v1815 = vsel %vm1813, %v1776, 0
      %v1818 = vsel %vm1813, %v1777, 0
      %v1821 = vsel %vm1813, %v1778, 0
      %v1824 = vsel %vm1813, %v1779, 0
      %v1827 = vsel %vm1813, %v1780, 0
      %v1830 = vsel %vm1813, %v1781, 0
      %v1833 = vsel %vm1813, %v1782, 0
      %v1836 = vsel %vm1813, %v1783, 0
      %v1839 = vsel %vm1813, %v1784, 0
      %v1842 = vsel %vm1813, %v1785, 0
      %v1845 = vsel %vm1813, %v1786, 0
      %v1848 = vsel %vm1813, %v1787, 0
      %v1851 = vsel %vm1813, %v1788, 0
      %v1854 = vsel %vm1813, %v1789, 0
      %v1857 = vsel %vm1813, %v1790, 0
      %v1860 = vsel %vm1813, %v1791, 0
      %v1863 = vsel %vm1813, %v1792, 0
      %v1866 = vsel %vm1813, %v1793, 0
      %v1869 = vsel %vm1813, %v1794, 0
      %v1872 = vsel %vm1813, %v1795, 0
      %v1875 = vsel %vm1813, %v1796, 0
      %v1878 = vsel %vm1813, %v1797, 0
      %v1881 = vsel %vm1813, %v1798, 0
      %v1884 = vsel %vm1813, %v1799, 0
      %v1887 = vsel %vm1813, %v1800, 0
      %v1890 = vsel %vm1813, %v1801, 0
      %v1893 = vsel %vm1813, %v1802, 0
      %v1896 = vsel %vm1813, %v1803, 0
      %v1899 = vsel %vm1813, %v1804, 0
      %v1902 = vsel %vm1813, %v1805, 0
      %v1905 = vsel %vm1813, %v1806, 0
      %v1908 = vsel %vm1813, %v1807, 0
      %vm1910 = vcmask 1043456
      %v1912 = vsel %vm1910, %v1812, 0
      %1914 = vmatprep.subr.mxu0 0.0
      %1915 = vmatpush1.msra.mxu0 %v1808
      %1916 = vmatprep.subr.mxu0 0.0
      %1917 = vmatpush1.msra.mxu0 %v1809
      %1918 = vmatprep.subr.mxu0 0.0
      %1919 = vmatpush1.msra.mxu0 %v1810
      %1920 = vmatprep.subr.mxu0 0.0
      %1921 = vmatpush1.msra.mxu0 %v1811
      %1922 = vmatprep.subr.mxu0 0.0
      %1923 = vmatpush1.msra.mxu0 %v1912
      %1924 = vmatprep.subr.mxu0 0.0
      %1925 = vmatpush1.msra.mxu0 0.0
      %1926 = vmatprep.subr.mxu0 0.0
      %1927 = vmatpush1.msra.mxu0 0.0
      %1928 = vmatprep.subr.mxu0 0.0
      %1929 = vmatpush1.msra.mxu0 0.0
      %1930 = vmatprep.subr.mxu0 0.0
      %1931 = vmatpush1.msra.mxu0 0.0
      %1932 = vmatprep.subr.mxu0 0.0
      %1933 = vmatpush1.msra.mxu0 0.0
      %1934 = vmatprep.subr.mxu0 0.0
      %1935 = vmatpush1.msra.mxu0 0.0
      %1936 = vmatprep.subr.mxu0 0.0
      %1937 = vmatpush1.msra.mxu0 0.0
      %1938 = vmatprep.subr.mxu0 0.0
      %1939 = vmatpush1.msra.mxu0 0.0
      %1940 = vmatprep.subr.mxu0 0.0
      %1941 = vmatpush1.msra.mxu0 0.0
      %1942 = vmatprep.subr.mxu0 0.0
      %1943 = vmatpush1.msra.mxu0 0.0
      %1944 = vmatprep.subr.mxu0 0.0
      %1945 = vmatpush1.msra.mxu0 0.0
      %1946 = vmatprep.subr.mxu0 0.0
      %1947 = vmatpush1.msra.mxu0 0.0
      %1948 = vmatprep.subr.mxu0 0.0
      %1949 = vmatpush1.msra.mxu0 0.0
      %1950 = vmatprep.subr.mxu0 0.0
      %1951 = vmatpush1.msra.mxu0 0.0
      %1952 = vmatprep.subr.mxu0 0.0
      %1953 = vmatpush1.msra.mxu0 0.0
      %1954 = vmatprep.subr.mxu0 0.0
      %1955 = vmatpush1.msra.mxu0 0.0
      %1956 = vmatprep.subr.mxu0 0.0
      %1957 = vmatpush1.msra.mxu0 0.0
      %1958 = vmatprep.subr.mxu0 0.0
      %1959 = vmatpush1.msra.mxu0 0.0
      %1960 = vmatprep.subr.mxu0 0.0
      %1961 = vmatpush1.msra.mxu0 0.0
      %1962 = vmatprep.subr.mxu0 0.0
      %1963 = vmatpush1.msra.mxu0 0.0
      %1964 = vmatprep.subr.mxu0 0.0
      %1965 = vmatpush1.msra.mxu0 0.0
      %1966 = vmatprep.subr.mxu0 0.0
      %1967 = vmatpush1.msra.mxu0 0.0
      %1968 = vmatprep.subr.mxu0 0.0
      %1969 = vmatpush1.msra.mxu0 0.0
      %1970 = vmatprep.subr.mxu0 0.0
      %1971 = vmatpush1.msra.mxu0 0.0
      %1972 = vmatprep.subr.mxu0 0.0
      %1973 = vmatpush1.msra.mxu0 0.0
      %1974 = vmatprep.subr.mxu0 0.0
      %1975 = vmatpush1.msra.mxu0 0.0
      %1976 = vmatprep.subr.mxu0 0.0
      %1977 = vmatpush1.msra.mxu0 0.0
      %1978 = vmatprep.mubr.f32.mxu0 0.0
      %1979 = vmatmul.mubr.f32.gmra.mrb[0].mxu0 %v1815
      %v1980 = vpop.f32.mrb[0].mxu0
      %v1981 = vadd.f32 0.0, %v1980
      %v1982 = vpop.f32.mrb[0].mxu0
      %1983 = vmatprep.mubr.f32.mxu0 0.0
      %1984 = vmatmul.mubr.f32.gmra.mrb[0].mxu0 %v1818
      %v1985 = vpop.f32.mrb[0].mxu0
      %v1986 = vadd.f32 0.0, %v1985
      %v1987 = vpop.f32.mrb[0].mxu0
      %1988 = vmatprep.mubr.f32.mxu0 0.0
      %1989 = vmatmul.mubr.f32.gmra.mrb[0].mxu0 %v1821
      %v1990 = vpop.f32.mrb[0].mxu0
      %v1991 = vadd.f32 0.0, %v1990
      %v1992 = vpop.f32.mrb[0].mxu0
      %1993 = vmatprep.mubr.f32.mxu0 0.0
      %1994 = vmatmul.mubr.f32.gmra.mrb[0].mxu0 %v1824
      %v1995 = vpop.f32.mrb[0].mxu0
      %v1996 = vadd.f32 0.0, %v1995
      %v1997 = vpop.f32.mrb[0].mxu0
      %1998 = vmatprep.mubr.f32.mxu0 0.0
      %1999 = vmatmul.mubr.f32.gmra.mrb[0].mxu0 %v1827
      %v2000 = vpop.f32.mrb[0].mxu0
      %v2001 = vadd.f32 0.0, %v2000
      %v2002 = vpop.f32.mrb[0].mxu0
      %2003 = vmatprep.mubr.f32.mxu0 0.0
      %2004 = vmatmul.mubr.f32.gmra.mrb[0].mxu0 %v1830
      %v2005 = vpop.f32.mrb[0].mxu0
      %v2006 = vadd.f32 0.0, %v2005
      %v2007 = vpop.f32.mrb[0].mxu0
      %2008 = vmatprep.mubr.f32.mxu0 0.0
      %2009 = vmatmul.mubr.f32.gmra.mrb[0].mxu0 %v1833
      %v2010 = vpop.f32.mrb[0].mxu0
      %v2011 = vadd.f32 0.0, %v2010
      %v2012 = vpop.f32.mrb[0].mxu0
      %2013 = vmatprep.mubr.f32.mxu0 0.0
      %2014 = vmatmul.mubr.f32.gmra.mrb[0].mxu0 %v1836
      %v2015 = vpop.f32.mrb[0].mxu0
      %v2016 = vadd.f32 0.0, %v2015
      %v2017 = vpop.f32.mrb[0].mxu0
      %2018 = vmatprep.mubr.f32.mxu0 0.0
      %2019 = vmatmul.mubr.f32.gmra.mrb[0].mxu0 %v1839
      %v2020 = vpop.f32.mrb[0].mxu0
      %v2021 = vadd.f32 0.0, %v2020
      %v2022 = vpop.f32.mrb[0].mxu0
      %2023 = vmatprep.mubr.f32.mxu0 0.0
      %2024 = vmatmul.mubr.f32.gmra.mrb[0].mxu0 %v1842
      %v2025 = vpop.f32.mrb[0].mxu0
      %v2026 = vadd.f32 0.0, %v2025
      %v2027 = vpop.f32.mrb[0].mxu0
      %2028 = vmatprep.mubr.f32.mxu0 0.0
      %2029 = vmatmul.mubr.f32.gmra.mrb[0].mxu0 %v1845
      %v2030 = vpop.f32.mrb[0].mxu0
      %v2031 = vadd.f32 0.0, %v2030
      %v2032 = vpop.f32.mrb[0].mxu0
      %2033 = vmatprep.mubr.f32.mxu0 0.0
      %2034 = vmatmul.mubr.f32.gmra.mrb[0].mxu0 %v1848
      %v2035 = vpop.f32.mrb[0].mxu0
      %v2036 = vadd.f32 0.0, %v2035
      %v2037 = vpop.f32.mrb[0].mxu0
      %2038 = vmatprep.mubr.f32.mxu0 0.0
      %2039 = vmatmul.mubr.f32.gmra.mrb[0].mxu0 %v1851
      %v2040 = vpop.f32.mrb[0].mxu0
      %v2041 = vadd.f32 0.0, %v2040
      %v2042 = vpop.f32.mrb[0].mxu0
      %2043 = vmatprep.mubr.f32.mxu0 0.0
      %2044 = vmatmul.mubr.f32.gmra.mrb[0].mxu0 %v1854
      %v2045 = vpop.f32.mrb[0].mxu0
      %v2046 = vadd.f32 0.0, %v2045
      %v2047 = vpop.f32.mrb[0].mxu0
      %2048 = vmatprep.mubr.f32.mxu0 0.0
      %2049 = vmatmul.mubr.f32.gmra.mrb[0].mxu0 %v1857
      %v2050 = vpop.f32.mrb[0].mxu0
      %v2051 = vadd.f32 0.0, %v2050
      %v2052 = vpop.f32.mrb[0].mxu0
      %2053 = vmatprep.mubr.f32.mxu0 0.0
      %2054 = vmatmul.mubr.f32.gmra.mrb[0].mxu0 %v1860
      %v2055 = vpop.f32.mrb[0].mxu0
      %v2056 = vadd.f32 0.0, %v2055
      %v2057 = vpop.f32.mrb[0].mxu0
      %2058 = vmatprep.mubr.f32.mxu0 0.0
      %2059 = vmatmul.mubr.f32.gmra.mrb[0].mxu0 %v1863
      %v2060 = vpop.f32.mrb[0].mxu0
      %v2061 = vadd.f32 0.0, %v2060
      %v2062 = vpop.f32.mrb[0].mxu0
      %2063 = vmatprep.mubr.f32.mxu0 0.0
      %2064 = vmatmul.mubr.f32.gmra.mrb[0].mxu0 %v1866
      %v2065 = vpop.f32.mrb[0].mxu0
      %v2066 = vadd.f32 0.0, %v2065
      %v2067 = vpop.f32.mrb[0].mxu0
      %2068 = vmatprep.mubr.f32.mxu0 0.0
      %2069 = vmatmul.mubr.f32.gmra.mrb[0].mxu0 %v1869
      %v2070 = vpop.f32.mrb[0].mxu0
      %v2071 = vadd.f32 0.0, %v2070
      %v2072 = vpop.f32.mrb[0].mxu0
      %2073 = vmatprep.mubr.f32.mxu0 0.0
      %2074 = vmatmul.mubr.f32.gmra.mrb[0].mxu0 %v1872
      %v2075 = vpop.f32.mrb[0].mxu0
      %v2076 = vadd.f32 0.0, %v2075
      %v2077 = vpop.f32.mrb[0].mxu0
      %2078 = vmatprep.mubr.f32.mxu0 0.0
      %2079 = vmatmul.mubr.f32.gmra.mrb[0].mxu0 %v1875
      %v2080 = vpop.f32.mrb[0].mxu0
      %v2081 = vadd.f32 0.0, %v2080
      %v2082 = vpop.f32.mrb[0].mxu0
      %2083 = vmatprep.mubr.f32.mxu0 0.0
      %2084 = vmatmul.mubr.f32.gmra.mrb[0].mxu0 %v1878
      %v2085 = vpop.f32.mrb[0].mxu0
      %v2086 = vadd.f32 0.0, %v2085
      %v2087 = vpop.f32.mrb[0].mxu0
      %2088 = vmatprep.mubr.f32.mxu0 0.0
      %2089 = vmatmul.mubr.f32.gmra.mrb[0].mxu0 %v1881
      %v2090 = vpop.f32.mrb[0].mxu0
      %v2091 = vadd.f32 0.0, %v2090
      %v2092 = vpop.f32.mrb[0].mxu0
      %2093 = vmatprep.mubr.f32.mxu0 0.0
      %2094 = vmatmul.mubr.f32.gmra.mrb[0].mxu0 %v1884
      %v2095 = vpop.f32.mrb[0].mxu0
      %v2096 = vadd.f32 0.0, %v2095
      %v2097 = vpop.f32.mrb[0].mxu0
      %2098 = vmatprep.mubr.f32.mxu0 0.0
      %2099 = vmatmul.mubr.f32.gmra.mrb[0].mxu0 %v1887
      %v2100 = vpop.f32.mrb[0].mxu0
      %v2101 = vadd.f32 0.0, %v2100
      %v2102 = vpop.f32.mrb[0].mxu0
      %2103 = vmatprep.mubr.f32.mxu0 0.0
      %2104 = vmatmul.mubr.f32.gmra.mrb[0].mxu0 %v1890
      %v2105 = vpop.f32.mrb[0].mxu0
      %v2106 = vadd.f32 0.0, %v2105
      %v2107 = vpop.f32.mrb[0].mxu0
      %2108 = vmatprep.mubr.f32.mxu0 0.0
      %2109 = vmatmul.mubr.f32.gmra.mrb[0].mxu0 %v1893
      %v2110 = vpop.f32.mrb[0].mxu0
      %v2111 = vadd.f32 0.0, %v2110
      %v2112 = vpop.f32.mrb[0].mxu0
      %2113 = vmatprep.mubr.f32.mxu0 0.0
      %2114 = vmatmul.mubr.f32.gmra.mrb[0].mxu0 %v1896
      %v2115 = vpop.f32.mrb[0].mxu0
      %v2116 = vadd.f32 0.0, %v2115
      %v2117 = vpop.f32.mrb[0].mxu0
      %2118 = vmatprep.mubr.f32.mxu0 0.0
      %2119 = vmatmul.mubr.f32.gmra.mrb[0].mxu0 %v1899
      %v2120 = vpop.f32.mrb[0].mxu0
      %v2121 = vadd.f32 0.0, %v2120
      %v2122 = vpop.f32.mrb[0].mxu0
      %2123 = vmatprep.mubr.f32.mxu0 0.0
      %2124 = vmatmul.mubr.f32.gmra.mrb[0].mxu0 %v1902
      %v2125 = vpop.f32.mrb[0].mxu0
      %v2126 = vadd.f32 0.0, %v2125
      %v2127 = vpop.f32.mrb[0].mxu0
      %2128 = vmatprep.mubr.f32.mxu0 0.0
      %2129 = vmatmul.mubr.f32.gmra.mrb[0].mxu0 %v1905
      %v2130 = vpop.f32.mrb[0].mxu0
      %v2131 = vadd.f32 0.0, %v2130
      %v2132 = vpop.f32.mrb[0].mxu0
      %2133 = vmatprep.mubr.f32.mxu0 0.0
      %2134 = vmatmul.mubr.f32.gmra.mrb[0].mxu0 %v1908
      %v2135 = vpop.f32.mrb[0].mxu0
      %v2136 = vadd.f32 0.0, %v2135
      %v2137 = vpop.f32.mrb[0].mxu0
      %2138 = vdwg.mxu0
      %v2139 = vld [vmem:[%s2] sm:$0x1]
      %v2141 = vlaneseq
      %v2142 = vshrl.u32 %v2141, 7
      %v2143 = vsub.s32 0, %v2142
      %v2144 = vrot.slane %v2139, %v2143
      %v2146 = vmul.f32 %v1981, %v2144
      %v2147 = vmul.f32 %v1986, %v2144
      %v2148 = vmul.f32 %v1991, %v2144
      %v2149 = vmul.f32 %v1996, %v2144
      %v2150 = vmul.f32 %v2001, %v2144
      %v2151 = vmul.f32 %v2006, %v2144
      %v2152 = vmul.f32 %v2011, %v2144
      %v2153 = vmul.f32 %v2016, %v2144
      %v2154 = vmul.f32 %v2021, %v2144
      %v2155 = vmul.f32 %v2026, %v2144
      %v2156 = vmul.f32 %v2031, %v2144
      %v2157 = vmul.f32 %v2036, %v2144
      %v2158 = vmul.f32 %v2041, %v2144
      %v2159 = vmul.f32 %v2046, %v2144
      %v2160 = vmul.f32 %v2051, %v2144
      %v2161 = vmul.f32 %v2056, %v2144
      %v2162 = vmul.f32 %v2061, %v2144
      %v2163 = vmul.f32 %v2066, %v2144
      %v2164 = vmul.f32 %v2071, %v2144
      %v2165 = vmul.f32 %v2076, %v2144
      %v2166 = vmul.f32 %v2081, %v2144
      %v2167 = vmul.f32 %v2086, %v2144
      %v2168 = vmul.f32 %v2091, %v2144
      %v2169 = vmul.f32 %v2096, %v2144
      %v2170 = vmul.f32 %v2101, %v2144
      %v2171 = vmul.f32 %v2106, %v2144
      %v2172 = vmul.f32 %v2111, %v2144
      %v2173 = vmul.f32 %v2116, %v2144
      %v2174 = vmul.f32 %v2121, %v2144
      %v2175 = vmul.f32 %v2126, %v2144
      %v2176 = vmul.f32 %v2131, %v2144
      %v2177 = vmul.f32 %v2136, %v2144
      %v2178 = vld [vmem:[%s3] sm:$0x1]
      %v2180 = vlaneseq
      %v2181 = vshrl.u32 %v2180, 7
      %v2182 = vsub.s32 0, %v2181
      %v2183 = vrot.slane %v2178, %v2182
      %v2185 = vadd.f32 %v2146, %v2183
      %v2186 = vadd.f32 %v2147, %v2183
      %v2187 = vadd.f32 %v2148, %v2183
      %v2188 = vadd.f32 %v2149, %v2183
      %v2189 = vadd.f32 %v2150, %v2183
      %v2190 = vadd.f32 %v2151, %v2183
      %v2191 = vadd.f32 %v2152, %v2183
      %v2192 = vadd.f32 %v2153, %v2183
      %v2193 = vadd.f32 %v2154, %v2183
      %v2194 = vadd.f32 %v2155, %v2183
      %v2195 = vadd.f32 %v2156, %v2183
      %v2196 = vadd.f32 %v2157, %v2183
      %v2197 = vadd.f32 %v2158, %v2183
      %v2198 = vadd.f32 %v2159, %v2183
      %v2199 = vadd.f32 %v2160, %v2183
      %v2200 = vadd.f32 %v2161, %v2183
      %v2201 = vadd.f32 %v2162, %v2183
      %v2202 = vadd.f32 %v2163, %v2183
      %v2203 = vadd.f32 %v2164, %v2183
      %v2204 = vadd.f32 %v2165, %v2183
      %v2205 = vadd.f32 %v2166, %v2183
      %v2206 = vadd.f32 %v2167, %v2183
      %v2207 = vadd.f32 %v2168, %v2183
      %v2208 = vadd.f32 %v2169, %v2183
      %v2209 = vadd.f32 %v2170, %v2183
      %v2210 = vadd.f32 %v2171, %v2183
      %v2211 = vadd.f32 %v2172, %v2183
      %v2212 = vadd.f32 %v2173, %v2183
      %v2213 = vadd.f32 %v2174, %v2183
      %v2214 = vadd.f32 %v2175, %v2183
      %v2215 = vadd.f32 %v2176, %v2183
      %v2216 = vadd.f32 %v2177, %v2183
      %2217 = vst [vmem:[%s221] sm:$0xff] %v2185
      %2218 = vst [vmem:[%s221 + $0x8] sm:$0xff] %v2186
      %2219 = vst [vmem:[%s221 + $0x10] sm:$0xff] %v2187
      %2220 = vst [vmem:[%s221 + $0x18] sm:$0xff] %v2188
      %2221 = vst [vmem:[%s221 + $0x20] sm:$0xff] %v2189
      %2222 = vst [vmem:[%s221 + $0x28] sm:$0xff] %v2190
      %2223 = vst [vmem:[%s221 + $0x30] sm:$0xff] %v2191
      %2224 = vst [vmem:[%s221 + $0x38] sm:$0xff] %v2192
      %2225 = vst [vmem:[%s221 + $0x40] sm:$0xff] %v2193
      %2226 = vst [vmem:[%s221 + $0x48] sm:$0xff] %v2194
      %2227 = vst [vmem:[%s221 + $0x50] sm:$0xff] %v2195
      %2228 = vst [vmem:[%s221 + $0x58] sm:$0xff] %v2196
      %2229 = vst [vmem:[%s221 + $0x60] sm:$0xff] %v2197
      %2230 = vst [vmem:[%s221 + $0x68] sm:$0xff] %v2198
      %2231 = vst [vmem:[%s221 + $0x70] sm:$0xff] %v2199
      %2232 = vst [vmem:[%s221 + $0x78] sm:$0xff] %v2200
      %2233 = vst [vmem:[%s221 + $0x80] sm:$0xff] %v2201
      %2234 = vst [vmem:[%s221 + $0x88] sm:$0xff] %v2202
      %2235 = vst [vmem:[%s221 + $0x90] sm:$0xff] %v2203
      %2236 = vst [vmem:[%s221 + $0x98] sm:$0xff] %v2204
      %2237 = vst [vmem:[%s221 + $0xa0] sm:$0xff] %v2205
      %2238 = vst [vmem:[%s221 + $0xa8] sm:$0xff] %v2206
      %2239 = vst [vmem:[%s221 + $0xb0] sm:$0xff] %v2207
      %2240 = vst [vmem:[%s221 + $0xb8] sm:$0xff] %v2208
      %2241 = vst [vmem:[%s221 + $0xc0] sm:$0xff] %v2209
      %2242 = vst [vmem:[%s221 + $0xc8] sm:$0xff] %v2210
      %2243 = vst [vmem:[%s221 + $0xd0] sm:$0xff] %v2211
      %2244 = vst [vmem:[%s221 + $0xd8] sm:$0xff] %v2212
      %2245 = vst [vmem:[%s221 + $0xe0] sm:$0xff] %v2213
      %2246 = vst [vmem:[%s221 + $0xe8] sm:$0xff] %v2214
      %2247 = vst [vmem:[%s221 + $0xf0] sm:$0xff] %v2215
      %2248 = vst [vmem:[%s221 + $0xf8] sm:$0xff] %v2216
      %s2249 = smul.u32 16, %s20
      %p2250 = scmp.lt.s32.totalorder %s19, 1
      %s2251 = scalar_select %p2250, %s19, 1
      %p2252 = scmp.lt.s32.totalorder %s2249, 15
      %s2253 = scalar_select %p2252, %s2249, 15
      %s2254 = smul.addr %s2253, 2
      %s2255 = smul.addr %s2251, 32
      %s2256 = sadd.s32 %s2254, %s2255
      %s2257 = smul.addr %s2256, 8
      %s2258 = scalar_lea.vmem %s4, %s2257
      // Predicated region
      $region37: #{conv2d_batchnorm.3} parent=35 // pred_check
        %p2259 = pneg %p136
      $region38: #{conv2d_batchnorm.3} parent=35 // pred_check_branch
        %2261 = sbr.rel (%p2259) target = $region40
      $region39: #{conv2d_batchnorm.3} parent=35 // pred_region
        %s2262 = smul.u32 16, %s20
      $region40: #{conv2d_batchnorm.3} parent=35 // pred_fallthru
        _
    $region36: #{conv2d_batchnorm.3} parent=5 // pred_fallthru
      _
    %p2263 = scmp.le.s32.totalorder 2, %s10
    // Predicated region
    $region41: #{conv2d_batchnorm.3} parent=5 // pred_check
      %p2264 = pneg %p2263
    $region42: #{conv2d_batchnorm.3} parent=5 // pred_check_branch
      %2266 = sbr.rel (%p2264) target = $region44
    $region43: #{conv2d_batchnorm.3} parent=5 // pred_region
      %s2267 = ssub.s32 %s10, 2
      // Predicated region
      $region45: #{conv2d_batchnorm.3} parent=43 // pred_check
        %p2268 = pneg %p142
      $region46: #{conv2d_batchnorm.3} parent=43 // pred_check_branch
        %2270 = sbr.rel (%p2268) target = $region48
      $region47: #{conv2d_batchnorm.3} parent=43 // pred_region
        %s2271 = smul.u32 16, %s22
        %p2272 = scmp.lt.s32.totalorder %s21, 1
        %s2273 = scalar_select %p2272, %s21, 1
        %p2274 = scmp.lt.s32.totalorder %s2271, 15
        %s2275 = scalar_select %p2274, %s2271, 15
        %s2276 = smul.addr %s2275, 2
        %s2277 = smul.addr %s2273, 32
        %s2278 = sadd.s32 %s2276, %s2277
        %s2279 = smul.addr %s2278, 8
        %s2280 = scalar_lea.vmem %s4, %s2279
      $region48: #{conv2d_batchnorm.3} parent=43 // pred_fallthru
        _
    $region44: #{conv2d_batchnorm.3} parent=5 // pred_fallthru
      _
  $region6: #{conv2d_batchnorm.3} parent=0 // loop_footer
    %s14 = sadd.s32 1, %s10
  $region7: #{conv2d_batchnorm.3} parent=0 // loop_footer_branch
    %9 = sbr.rel target = $region3
  $region8: #{conv2d_batchnorm.3} parent=0 // loop_exit
    _

</llo_original>
